<compile_context>
chip_gen: v7x
topology: tpu7x:2x2x1
jax: 0.10.0
libtpu: 0.0.40
codegen_flags: <defaults>
</compile_context>

<pallas_src>
import functools
import math

import jax
import jax.numpy as jnp
from jax import lax
from jax.experimental import pallas as pl
from jax.experimental.pallas import tpu as pltpu

D_MODEL = 32
N_HEADS = 4
D_HEAD = D_MODEL // N_HEADS
D_FFN = 64
NUM_LAYERS = 2
RETURN_INTERMEDIATE = True
LN_EPS = 1e-5
ATTN_SCALE = 1.0 / math.sqrt(D_HEAD)


# ------------------------------ kernel helpers ------------------------------- #

def _mha(q, k, v):
    """q:[Lq,D], k/v:[Lk,D] -> [Lq,D].

    Heads via static lane slices; ONE fused softmax across all heads by
    stacking the per-head score tiles to [H*Lq, Lk].
    """
    lq = q.shape[0]
    scores = []
    for h in range(N_HEADS):
        sl = slice(h * D_HEAD, (h + 1) * D_HEAD)
        # s_h = q_h @ k_h^T (contract last dims; no explicit transpose)
        s_h = lax.dot_general(q[:, sl], k[:, sl], (((1,), (1,)), ((), ())),
                              preferred_element_type=jnp.float32)
        scores.append(s_h)
    s = jnp.concatenate(scores, axis=0) * ATTN_SCALE        # [H*Lq, Lk]
    m = jnp.max(s, axis=-1, keepdims=True)
    p = jnp.exp(s - m)
    denom = jnp.sum(p, axis=-1, keepdims=True)
    p = p * pl.reciprocal(denom, approx=False)              # exact softmax rows
    outs = []
    for h in range(N_HEADS):
        ph = p[h * lq:(h + 1) * lq, :]
        vh = v[:, h * D_HEAD:(h + 1) * D_HEAD]
        outs.append(jnp.dot(ph, vh, preferred_element_type=jnp.float32))
    return jnp.concatenate(outs, axis=-1)                   # [Lq, D]


def _add_ln(x, r, g, b):
    """LayerNorm(x + r) * g + b over the last axis (g, b are [1, D])."""
    y = x + r
    mean = jnp.mean(y, axis=-1, keepdims=True)
    var = jnp.mean((y - mean) ** 2, axis=-1, keepdims=True)
    return (y - mean) * lax.rsqrt(var + LN_EPS) * g + b


# ------------------------------ fused kernel -------------------------------- #

def _decoder_kernel(tgt_ref, mem_ref, qp_ref,
                    w_fused_ref,   # [L, 2, D, 2D]  : sa_wqk, ca_wkv
                    w_sq_ref,      # [L, 4, D, D]   : sa_wv, sa_wo, ca_wq, ca_wo
                    w1_ref,        # [L, D, F]
                    w2_ref,        # [L, F, D]
                    b_fused_ref,   # [L, 2, 2D]     : sa_bqk, ca_bkv
                    b1_ref,        # [L, 1, F]
                    vec1_ref,      # [L, 11, D]     : biases + LN params
                    out_ref,       # [L_out, 1, Q, D]
                    *, num_layers, return_intermediate):
    tgt = tgt_ref[0].astype(jnp.float32)                    # [Q, D]
    qp = qp_ref[0].astype(jnp.float32)                      # [Q, D]
    mem = mem_ref[0].astype(jnp.float32)                    # [S, D]

    for l in range(num_layers):                             # static unroll (L=2)
        w_sa_qk = w_fused_ref[l, 0]                         # [D, 2D]
        w_ca_kv = w_fused_ref[l, 1]                         # [D, 2D]
        sa_wv = w_sq_ref[l, 0]
        sa_wo = w_sq_ref[l, 1]
        ca_wq = w_sq_ref[l, 2]
        ca_wo = w_sq_ref[l, 3]
        w1 = w1_ref[l]                                      # [D, F]
        w2 = w2_ref[l]                                      # [F, D]

        b2d = b_fused_ref[l]                                # [2, 2D]
        sa_bqk = b2d[0:1, :]
        ca_bkv = b2d[1:2, :]
        b1 = b1_ref[l]                                      # [1, F]

        v1 = vec1_ref[l]                                    # [11, D]
        sa_bv, sa_bo = v1[0:1], v1[1:2]
        ca_bq, ca_bo = v1[2:3], v1[3:4]
        b2 = v1[4:5]
        ln1_g, ln1_b = v1[5:6], v1[6:7]
        ln2_g, ln2_b = v1[7:8], v1[8:9]
        ln3_g, ln3_b = v1[9:10], v1[10:11]

        # -------- self-attention: q = k = tgt + qpos, v = tgt ----------------
        q_in = tgt + qp
        qk = jnp.dot(q_in, w_sa_qk,
                     preferred_element_type=jnp.float32) + sa_bqk   # [Q, 2D]
        q, k = qk[:, :D_MODEL], qk[:, D_MODEL:]
        v = jnp.dot(tgt, sa_wv, preferred_element_type=jnp.float32) + sa_bv
        attn = _mha(q, k, v)
        sa_out = jnp.dot(attn, sa_wo,
                         preferred_element_type=jnp.float32) + sa_bo
        tgt = _add_ln(tgt, sa_out, ln1_g, ln1_b)

        # -------- cross-attention over memory --------------------------------
        q = jnp.dot(tgt + qp, ca_wq,
                    preferred_element_type=jnp.float32) + ca_bq     # [Q, D]
        kv = jnp.dot(mem, w_ca_kv,
                     preferred_element_type=jnp.float32) + ca_bkv   # [S, 2D]
        k, v = kv[:, :D_MODEL], kv[:, D_MODEL:]
        attn = _mha(q, k, v)
        ca_out = jnp.dot(attn, ca_wo,
                         preferred_element_type=jnp.float32) + ca_bo
        tgt = _add_ln(tgt, ca_out, ln2_g, ln2_b)

        # -------- FFN ----------------------------------------------------------
        h = jnp.dot(tgt, w1, preferred_element_type=jnp.float32) + b1
        h = jnp.maximum(h, 0.0)
        ffn = jnp.dot(h, w2, preferred_element_type=jnp.float32) + b2
        tgt = _add_ln(tgt, ffn, ln3_g, ln3_b)

        if return_intermediate:
            out_ref[l, 0] = tgt.astype(out_ref.dtype)
        elif l == num_layers - 1:
            out_ref[0, 0] = tgt.astype(out_ref.dtype)


# ------------------------------ wrapper -------------------------------------- #

def _pack_layer_params(layers):
    """Stack per-layer params into a few packed arrays (leading layer axis)."""
    def stack(fn):
        return jnp.stack([fn(p) for p in layers])

    w_fused = stack(lambda p: jnp.stack([
        jnp.concatenate([p["self_attn"]["wq"], p["self_attn"]["wk"]], axis=1),
        jnp.concatenate([p["cross_attn"]["wk"], p["cross_attn"]["wv"]], axis=1),
    ]))                                                        # [L, 2, D, 2D]
    w_sq = stack(lambda p: jnp.stack([
        p["self_attn"]["wv"], p["self_attn"]["wo"],
        p["cross_attn"]["wq"], p["cross_attn"]["wo"],
    ]))                                                        # [L, 4, D, D]
    w1 = stack(lambda p: p["w1"])                              # [L, D, F]
    w2 = stack(lambda p: p["w2"])                              # [L, F, D]
    b_fused = stack(lambda p: jnp.stack([
        jnp.concatenate([p["self_attn"]["bq"], p["self_attn"]["bk"]]),
        jnp.concatenate([p["cross_attn"]["bk"], p["cross_attn"]["bv"]]),
    ]))                                                        # [L, 2, 2D]
    b1 = stack(lambda p: p["b1"][None, :])                     # [L, 1, F]
    vec1 = stack(lambda p: jnp.stack([
        p["self_attn"]["bv"], p["self_attn"]["bo"],
        p["cross_attn"]["bq"], p["cross_attn"]["bo"], p["b2"],
        p["ln1"]["g"], p["ln1"]["b"],
        p["ln2"]["g"], p["ln2"]["b"],
        p["ln3"]["g"], p["ln3"]["b"],
    ]))                                                        # [L, 11, D]
    return w_fused, w_sq, w1, w2, b_fused, b1, vec1


def transformer_decoder(tgt, memory, reference_points, memory_spatial_shapes,
                        params, memory_mask=None, query_pos_embed=None,
                        valid_ratios=None, return_intermediate=RETURN_INTERMEDIATE):
    del reference_points, memory_spatial_shapes, valid_ratios  # unused by layer
    # TODO(synk): memory_mask is not supported; only the memory_mask=None path.
    del memory_mask

    B, Q, D = tgt.shape
    S = memory.shape[1]
    qp = query_pos_embed if query_pos_embed is not None else jnp.zeros_like(tgt)
    L = len(params["layers"])
    L_out = L if return_intermediate else 1

    packed = _pack_layer_params(params["layers"])

    def _full(arr):
        n = arr.ndim
        return pl.BlockSpec(arr.shape, lambda b, _n=n: (0,) * _n)

    in_specs = [
        pl.BlockSpec((1, Q, D), lambda b: (b, 0, 0)),   # tgt
        pl.BlockSpec((1, S, D), lambda b: (b, 0, 0)),   # memory
        pl.BlockSpec((1, Q, D), lambda b: (b, 0, 0)),   # query_pos
    ] + [_full(a) for a in packed]                      # weights: constant index
                                                        # -> fetched once, resident

    kernel = functools.partial(_decoder_kernel, num_layers=L,
                               return_intermediate=return_intermediate)

    out = pl.pallas_call(
        kernel,
        out_shape=jax.ShapeDtypeStruct((L_out, B, Q, D), tgt.dtype),
        grid=(B,),
        in_specs=in_specs,
        out_specs=pl.BlockSpec((L_out, 1, Q, D), lambda b: (0, b, 0, 0)),
        compiler_params=pltpu.CompilerParams(
            dimension_semantics=("parallel",)),
    )(tgt, memory, qp, *packed)

    return out      # [L, B, Q, D] if return_intermediate else [1, B, Q, D]


# ----------------------- reference points (glue, JAX) ------------------------ #

def get_reference_points(spatial_shapes, valid_ratios, H, W):
    del spatial_shapes
    vr = valid_ratios[:, None]                                    # (B,1,L,2)
    ref_y, ref_x = jnp.meshgrid(jnp.linspace(0.5, H - 0.5, H),
                                jnp.linspace(0.5, W - 0.5, W), indexing="ij")
    ref_y = ref_y.reshape(-1)[None] / H
    ref_x = ref_x.reshape(-1)[None] / W
    ref = jnp.stack((ref_x, ref_y), axis=-1)                      # (1, HW, 2)
    return ref[:, :, None] * vr                                   # (B, HW, L, 2)


# ------------------------------- parameters ---------------------------------- #

def init_params(key):
    def attn_params(k):
        ks = jax.random.split(k, 4)
        w = lambda kk: 0.02 * jax.random.normal(kk, (D_MODEL, D_MODEL), jnp.float32)
        z = lambda: jnp.zeros((D_MODEL,), jnp.float32)
        return dict(wq=w(ks[0]), wk=w(ks[1]), wv=w(ks[2]), wo=w(ks[3]),
                    bq=z(), bk=z(), bv=z(), bo=z())

    def ln_params():
        return dict(g=jnp.ones((D_MODEL,), jnp.float32),
                    b=jnp.zeros((D_MODEL,), jnp.float32))

    k1, k2, k3, k4 = jax.random.split(key, 4)
    layer = dict(
        self_attn=attn_params(k1),
        cross_attn=attn_params(k2),
        w1=0.02 * jax.random.normal(k3, (D_MODEL, D_FFN), jnp.float32),
        b1=jnp.zeros((D_FFN,), jnp.float32),
        w2=0.02 * jax.random.normal(k4, (D_FFN, D_MODEL), jnp.float32),
        b2=jnp.zeros((D_MODEL,), jnp.float32),
        ln1=ln_params(), ln2=ln_params(), ln3=ln_params(),
    )
    # _get_clones deep-copies the same layer -> identical initial params per layer
    return dict(layers=[layer for _ in range(NUM_LAYERS)])


# -------------------------- pure-JAX reference ------------------------------- #

def _reference_decoder(tgt, memory, qp, layers, return_intermediate):
    def mha(q_in, k_in, v_in, p):
        B, Lq, D = q_in.shape
        Lk = k_in.shape[1]
        q = q_in @ p["wq"] + p["bq"]
        k = k_in @ p["wk"] + p["bk"]
        v = v_in @ p["wv"] + p["bv"]
        q = q.reshape(B, Lq, N_HEADS, D_HEAD).transpose(0, 2, 1, 3)
        k = k.reshape(B, Lk, N_HEADS, D_HEAD).transpose(0, 2, 1, 3)
        v = v.reshape(B, Lk, N_HEADS, D_HEAD).transpose(0, 2, 1, 3)
        s = jnp.einsum("bhqd,bhkd->bhqk", q, k) * ATTN_SCALE
        a = jax.nn.softmax(s, axis=-1)
        o = jnp.einsum("bhqk,bhkd->bhqd", a, v)
        o = o.transpose(0, 2, 1, 3).reshape(B, Lq, D)
        return o @ p["wo"] + p["bo"]

    def ln(x, g, b):
        mu = x.mean(-1, keepdims=True)
        var = ((x - mu) ** 2).mean(-1, keepdims=True)
        return (x - mu) / jnp.sqrt(var + LN_EPS) * g + b

    out = tgt
    inter = []
    for p in layers:
        q = out + qp
        out = ln(out + mha(q, q, out, p["self_attn"]), p["ln1"]["g"], p["ln1"]["b"])
        out = ln(out + mha(out + qp, memory, memory, p["cross_attn"]),
                 p["ln2"]["g"], p["ln2"]["b"])
        h = jnp.maximum(out @ p["w1"] + p["b1"], 0.0)
        out = ln(out + h @ p["w2"] + p["b2"], p["ln3"]["g"], p["ln3"]["b"])
        inter.append(out)
    return jnp.stack(inter) if return_intermediate else out[None]


# ---------------------------------- main -------------------------------------- #

if __name__ == "__main__":
    key = jax.random.PRNGKey(0)
    k_tgt, k_mem, k_qp = jax.random.split(key, 3)

    B, Q = 2, 8           # batch, number of queries
    H = W = 4             # memory spatial shape
    S = H * W             # memory length

    tgt = jax.random.normal(k_tgt, (B, Q, D_MODEL), jnp.float32)
    memory = jax.random.normal(k_mem, (B, S, D_MODEL), jnp.float32)
    query_pos = jax.random.normal(k_qp, (B, Q, D_MODEL), jnp.float32)

    memory_spatial_shapes = jnp.array([[H, W]], jnp.int32)
    valid_ratios = jnp.ones((B, 1, 2), jnp.float32)
    reference_points = get_reference_points(memory_spatial_shapes, valid_ratios, H, W)

    params = init_params(jax.random.PRNGKey(42))

    out = transformer_decoder(tgt, memory, reference_points, memory_spatial_shapes,
                              params, memory_mask=None,
                              query_pos_embed=query_pos,
                              valid_ratios=valid_ratios,
                              return_intermediate=RETURN_INTERMEDIATE)
    jax.block_until_ready(out)

    expected = (NUM_LAYERS if RETURN_INTERMEDIATE else 1, B, Q, D_MODEL)
    assert out.shape == expected, (out.shape, expected)
    assert jnp.all(jnp.isfinite(out))

    ref = _reference_decoder(tgt, memory, query_pos, params["layers"],
                             RETURN_INTERMEDIATE)
    assert jnp.allclose(out, ref, atol=2e-2, rtol=2e-2), \
        float(jnp.max(jnp.abs(out - ref)))

    print("KERNEL_OK")
</pallas_src>

<mosaic_0001>
module attributes {stable_mosaic.version = 11 : i64} {
  func.func @_decoder_kernel(%arg0: i32, %arg1: memref<1x8x32xf32, #tpu.memory_space<vmem>>, %arg2: memref<1x16x32xf32, #tpu.memory_space<vmem>>, %arg3: memref<1x8x32xf32, #tpu.memory_space<vmem>>, %arg4: memref<2x2x32x64xf32, #tpu.memory_space<vmem>>, %arg5: memref<2x4x32x32xf32, #tpu.memory_space<vmem>>, %arg6: memref<2x32x64xf32, #tpu.memory_space<vmem>>, %arg7: memref<2x64x32xf32, #tpu.memory_space<vmem>>, %arg8: memref<2x2x64xf32, #tpu.memory_space<vmem>>, %arg9: memref<2x1x64xf32, #tpu.memory_space<vmem>>, %arg10: memref<2x11x32xf32, #tpu.memory_space<vmem>>, %arg11: memref<2x1x8x32xf32, #tpu.memory_space<vmem>>) attributes {dimension_semantics = [#tpu.dimension_semantics<parallel>], iteration_bounds = array<i64: 2>, scalar_prefetch = 0 : i64, scratch_operands = 0 : i64, tpu.core_type = #tpu.core_type<tc>, window_params = [{transform_indices = @transform_0, window_bounds = array<i64: 1, 8, 32>}, {transform_indices = @transform_1, window_bounds = array<i64: 1, 16, 32>}, {transform_indices = @transform_2, window_bounds = array<i64: 1, 8, 32>}, {pipeline_mode = #tpu.pipeline_mode<synchronous>, transform_indices = @transform_3, window_bounds = array<i64: 2, 2, 32, 64>}, {pipeline_mode = #tpu.pipeline_mode<synchronous>, transform_indices = @transform_4, window_bounds = array<i64: 2, 4, 32, 32>}, {pipeline_mode = #tpu.pipeline_mode<synchronous>, transform_indices = @transform_5, window_bounds = array<i64: 2, 32, 64>}, {pipeline_mode = #tpu.pipeline_mode<synchronous>, transform_indices = @transform_6, window_bounds = array<i64: 2, 64, 32>}, {pipeline_mode = #tpu.pipeline_mode<synchronous>, transform_indices = @transform_7, window_bounds = array<i64: 2, 2, 64>}, {pipeline_mode = #tpu.pipeline_mode<synchronous>, transform_indices = @transform_8, window_bounds = array<i64: 2, 1, 64>}, {pipeline_mode = #tpu.pipeline_mode<synchronous>, transform_indices = @transform_9, window_bounds = array<i64: 2, 11, 32>}, {transform_indices = @transform_10, window_bounds = array<i64: 2, 1, 8, 32>}]} {
    %c0 = arith.constant 0 : index
    %c0_0 = arith.constant 0 : index
    %c0_1 = arith.constant 0 : index
    %0 = vector.load %arg1[%c0, %c0_0, %c0_1] : memref<1x8x32xf32, #tpu.memory_space<vmem>>, vector<1x8x32xf32>
    %1 = vector.shape_cast %0 : vector<1x8x32xf32> to vector<8x32xf32>
    %c0_2 = arith.constant 0 : index
    %c0_3 = arith.constant 0 : index
    %c0_4 = arith.constant 0 : index
    %2 = vector.load %arg3[%c0_2, %c0_3, %c0_4] : memref<1x8x32xf32, #tpu.memory_space<vmem>>, vector<1x8x32xf32>
    %3 = vector.shape_cast %2 : vector<1x8x32xf32> to vector<8x32xf32>
    %c0_5 = arith.constant 0 : index
    %c0_6 = arith.constant 0 : index
    %c0_7 = arith.constant 0 : index
    %4 = vector.load %arg2[%c0_5, %c0_6, %c0_7] : memref<1x16x32xf32, #tpu.memory_space<vmem>>, vector<1x16x32xf32>
    %5 = vector.shape_cast %4 : vector<1x16x32xf32> to vector<16x32xf32>
    %c0_8 = arith.constant 0 : index
    %c0_9 = arith.constant 0 : index
    %c0_10 = arith.constant 0 : index
    %c0_11 = arith.constant 0 : index
    %6 = vector.load %arg4[%c0_8, %c0_9, %c0_10, %c0_11] : memref<2x2x32x64xf32, #tpu.memory_space<vmem>>, vector<1x1x32x64xf32>
    %7 = vector.shape_cast %6 : vector<1x1x32x64xf32> to vector<32x64xf32>
    %c0_12 = arith.constant 0 : index
    %c1 = arith.constant 1 : index
    %c0_13 = arith.constant 0 : index
    %c0_14 = arith.constant 0 : index
    %8 = vector.load %arg4[%c0_12, %c1, %c0_13, %c0_14] : memref<2x2x32x64xf32, #tpu.memory_space<vmem>>, vector<1x1x32x64xf32>
    %9 = vector.shape_cast %8 : vector<1x1x32x64xf32> to vector<32x64xf32>
    %c0_15 = arith.constant 0 : index
    %c0_16 = arith.constant 0 : index
    %c0_17 = arith.constant 0 : index
    %c0_18 = arith.constant 0 : index
    %10 = vector.load %arg5[%c0_15, %c0_16, %c0_17, %c0_18] : memref<2x4x32x32xf32, #tpu.memory_space<vmem>>, vector<1x1x32x32xf32>
    %11 = vector.shape_cast %10 : vector<1x1x32x32xf32> to vector<32x32xf32>
    %c0_19 = arith.constant 0 : index
    %c1_20 = arith.constant 1 : index
    %c0_21 = arith.constant 0 : index
    %c0_22 = arith.constant 0 : index
    %12 = vector.load %arg5[%c0_19, %c1_20, %c0_21, %c0_22] : memref<2x4x32x32xf32, #tpu.memory_space<vmem>>, vector<1x1x32x32xf32>
    %13 = vector.shape_cast %12 : vector<1x1x32x32xf32> to vector<32x32xf32>
    %c0_23 = arith.constant 0 : index
    %c2 = arith.constant 2 : index
    %c0_24 = arith.constant 0 : index
    %c0_25 = arith.constant 0 : index
    %14 = vector.load %arg5[%c0_23, %c2, %c0_24, %c0_25] : memref<2x4x32x32xf32, #tpu.memory_space<vmem>>, vector<1x1x32x32xf32>
    %15 = vector.shape_cast %14 : vector<1x1x32x32xf32> to vector<32x32xf32>
    %c0_26 = arith.constant 0 : index
    %c3 = arith.constant 3 : index
    %c0_27 = arith.constant 0 : index
    %c0_28 = arith.constant 0 : index
    %16 = vector.load %arg5[%c0_26, %c3, %c0_27, %c0_28] : memref<2x4x32x32xf32, #tpu.memory_space<vmem>>, vector<1x1x32x32xf32>
    %17 = vector.shape_cast %16 : vector<1x1x32x32xf32> to vector<32x32xf32>
    %c0_29 = arith.constant 0 : index
    %c0_30 = arith.constant 0 : index
    %c0_31 = arith.constant 0 : index
    %18 = vector.load %arg6[%c0_29, %c0_30, %c0_31] : memref<2x32x64xf32, #tpu.memory_space<vmem>>, vector<1x32x64xf32>
    %19 = vector.shape_cast %18 : vector<1x32x64xf32> to vector<32x64xf32>
    %c0_32 = arith.constant 0 : index
    %c0_33 = arith.constant 0 : index
    %c0_34 = arith.constant 0 : index
    %20 = vector.load %arg7[%c0_32, %c0_33, %c0_34] : memref<2x64x32xf32, #tpu.memory_space<vmem>>, vector<1x64x32xf32>
    %21 = vector.shape_cast %20 : vector<1x64x32xf32> to vector<64x32xf32>
    %c0_35 = arith.constant 0 : index
    %c0_36 = arith.constant 0 : index
    %c0_37 = arith.constant 0 : index
    %22 = vector.load %arg8[%c0_35, %c0_36, %c0_37] : memref<2x2x64xf32, #tpu.memory_space<vmem>>, vector<1x2x64xf32>
    %23 = vector.shape_cast %22 : vector<1x2x64xf32> to vector<2x64xf32>
    %24 = vector.extract_strided_slice %23 {offsets = [0, 0], sizes = [1, 64], strides = [1, 1]} : vector<2x64xf32> to vector<1x64xf32>
    %25 = vector.extract_strided_slice %23 {offsets = [1, 0], sizes = [1, 64], strides = [1, 1]} : vector<2x64xf32> to vector<1x64xf32>
    %c0_38 = arith.constant 0 : index
    %c0_39 = arith.constant 0 : index
    %c0_40 = arith.constant 0 : index
    %26 = vector.load %arg9[%c0_38, %c0_39, %c0_40] : memref<2x1x64xf32, #tpu.memory_space<vmem>>, vector<1x1x64xf32>
    %27 = vector.shape_cast %26 : vector<1x1x64xf32> to vector<1x64xf32>
    %c0_41 = arith.constant 0 : index
    %c0_42 = arith.constant 0 : index
    %c0_43 = arith.constant 0 : index
    %28 = vector.load %arg10[%c0_41, %c0_42, %c0_43] : memref<2x11x32xf32, #tpu.memory_space<vmem>>, vector<1x11x32xf32>
    %29 = vector.shape_cast %28 : vector<1x11x32xf32> to vector<11x32xf32>
    %30 = vector.extract_strided_slice %29 {offsets = [0, 0], sizes = [1, 32], strides = [1, 1]} : vector<11x32xf32> to vector<1x32xf32>
    %31 = vector.extract_strided_slice %29 {offsets = [1, 0], sizes = [1, 32], strides = [1, 1]} : vector<11x32xf32> to vector<1x32xf32>
    %32 = vector.extract_strided_slice %29 {offsets = [2, 0], sizes = [1, 32], strides = [1, 1]} : vector<11x32xf32> to vector<1x32xf32>
    %33 = vector.extract_strided_slice %29 {offsets = [3, 0], sizes = [1, 32], strides = [1, 1]} : vector<11x32xf32> to vector<1x32xf32>
    %34 = vector.extract_strided_slice %29 {offsets = [4, 0], sizes = [1, 32], strides = [1, 1]} : vector<11x32xf32> to vector<1x32xf32>
    %35 = vector.extract_strided_slice %29 {offsets = [5, 0], sizes = [1, 32], strides = [1, 1]} : vector<11x32xf32> to vector<1x32xf32>
    %36 = vector.extract_strided_slice %29 {offsets = [6, 0], sizes = [1, 32], strides = [1, 1]} : vector<11x32xf32> to vector<1x32xf32>
    %37 = vector.extract_strided_slice %29 {offsets = [7, 0], sizes = [1, 32], strides = [1, 1]} : vector<11x32xf32> to vector<1x32xf32>
    %38 = vector.extract_strided_slice %29 {offsets = [8, 0], sizes = [1, 32], strides = [1, 1]} : vector<11x32xf32> to vector<1x32xf32>
    %39 = vector.extract_strided_slice %29 {offsets = [9, 0], sizes = [1, 32], strides = [1, 1]} : vector<11x32xf32> to vector<1x32xf32>
    %40 = vector.extract_strided_slice %29 {offsets = [10, 0], sizes = [1, 32], strides = [1, 1]} : vector<11x32xf32> to vector<1x32xf32>
    %41 = arith.addf %1, %3 : vector<8x32xf32>
    %cst = arith.constant dense<0.000000e+00> : vector<8x64xf32>
    %42 = tpu.matmul %41, %7, %cst {dimension_numbers = #tpu.dot_dimension_numbers<[1], [0], [0], [1], [0, 0, 1, 1], [], []>} : vector<8x32xf32>, vector<32x64xf32>, vector<8x64xf32> -> vector<8x64xf32>
    %43 = vector.broadcast %24 : vector<1x64xf32> to vector<8x64xf32>
    %44 = arith.addf %42, %43 : vector<8x64xf32>
    %45 = vector.extract_strided_slice %44 {offsets = [0, 0], sizes = [8, 32], strides = [1, 1]} : vector<8x64xf32> to vector<8x32xf32>
    %46 = vector.extract_strided_slice %44 {offsets = [0, 32], sizes = [8, 32], strides = [1, 1]} : vector<8x64xf32> to vector<8x32xf32>
    %cst_44 = arith.constant dense<0.000000e+00> : vector<8x32xf32>
    %47 = tpu.matmul %1, %11, %cst_44 {dimension_numbers = #tpu.dot_dimension_numbers<[1], [0], [0], [1], [0, 0, 1, 1], [], []>} : vector<8x32xf32>, vector<32x32xf32>, vector<8x32xf32> -> vector<8x32xf32>
    %48 = vector.broadcast %30 : vector<1x32xf32> to vector<8x32xf32>
    %49 = arith.addf %47, %48 : vector<8x32xf32>
    %50 = vector.extract_strided_slice %45 {offsets = [0, 0], sizes = [8, 8], strides = [1, 1]} : vector<8x32xf32> to vector<8x8xf32>
    %51 = vector.extract_strided_slice %46 {offsets = [0, 0], sizes = [8, 8], strides = [1, 1]} : vector<8x32xf32> to vector<8x8xf32>
    %cst_45 = arith.constant dense<0.000000e+00> : vector<8x8xf32>
    %52 = tpu.matmul %50, %51, %cst_45 {dimension_numbers = #tpu.dot_dimension_numbers<[1], [1], [0], [0], [0, 0, 1, 0], [], []>} : vector<8x8xf32>, vector<8x8xf32>, vector<8x8xf32> -> vector<8x8xf32>
    %53 = vector.extract_strided_slice %45 {offsets = [0, 8], sizes = [8, 8], strides = [1, 1]} : vector<8x32xf32> to vector<8x8xf32>
    %54 = vector.extract_strided_slice %46 {offsets = [0, 8], sizes = [8, 8], strides = [1, 1]} : vector<8x32xf32> to vector<8x8xf32>
    %cst_46 = arith.constant dense<0.000000e+00> : vector<8x8xf32>
    %55 = tpu.matmul %53, %54, %cst_46 {dimension_numbers = #tpu.dot_dimension_numbers<[1], [1], [0], [0], [0, 0, 1, 0], [], []>} : vector<8x8xf32>, vector<8x8xf32>, vector<8x8xf32> -> vector<8x8xf32>
    %56 = vector.extract_strided_slice %45 {offsets = [0, 16], sizes = [8, 8], strides = [1, 1]} : vector<8x32xf32> to vector<8x8xf32>
    %57 = vector.extract_strided_slice %46 {offsets = [0, 16], sizes = [8, 8], strides = [1, 1]} : vector<8x32xf32> to vector<8x8xf32>
    %cst_47 = arith.constant dense<0.000000e+00> : vector<8x8xf32>
    %58 = tpu.matmul %56, %57, %cst_47 {dimension_numbers = #tpu.dot_dimension_numbers<[1], [1], [0], [0], [0, 0, 1, 0], [], []>} : vector<8x8xf32>, vector<8x8xf32>, vector<8x8xf32> -> vector<8x8xf32>
    %59 = vector.extract_strided_slice %45 {offsets = [0, 24], sizes = [8, 8], strides = [1, 1]} : vector<8x32xf32> to vector<8x8xf32>
    %60 = vector.extract_strided_slice %46 {offsets = [0, 24], sizes = [8, 8], strides = [1, 1]} : vector<8x32xf32> to vector<8x8xf32>
    %cst_48 = arith.constant dense<0.000000e+00> : vector<8x8xf32>
    %61 = tpu.matmul %59, %60, %cst_48 {dimension_numbers = #tpu.dot_dimension_numbers<[1], [1], [0], [0], [0, 0, 1, 0], [], []>} : vector<8x8xf32>, vector<8x8xf32>, vector<8x8xf32> -> vector<8x8xf32>
    %62 = tpu.concatenate %52, %55, %58, %61 in 0 : vector<8x8xf32>, vector<8x8xf32>, vector<8x8xf32>, vector<8x8xf32> -> vector<32x8xf32>
    %cst_49 = arith.constant 0.353553385 : f32
    %63 = vector.broadcast %cst_49 : f32 to vector<32x8xf32>
    %64 = arith.mulf %62, %63 : vector<32x8xf32>
    %cst_50 = arith.constant dense<0xFF800000> : vector<32xf32>
    %65 = vector.multi_reduction <maximumf>, %64, %cst_50 [1] : vector<32x8xf32> to vector<32xf32>
    %66 = vector.shape_cast %65 : vector<32xf32> to vector<32x1xf32>
    %67 = vector.broadcast %66 : vector<32x1xf32> to vector<32x8xf32>
    %68 = arith.subf %64, %67 : vector<32x8xf32>
    %69 = math.exp %68 : vector<32x8xf32>
    %cst_51 = arith.constant dense<0.000000e+00> : vector<32xf32>
    %70 = vector.multi_reduction <add>, %69, %cst_51 [1] : vector<32x8xf32> to vector<32xf32>
    %71 = vector.shape_cast %70 : vector<32xf32> to vector<32x1xf32>
    %72 = tpu.reciprocal %71 : vector<32x1xf32> -> vector<32x1xf32>
    %73 = vector.broadcast %72 : vector<32x1xf32> to vector<32x8xf32>
    %74 = arith.mulf %69, %73 : vector<32x8xf32>
    %75 = vector.extract_strided_slice %74 {offsets = [0, 0], sizes = [8, 8], strides = [1, 1]} : vector<32x8xf32> to vector<8x8xf32>
    %76 = vector.extract_strided_slice %49 {offsets = [0, 0], sizes = [8, 8], strides = [1, 1]} : vector<8x32xf32> to vector<8x8xf32>
    %cst_52 = arith.constant dense<0.000000e+00> : vector<8x8xf32>
    %77 = tpu.matmul %75, %76, %cst_52 {dimension_numbers = #tpu.dot_dimension_numbers<[1], [0], [0], [1], [0, 0, 1, 1], [], []>} : vector<8x8xf32>, vector<8x8xf32>, vector<8x8xf32> -> vector<8x8xf32>
    %78 = vector.extract_strided_slice %74 {offsets = [8, 0], sizes = [8, 8], strides = [1, 1]} : vector<32x8xf32> to vector<8x8xf32>
    %79 = vector.extract_strided_slice %49 {offsets = [0, 8], sizes = [8, 8], strides = [1, 1]} : vector<8x32xf32> to vector<8x8xf32>
    %cst_53 = arith.constant dense<0.000000e+00> : vector<8x8xf32>
    %80 = tpu.matmul %78, %79, %cst_53 {dimension_numbers = #tpu.dot_dimension_numbers<[1], [0], [0], [1], [0, 0, 1, 1], [], []>} : vector<8x8xf32>, vector<8x8xf32>, vector<8x8xf32> -> vector<8x8xf32>
    %81 = vector.extract_strided_slice %74 {offsets = [16, 0], sizes = [8, 8], strides = [1, 1]} : vector<32x8xf32> to vector<8x8xf32>
    %82 = vector.extract_strided_slice %49 {offsets = [0, 16], sizes = [8, 8], strides = [1, 1]} : vector<8x32xf32> to vector<8x8xf32>
    %cst_54 = arith.constant dense<0.000000e+00> : vector<8x8xf32>
    %83 = tpu.matmul %81, %82, %cst_54 {dimension_numbers = #tpu.dot_dimension_numbers<[1], [0], [0], [1], [0, 0, 1, 1], [], []>} : vector<8x8xf32>, vector<8x8xf32>, vector<8x8xf32> -> vector<8x8xf32>
    %84 = vector.extract_strided_slice %74 {offsets = [24, 0], sizes = [8, 8], strides = [1, 1]} : vector<32x8xf32> to vector<8x8xf32>
    %85 = vector.extract_strided_slice %49 {offsets = [0, 24], sizes = [8, 8], strides = [1, 1]} : vector<8x32xf32> to vector<8x8xf32>
    %cst_55 = arith.constant dense<0.000000e+00> : vector<8x8xf32>
    %86 = tpu.matmul %84, %85, %cst_55 {dimension_numbers = #tpu.dot_dimension_numbers<[1], [0], [0], [1], [0, 0, 1, 1], [], []>} : vector<8x8xf32>, vector<8x8xf32>, vector<8x8xf32> -> vector<8x8xf32>
    %87 = tpu.concatenate %77, %80, %83, %86 in 1 : vector<8x8xf32>, vector<8x8xf32>, vector<8x8xf32>, vector<8x8xf32> -> vector<8x32xf32>
    %cst_56 = arith.constant dense<0.000000e+00> : vector<8x32xf32>
    %88 = tpu.matmul %87, %13, %cst_56 {dimension_numbers = #tpu.dot_dimension_numbers<[1], [0], [0], [1], [0, 0, 1, 1], [], []>} : vector<8x32xf32>, vector<32x32xf32>, vector<8x32xf32> -> vector<8x32xf32>
    %89 = vector.broadcast %31 : vector<1x32xf32> to vector<8x32xf32>
    %90 = arith.addf %88, %89 : vector<8x32xf32>
    %91 = arith.addf %1, %90 : vector<8x32xf32>
    %cst_57 = arith.constant dense<0.000000e+00> : vector<8xf32>
    %92 = vector.multi_reduction <add>, %91, %cst_57 [1] : vector<8x32xf32> to vector<8xf32>
    %93 = vector.shape_cast %92 : vector<8xf32> to vector<8x1xf32>
    %cst_58 = arith.constant 3.200000e+01 : f32
    %94 = vector.broadcast %cst_58 : f32 to vector<8x1xf32>
    %95 = arith.divf %93, %94 : vector<8x1xf32>
    %96 = vector.broadcast %95 : vector<8x1xf32> to vector<8x32xf32>
    %97 = arith.subf %91, %96 : vector<8x32xf32>
    %98 = arith.mulf %97, %97 : vector<8x32xf32>
    %cst_59 = arith.constant dense<0.000000e+00> : vector<8xf32>
    %99 = vector.multi_reduction <add>, %98, %cst_59 [1] : vector<8x32xf32> to vector<8xf32>
    %100 = vector.shape_cast %99 : vector<8xf32> to vector<8x1xf32>
    %cst_60 = arith.constant 3.200000e+01 : f32
    %101 = vector.broadcast %cst_60 : f32 to vector<8x1xf32>
    %102 = arith.divf %100, %101 : vector<8x1xf32>
    %103 = vector.broadcast %95 : vector<8x1xf32> to vector<8x32xf32>
    %104 = arith.subf %91, %103 : vector<8x32xf32>
    %cst_61 = arith.constant 9.99999974E-6 : f32
    %105 = vector.broadcast %cst_61 : f32 to vector<8x1xf32>
    %106 = arith.addf %102, %105 : vector<8x1xf32>
    %107 = math.rsqrt %106 : vector<8x1xf32>
    %108 = vector.broadcast %107 : vector<8x1xf32> to vector<8x32xf32>
    %109 = arith.mulf %104, %108 : vector<8x32xf32>
    %110 = vector.broadcast %35 : vector<1x32xf32> to vector<8x32xf32>
    %111 = arith.mulf %109, %110 : vector<8x32xf32>
    %112 = vector.broadcast %36 : vector<1x32xf32> to vector<8x32xf32>
    %113 = arith.addf %111, %112 : vector<8x32xf32>
    %114 = arith.addf %113, %3 : vector<8x32xf32>
    %cst_62 = arith.constant dense<0.000000e+00> : vector<8x32xf32>
    %115 = tpu.matmul %114, %15, %cst_62 {dimension_numbers = #tpu.dot_dimension_numbers<[1], [0], [0], [1], [0, 0, 1, 1], [], []>} : vector<8x32xf32>, vector<32x32xf32>, vector<8x32xf32> -> vector<8x32xf32>
    %116 = vector.broadcast %32 : vector<1x32xf32> to vector<8x32xf32>
    %117 = arith.addf %115, %116 : vector<8x32xf32>
    %cst_63 = arith.constant dense<0.000000e+00> : vector<16x64xf32>
    %118 = tpu.matmul %5, %9, %cst_63 {dimension_numbers = #tpu.dot_dimension_numbers<[1], [0], [0], [1], [0, 0, 1, 1], [], []>} : vector<16x32xf32>, vector<32x64xf32>, vector<16x64xf32> -> vector<16x64xf32>
    %119 = vector.broadcast %25 : vector<1x64xf32> to vector<16x64xf32>
    %120 = arith.addf %118, %119 : vector<16x64xf32>
    %121 = vector.extract_strided_slice %120 {offsets = [0, 0], sizes = [16, 32], strides = [1, 1]} : vector<16x64xf32> to vector<16x32xf32>
    %122 = vector.extract_strided_slice %120 {offsets = [0, 32], sizes = [16, 32], strides = [1, 1]} : vector<16x64xf32> to vector<16x32xf32>
    %123 = vector.extract_strided_slice %117 {offsets = [0, 0], sizes = [8, 8], strides = [1, 1]} : vector<8x32xf32> to vector<8x8xf32>
    %124 = vector.extract_strided_slice %121 {offsets = [0, 0], sizes = [16, 8], strides = [1, 1]} : vector<16x32xf32> to vector<16x8xf32>
    %cst_64 = arith.constant dense<0.000000e+00> : vector<8x16xf32>
    %125 = tpu.matmul %123, %124, %cst_64 {dimension_numbers = #tpu.dot_dimension_numbers<[1], [1], [0], [0], [0, 0, 1, 0], [], []>} : vector<8x8xf32>, vector<16x8xf32>, vector<8x16xf32> -> vector<8x16xf32>
    %126 = vector.extract_strided_slice %117 {offsets = [0, 8], sizes = [8, 8], strides = [1, 1]} : vector<8x32xf32> to vector<8x8xf32>
    %127 = vector.extract_strided_slice %121 {offsets = [0, 8], sizes = [16, 8], strides = [1, 1]} : vector<16x32xf32> to vector<16x8xf32>
    %cst_65 = arith.constant dense<0.000000e+00> : vector<8x16xf32>
    %128 = tpu.matmul %126, %127, %cst_65 {dimension_numbers = #tpu.dot_dimension_numbers<[1], [1], [0], [0], [0, 0, 1, 0], [], []>} : vector<8x8xf32>, vector<16x8xf32>, vector<8x16xf32> -> vector<8x16xf32>
    %129 = vector.extract_strided_slice %117 {offsets = [0, 16], sizes = [8, 8], strides = [1, 1]} : vector<8x32xf32> to vector<8x8xf32>
    %130 = vector.extract_strided_slice %121 {offsets = [0, 16], sizes = [16, 8], strides = [1, 1]} : vector<16x32xf32> to vector<16x8xf32>
    %cst_66 = arith.constant dense<0.000000e+00> : vector<8x16xf32>
    %131 = tpu.matmul %129, %130, %cst_66 {dimension_numbers = #tpu.dot_dimension_numbers<[1], [1], [0], [0], [0, 0, 1, 0], [], []>} : vector<8x8xf32>, vector<16x8xf32>, vector<8x16xf32> -> vector<8x16xf32>
    %132 = vector.extract_strided_slice %117 {offsets = [0, 24], sizes = [8, 8], strides = [1, 1]} : vector<8x32xf32> to vector<8x8xf32>
    %133 = vector.extract_strided_slice %121 {offsets = [0, 24], sizes = [16, 8], strides = [1, 1]} : vector<16x32xf32> to vector<16x8xf32>
    %cst_67 = arith.constant dense<0.000000e+00> : vector<8x16xf32>
    %134 = tpu.matmul %132, %133, %cst_67 {dimension_numbers = #tpu.dot_dimension_numbers<[1], [1], [0], [0], [0, 0, 1, 0], [], []>} : vector<8x8xf32>, vector<16x8xf32>, vector<8x16xf32> -> vector<8x16xf32>
    %135 = tpu.concatenate %125, %128, %131, %134 in 0 : vector<8x16xf32>, vector<8x16xf32>, vector<8x16xf32>, vector<8x16xf32> -> vector<32x16xf32>
    %cst_68 = arith.constant 0.353553385 : f32
    %136 = vector.broadcast %cst_68 : f32 to vector<32x16xf32>
    %137 = arith.mulf %135, %136 : vector<32x16xf32>
    %cst_69 = arith.constant dense<0xFF800000> : vector<32xf32>
    %138 = vector.multi_reduction <maximumf>, %137, %cst_69 [1] : vector<32x16xf32> to vector<32xf32>
    %139 = vector.shape_cast %138 : vector<32xf32> to vector<32x1xf32>
    %140 = vector.broadcast %139 : vector<32x1xf32> to vector<32x16xf32>
    %141 = arith.subf %137, %140 : vector<32x16xf32>
    %142 = math.exp %141 : vector<32x16xf32>
    %cst_70 = arith.constant dense<0.000000e+00> : vector<32xf32>
    %143 = vector.multi_reduction <add>, %142, %cst_70 [1] : vector<32x16xf32> to vector<32xf32>
    %144 = vector.shape_cast %143 : vector<32xf32> to vector<32x1xf32>
    %145 = tpu.reciprocal %144 : vector<32x1xf32> -> vector<32x1xf32>
    %146 = vector.broadcast %145 : vector<32x1xf32> to vector<32x16xf32>
    %147 = arith.mulf %142, %146 : vector<32x16xf32>
    %148 = vector.extract_strided_slice %147 {offsets = [0, 0], sizes = [8, 16], strides = [1, 1]} : vector<32x16xf32> to vector<8x16xf32>
    %149 = vector.extract_strided_slice %122 {offsets = [0, 0], sizes = [16, 8], strides = [1, 1]} : vector<16x32xf32> to vector<16x8xf32>
    %cst_71 = arith.constant dense<0.000000e+00> : vector<8x8xf32>
    %150 = tpu.matmul %148, %149, %cst_71 {dimension_numbers = #tpu.dot_dimension_numbers<[1], [0], [0], [1], [0, 0, 1, 1], [], []>} : vector<8x16xf32>, vector<16x8xf32>, vector<8x8xf32> -> vector<8x8xf32>
    %151 = vector.extract_strided_slice %147 {offsets = [8, 0], sizes = [8, 16], strides = [1, 1]} : vector<32x16xf32> to vector<8x16xf32>
    %152 = vector.extract_strided_slice %122 {offsets = [0, 8], sizes = [16, 8], strides = [1, 1]} : vector<16x32xf32> to vector<16x8xf32>
    %cst_72 = arith.constant dense<0.000000e+00> : vector<8x8xf32>
    %153 = tpu.matmul %151, %152, %cst_72 {dimension_numbers = #tpu.dot_dimension_numbers<[1], [0], [0], [1], [0, 0, 1, 1], [], []>} : vector<8x16xf32>, vector<16x8xf32>, vector<8x8xf32> -> vector<8x8xf32>
    %154 = vector.extract_strided_slice %147 {offsets = [16, 0], sizes = [8, 16], strides = [1, 1]} : vector<32x16xf32> to vector<8x16xf32>
    %155 = vector.extract_strided_slice %122 {offsets = [0, 16], sizes = [16, 8], strides = [1, 1]} : vector<16x32xf32> to vector<16x8xf32>
    %cst_73 = arith.constant dense<0.000000e+00> : vector<8x8xf32>
    %156 = tpu.matmul %154, %155, %cst_73 {dimension_numbers = #tpu.dot_dimension_numbers<[1], [0], [0], [1], [0, 0, 1, 1], [], []>} : vector<8x16xf32>, vector<16x8xf32>, vector<8x8xf32> -> vector<8x8xf32>
    %157 = vector.extract_strided_slice %147 {offsets = [24, 0], sizes = [8, 16], strides = [1, 1]} : vector<32x16xf32> to vector<8x16xf32>
    %158 = vector.extract_strided_slice %122 {offsets = [0, 24], sizes = [16, 8], strides = [1, 1]} : vector<16x32xf32> to vector<16x8xf32>
    %cst_74 = arith.constant dense<0.000000e+00> : vector<8x8xf32>
    %159 = tpu.matmul %157, %158, %cst_74 {dimension_numbers = #tpu.dot_dimension_numbers<[1], [0], [0], [1], [0, 0, 1, 1], [], []>} : vector<8x16xf32>, vector<16x8xf32>, vector<8x8xf32> -> vector<8x8xf32>
    %160 = tpu.concatenate %150, %153, %156, %159 in 1 : vector<8x8xf32>, vector<8x8xf32>, vector<8x8xf32>, vector<8x8xf32> -> vector<8x32xf32>
    %cst_75 = arith.constant dense<0.000000e+00> : vector<8x32xf32>
    %161 = tpu.matmul %160, %17, %cst_75 {dimension_numbers = #tpu.dot_dimension_numbers<[1], [0], [0], [1], [0, 0, 1, 1], [], []>} : vector<8x32xf32>, vector<32x32xf32>, vector<8x32xf32> -> vector<8x32xf32>
    %162 = vector.broadcast %33 : vector<1x32xf32> to vector<8x32xf32>
    %163 = arith.addf %161, %162 : vector<8x32xf32>
    %164 = arith.addf %113, %163 : vector<8x32xf32>
    %cst_76 = arith.constant dense<0.000000e+00> : vector<8xf32>
    %165 = vector.multi_reduction <add>, %164, %cst_76 [1] : vector<8x32xf32> to vector<8xf32>
    %166 = vector.shape_cast %165 : vector<8xf32> to vector<8x1xf32>
    %cst_77 = arith.constant 3.200000e+01 : f32
    %167 = vector.broadcast %cst_77 : f32 to vector<8x1xf32>
    %168 = arith.divf %166, %167 : vector<8x1xf32>
    %169 = vector.broadcast %168 : vector<8x1xf32> to vector<8x32xf32>
    %170 = arith.subf %164, %169 : vector<8x32xf32>
    %171 = arith.mulf %170, %170 : vector<8x32xf32>
    %cst_78 = arith.constant dense<0.000000e+00> : vector<8xf32>
    %172 = vector.multi_reduction <add>, %171, %cst_78 [1] : vector<8x32xf32> to vector<8xf32>
    %173 = vector.shape_cast %172 : vector<8xf32> to vector<8x1xf32>
    %cst_79 = arith.constant 3.200000e+01 : f32
    %174 = vector.broadcast %cst_79 : f32 to vector<8x1xf32>
    %175 = arith.divf %173, %174 : vector<8x1xf32>
    %176 = vector.broadcast %168 : vector<8x1xf32> to vector<8x32xf32>
    %177 = arith.subf %164, %176 : vector<8x32xf32>
    %cst_80 = arith.constant 9.99999974E-6 : f32
    %178 = vector.broadcast %cst_80 : f32 to vector<8x1xf32>
    %179 = arith.addf %175, %178 : vector<8x1xf32>
    %180 = math.rsqrt %179 : vector<8x1xf32>
    %181 = vector.broadcast %180 : vector<8x1xf32> to vector<8x32xf32>
    %182 = arith.mulf %177, %181 : vector<8x32xf32>
    %183 = vector.broadcast %37 : vector<1x32xf32> to vector<8x32xf32>
    %184 = arith.mulf %182, %183 : vector<8x32xf32>
    %185 = vector.broadcast %38 : vector<1x32xf32> to vector<8x32xf32>
    %186 = arith.addf %184, %185 : vector<8x32xf32>
    %cst_81 = arith.constant dense<0.000000e+00> : vector<8x64xf32>
    %187 = tpu.matmul %186, %19, %cst_81 {dimension_numbers = #tpu.dot_dimension_numbers<[1], [0], [0], [1], [0, 0, 1, 1], [], []>} : vector<8x32xf32>, vector<32x64xf32>, vector<8x64xf32> -> vector<8x64xf32>
    %188 = vector.broadcast %27 : vector<1x64xf32> to vector<8x64xf32>
    %189 = arith.addf %187, %188 : vector<8x64xf32>
    %cst_82 = arith.constant 0.000000e+00 : f32
    %190 = vector.broadcast %cst_82 : f32 to vector<8x64xf32>
    %191 = arith.maximumf %189, %190 : vector<8x64xf32>
    %cst_83 = arith.constant dense<0.000000e+00> : vector<8x32xf32>
    %192 = tpu.matmul %191, %21, %cst_83 {dimension_numbers = #tpu.dot_dimension_numbers<[1], [0], [0], [1], [0, 0, 1, 1], [], []>} : vector<8x64xf32>, vector<64x32xf32>, vector<8x32xf32> -> vector<8x32xf32>
    %193 = vector.broadcast %34 : vector<1x32xf32> to vector<8x32xf32>
    %194 = arith.addf %192, %193 : vector<8x32xf32>
    %195 = arith.addf %186, %194 : vector<8x32xf32>
    %cst_84 = arith.constant dense<0.000000e+00> : vector<8xf32>
    %196 = vector.multi_reduction <add>, %195, %cst_84 [1] : vector<8x32xf32> to vector<8xf32>
    %197 = vector.shape_cast %196 : vector<8xf32> to vector<8x1xf32>
    %cst_85 = arith.constant 3.200000e+01 : f32
    %198 = vector.broadcast %cst_85 : f32 to vector<8x1xf32>
    %199 = arith.divf %197, %198 : vector<8x1xf32>
    %200 = vector.broadcast %199 : vector<8x1xf32> to vector<8x32xf32>
    %201 = arith.subf %195, %200 : vector<8x32xf32>
    %202 = arith.mulf %201, %201 : vector<8x32xf32>
    %cst_86 = arith.constant dense<0.000000e+00> : vector<8xf32>
    %203 = vector.multi_reduction <add>, %202, %cst_86 [1] : vector<8x32xf32> to vector<8xf32>
    %204 = vector.shape_cast %203 : vector<8xf32> to vector<8x1xf32>
    %cst_87 = arith.constant 3.200000e+01 : f32
    %205 = vector.broadcast %cst_87 : f32 to vector<8x1xf32>
    %206 = arith.divf %204, %205 : vector<8x1xf32>
    %207 = vector.broadcast %199 : vector<8x1xf32> to vector<8x32xf32>
    %208 = arith.subf %195, %207 : vector<8x32xf32>
    %cst_88 = arith.constant 9.99999974E-6 : f32
    %209 = vector.broadcast %cst_88 : f32 to vector<8x1xf32>
    %210 = arith.addf %206, %209 : vector<8x1xf32>
    %211 = math.rsqrt %210 : vector<8x1xf32>
    %212 = vector.broadcast %211 : vector<8x1xf32> to vector<8x32xf32>
    %213 = arith.mulf %208, %212 : vector<8x32xf32>
    %214 = vector.broadcast %39 : vector<1x32xf32> to vector<8x32xf32>
    %215 = arith.mulf %213, %214 : vector<8x32xf32>
    %216 = vector.broadcast %40 : vector<1x32xf32> to vector<8x32xf32>
    %217 = arith.addf %215, %216 : vector<8x32xf32>
    %c0_89 = arith.constant 0 : index
    %c0_90 = arith.constant 0 : index
    %c0_91 = arith.constant 0 : index
    %c0_92 = arith.constant 0 : index
    %218 = vector.load %arg11[%c0_89, %c0_90, %c0_91, %c0_92] : memref<2x1x8x32xf32, #tpu.memory_space<vmem>>, vector<1x1x8x32xf32>
    %219 = vector.shape_cast %218 : vector<1x1x8x32xf32> to vector<8x32xf32>
    %220 = vector.shape_cast %217 : vector<8x32xf32> to vector<1x1x8x32xf32>
    tpu.vector_store %arg11[%c0_89, %c0_90, %c0_91, %c0_92], %220 {strides = array<i32>} : memref<2x1x8x32xf32, #tpu.memory_space<vmem>>, vector<1x1x8x32xf32>,
    %c1_93 = arith.constant 1 : index
    %c0_94 = arith.constant 0 : index
    %c0_95 = arith.constant 0 : index
    %c0_96 = arith.constant 0 : index
    %221 = vector.load %arg4[%c1_93, %c0_94, %c0_95, %c0_96] : memref<2x2x32x64xf32, #tpu.memory_space<vmem>>, vector<1x1x32x64xf32>
    %222 = vector.shape_cast %221 : vector<1x1x32x64xf32> to vector<32x64xf32>
    %c1_97 = arith.constant 1 : index
    %c1_98 = arith.constant 1 : index
    %c0_99 = arith.constant 0 : index
    %c0_100 = arith.constant 0 : index
    %223 = vector.load %arg4[%c1_97, %c1_98, %c0_99, %c0_100] : memref<2x2x32x64xf32, #tpu.memory_space<vmem>>, vector<1x1x32x64xf32>
    %224 = vector.shape_cast %223 : vector<1x1x32x64xf32> to vector<32x64xf32>
    %c1_101 = arith.constant 1 : index
    %c0_102 = arith.constant 0 : index
    %c0_103 = arith.constant 0 : index
    %c0_104 = arith.constant 0 : index
    %225 = vector.load %arg5[%c1_101, %c0_102, %c0_103, %c0_104] : memref<2x4x32x32xf32, #tpu.memory_space<vmem>>, vector<1x1x32x32xf32>
    %226 = vector.shape_cast %225 : vector<1x1x32x32xf32> to vector<32x32xf32>
    %c1_105 = arith.constant 1 : index
    %c1_106 = arith.constant 1 : index
    %c0_107 = arith.constant 0 : index
    %c0_108 = arith.constant 0 : index
    %227 = vector.load %arg5[%c1_105, %c1_106, %c0_107, %c0_108] : memref<2x4x32x32xf32, #tpu.memory_space<vmem>>, vector<1x1x32x32xf32>
    %228 = vector.shape_cast %227 : vector<1x1x32x32xf32> to vector<32x32xf32>
    %c1_109 = arith.constant 1 : index
    %c2_110 = arith.constant 2 : index
    %c0_111 = arith.constant 0 : index
    %c0_112 = arith.constant 0 : index
    %229 = vector.load %arg5[%c1_109, %c2_110, %c0_111, %c0_112] : memref<2x4x32x32xf32, #tpu.memory_space<vmem>>, vector<1x1x32x32xf32>
    %230 = vector.shape_cast %229 : vector<1x1x32x32xf32> to vector<32x32xf32>
    %c1_113 = arith.constant 1 : index
    %c3_114 = arith.constant 3 : index
    %c0_115 = arith.constant 0 : index
    %c0_116 = arith.constant 0 : index
    %231 = vector.load %arg5[%c1_113, %c3_114, %c0_115, %c0_116] : memref<2x4x32x32xf32, #tpu.memory_space<vmem>>, vector<1x1x32x32xf32>
    %232 = vector.shape_cast %231 : vector<1x1x32x32xf32> to vector<32x32xf32>
    %c1_117 = arith.constant 1 : index
    %c0_118 = arith.constant 0 : index
    %c0_119 = arith.constant 0 : index
    %233 = vector.load %arg6[%c1_117, %c0_118, %c0_119] : memref<2x32x64xf32, #tpu.memory_space<vmem>>, vector<1x32x64xf32>
    %234 = vector.shape_cast %233 : vector<1x32x64xf32> to vector<32x64xf32>
    %c1_120 = arith.constant 1 : index
    %c0_121 = arith.constant 0 : index
    %c0_122 = arith.constant 0 : index
    %235 = vector.load %arg7[%c1_120, %c0_121, %c0_122] : memref<2x64x32xf32, #tpu.memory_space<vmem>>, vector<1x64x32xf32>
    %236 = vector.shape_cast %235 : vector<1x64x32xf32> to vector<64x32xf32>
    %c1_123 = arith.constant 1 : index
    %c0_124 = arith.constant 0 : index
    %c0_125 = arith.constant 0 : index
    %237 = vector.load %arg8[%c1_123, %c0_124, %c0_125] : memref<2x2x64xf32, #tpu.memory_space<vmem>>, vector<1x2x64xf32>
    %238 = vector.shape_cast %237 : vector<1x2x64xf32> to vector<2x64xf32>
    %239 = vector.extract_strided_slice %238 {offsets = [0, 0], sizes = [1, 64], strides = [1, 1]} : vector<2x64xf32> to vector<1x64xf32>
    %240 = vector.extract_strided_slice %238 {offsets = [1, 0], sizes = [1, 64], strides = [1, 1]} : vector<2x64xf32> to vector<1x64xf32>
    %c1_126 = arith.constant 1 : index
    %c0_127 = arith.constant 0 : index
    %c0_128 = arith.constant 0 : index
    %241 = vector.load %arg9[%c1_126, %c0_127, %c0_128] : memref<2x1x64xf32, #tpu.memory_space<vmem>>, vector<1x1x64xf32>
    %242 = vector.shape_cast %241 : vector<1x1x64xf32> to vector<1x64xf32>
    %c1_129 = arith.constant 1 : index
    %c0_130 = arith.constant 0 : index
    %c0_131 = arith.constant 0 : index
    %243 = vector.load %arg10[%c1_129, %c0_130, %c0_131] : memref<2x11x32xf32, #tpu.memory_space<vmem>>, vector<1x11x32xf32>
    %244 = vector.shape_cast %243 : vector<1x11x32xf32> to vector<11x32xf32>
    %245 = vector.extract_strided_slice %244 {offsets = [0, 0], sizes = [1, 32], strides = [1, 1]} : vector<11x32xf32> to vector<1x32xf32>
    %246 = vector.extract_strided_slice %244 {offsets = [1, 0], sizes = [1, 32], strides = [1, 1]} : vector<11x32xf32> to vector<1x32xf32>
    %247 = vector.extract_strided_slice %244 {offsets = [2, 0], sizes = [1, 32], strides = [1, 1]} : vector<11x32xf32> to vector<1x32xf32>
    %248 = vector.extract_strided_slice %244 {offsets = [3, 0], sizes = [1, 32], strides = [1, 1]} : vector<11x32xf32> to vector<1x32xf32>
    %249 = vector.extract_strided_slice %244 {offsets = [4, 0], sizes = [1, 32], strides = [1, 1]} : vector<11x32xf32> to vector<1x32xf32>
    %250 = vector.extract_strided_slice %244 {offsets = [5, 0], sizes = [1, 32], strides = [1, 1]} : vector<11x32xf32> to vector<1x32xf32>
    %251 = vector.extract_strided_slice %244 {offsets = [6, 0], sizes = [1, 32], strides = [1, 1]} : vector<11x32xf32> to vector<1x32xf32>
    %252 = vector.extract_strided_slice %244 {offsets = [7, 0], sizes = [1, 32], strides = [1, 1]} : vector<11x32xf32> to vector<1x32xf32>
    %253 = vector.extract_strided_slice %244 {offsets = [8, 0], sizes = [1, 32], strides = [1, 1]} : vector<11x32xf32> to vector<1x32xf32>
    %254 = vector.extract_strided_slice %244 {offsets = [9, 0], sizes = [1, 32], strides = [1, 1]} : vector<11x32xf32> to vector<1x32xf32>
    %255 = vector.extract_strided_slice %244 {offsets = [10, 0], sizes = [1, 32], strides = [1, 1]} : vector<11x32xf32> to vector<1x32xf32>
    %256 = arith.addf %217, %3 : vector<8x32xf32>
    %cst_132 = arith.constant dense<0.000000e+00> : vector<8x64xf32>
    %257 = tpu.matmul %256, %222, %cst_132 {dimension_numbers = #tpu.dot_dimension_numbers<[1], [0], [0], [1], [0, 0, 1, 1], [], []>} : vector<8x32xf32>, vector<32x64xf32>, vector<8x64xf32> -> vector<8x64xf32>
    %258 = vector.broadcast %239 : vector<1x64xf32> to vector<8x64xf32>
    %259 = arith.addf %257, %258 : vector<8x64xf32>
    %260 = vector.extract_strided_slice %259 {offsets = [0, 0], sizes = [8, 32], strides = [1, 1]} : vector<8x64xf32> to vector<8x32xf32>
    %261 = vector.extract_strided_slice %259 {offsets = [0, 32], sizes = [8, 32], strides = [1, 1]} : vector<8x64xf32> to vector<8x32xf32>
    %cst_133 = arith.constant dense<0.000000e+00> : vector<8x32xf32>
    %262 = tpu.matmul %217, %226, %cst_133 {dimension_numbers = #tpu.dot_dimension_numbers<[1], [0], [0], [1], [0, 0, 1, 1], [], []>} : vector<8x32xf32>, vector<32x32xf32>, vector<8x32xf32> -> vector<8x32xf32>
    %263 = vector.broadcast %245 : vector<1x32xf32> to vector<8x32xf32>
    %264 = arith.addf %262, %263 : vector<8x32xf32>
    %265 = vector.extract_strided_slice %260 {offsets = [0, 0], sizes = [8, 8], strides = [1, 1]} : vector<8x32xf32> to vector<8x8xf32>
    %266 = vector.extract_strided_slice %261 {offsets = [0, 0], sizes = [8, 8], strides = [1, 1]} : vector<8x32xf32> to vector<8x8xf32>
    %cst_134 = arith.constant dense<0.000000e+00> : vector<8x8xf32>
    %267 = tpu.matmul %265, %266, %cst_134 {dimension_numbers = #tpu.dot_dimension_numbers<[1], [1], [0], [0], [0, 0, 1, 0], [], []>} : vector<8x8xf32>, vector<8x8xf32>, vector<8x8xf32> -> vector<8x8xf32>
    %268 = vector.extract_strided_slice %260 {offsets = [0, 8], sizes = [8, 8], strides = [1, 1]} : vector<8x32xf32> to vector<8x8xf32>
    %269 = vector.extract_strided_slice %261 {offsets = [0, 8], sizes = [8, 8], strides = [1, 1]} : vector<8x32xf32> to vector<8x8xf32>
    %cst_135 = arith.constant dense<0.000000e+00> : vector<8x8xf32>
    %270 = tpu.matmul %268, %269, %cst_135 {dimension_numbers = #tpu.dot_dimension_numbers<[1], [1], [0], [0], [0, 0, 1, 0], [], []>} : vector<8x8xf32>, vector<8x8xf32>, vector<8x8xf32> -> vector<8x8xf32>
    %271 = vector.extract_strided_slice %260 {offsets = [0, 16], sizes = [8, 8], strides = [1, 1]} : vector<8x32xf32> to vector<8x8xf32>
    %272 = vector.extract_strided_slice %261 {offsets = [0, 16], sizes = [8, 8], strides = [1, 1]} : vector<8x32xf32> to vector<8x8xf32>
    %cst_136 = arith.constant dense<0.000000e+00> : vector<8x8xf32>
    %273 = tpu.matmul %271, %272, %cst_136 {dimension_numbers = #tpu.dot_dimension_numbers<[1], [1], [0], [0], [0, 0, 1, 0], [], []>} : vector<8x8xf32>, vector<8x8xf32>, vector<8x8xf32> -> vector<8x8xf32>
    %274 = vector.extract_strided_slice %260 {offsets = [0, 24], sizes = [8, 8], strides = [1, 1]} : vector<8x32xf32> to vector<8x8xf32>
    %275 = vector.extract_strided_slice %261 {offsets = [0, 24], sizes = [8, 8], strides = [1, 1]} : vector<8x32xf32> to vector<8x8xf32>
    %cst_137 = arith.constant dense<0.000000e+00> : vector<8x8xf32>
    %276 = tpu.matmul %274, %275, %cst_137 {dimension_numbers = #tpu.dot_dimension_numbers<[1], [1], [0], [0], [0, 0, 1, 0], [], []>} : vector<8x8xf32>, vector<8x8xf32>, vector<8x8xf32> -> vector<8x8xf32>
    %277 = tpu.concatenate %267, %270, %273, %276 in 0 : vector<8x8xf32>, vector<8x8xf32>, vector<8x8xf32>, vector<8x8xf32> -> vector<32x8xf32>
    %cst_138 = arith.constant 0.353553385 : f32
    %278 = vector.broadcast %cst_138 : f32 to vector<32x8xf32>
    %279 = arith.mulf %277, %278 : vector<32x8xf32>
    %cst_139 = arith.constant dense<0xFF800000> : vector<32xf32>
    %280 = vector.multi_reduction <maximumf>, %279, %cst_139 [1] : vector<32x8xf32> to vector<32xf32>
    %281 = vector.shape_cast %280 : vector<32xf32> to vector<32x1xf32>
    %282 = vector.broadcast %281 : vector<32x1xf32> to vector<32x8xf32>
    %283 = arith.subf %279, %282 : vector<32x8xf32>
    %284 = math.exp %283 : vector<32x8xf32>
    %cst_140 = arith.constant dense<0.000000e+00> : vector<32xf32>
    %285 = vector.multi_reduction <add>, %284, %cst_140 [1] : vector<32x8xf32> to vector<32xf32>
    %286 = vector.shape_cast %285 : vector<32xf32> to vector<32x1xf32>
    %287 = tpu.reciprocal %286 : vector<32x1xf32> -> vector<32x1xf32>
    %288 = vector.broadcast %287 : vector<32x1xf32> to vector<32x8xf32>
    %289 = arith.mulf %284, %288 : vector<32x8xf32>
    %290 = vector.extract_strided_slice %289 {offsets = [0, 0], sizes = [8, 8], strides = [1, 1]} : vector<32x8xf32> to vector<8x8xf32>
    %291 = vector.extract_strided_slice %264 {offsets = [0, 0], sizes = [8, 8], strides = [1, 1]} : vector<8x32xf32> to vector<8x8xf32>
    %cst_141 = arith.constant dense<0.000000e+00> : vector<8x8xf32>
    %292 = tpu.matmul %290, %291, %cst_141 {dimension_numbers = #tpu.dot_dimension_numbers<[1], [0], [0], [1], [0, 0, 1, 1], [], []>} : vector<8x8xf32>, vector<8x8xf32>, vector<8x8xf32> -> vector<8x8xf32>
    %293 = vector.extract_strided_slice %289 {offsets = [8, 0], sizes = [8, 8], strides = [1, 1]} : vector<32x8xf32> to vector<8x8xf32>
    %294 = vector.extract_strided_slice %264 {offsets = [0, 8], sizes = [8, 8], strides = [1, 1]} : vector<8x32xf32> to vector<8x8xf32>
    %cst_142 = arith.constant dense<0.000000e+00> : vector<8x8xf32>
    %295 = tpu.matmul %293, %294, %cst_142 {dimension_numbers = #tpu.dot_dimension_numbers<[1], [0], [0], [1], [0, 0, 1, 1], [], []>} : vector<8x8xf32>, vector<8x8xf32>, vector<8x8xf32> -> vector<8x8xf32>
    %296 = vector.extract_strided_slice %289 {offsets = [16, 0], sizes = [8, 8], strides = [1, 1]} : vector<32x8xf32> to vector<8x8xf32>
    %297 = vector.extract_strided_slice %264 {offsets = [0, 16], sizes = [8, 8], strides = [1, 1]} : vector<8x32xf32> to vector<8x8xf32>
    %cst_143 = arith.constant dense<0.000000e+00> : vector<8x8xf32>
    %298 = tpu.matmul %296, %297, %cst_143 {dimension_numbers = #tpu.dot_dimension_numbers<[1], [0], [0], [1], [0, 0, 1, 1], [], []>} : vector<8x8xf32>, vector<8x8xf32>, vector<8x8xf32> -> vector<8x8xf32>
    %299 = vector.extract_strided_slice %289 {offsets = [24, 0], sizes = [8, 8], strides = [1, 1]} : vector<32x8xf32> to vector<8x8xf32>
    %300 = vector.extract_strided_slice %264 {offsets = [0, 24], sizes = [8, 8], strides = [1, 1]} : vector<8x32xf32> to vector<8x8xf32>
    %cst_144 = arith.constant dense<0.000000e+00> : vector<8x8xf32>
    %301 = tpu.matmul %299, %300, %cst_144 {dimension_numbers = #tpu.dot_dimension_numbers<[1], [0], [0], [1], [0, 0, 1, 1], [], []>} : vector<8x8xf32>, vector<8x8xf32>, vector<8x8xf32> -> vector<8x8xf32>
    %302 = tpu.concatenate %292, %295, %298, %301 in 1 : vector<8x8xf32>, vector<8x8xf32>, vector<8x8xf32>, vector<8x8xf32> -> vector<8x32xf32>
    %cst_145 = arith.constant dense<0.000000e+00> : vector<8x32xf32>
    %303 = tpu.matmul %302, %228, %cst_145 {dimension_numbers = #tpu.dot_dimension_numbers<[1], [0], [0], [1], [0, 0, 1, 1], [], []>} : vector<8x32xf32>, vector<32x32xf32>, vector<8x32xf32> -> vector<8x32xf32>
    %304 = vector.broadcast %246 : vector<1x32xf32> to vector<8x32xf32>
    %305 = arith.addf %303, %304 : vector<8x32xf32>
    %306 = arith.addf %217, %305 : vector<8x32xf32>
    %cst_146 = arith.constant dense<0.000000e+00> : vector<8xf32>
    %307 = vector.multi_reduction <add>, %306, %cst_146 [1] : vector<8x32xf32> to vector<8xf32>
    %308 = vector.shape_cast %307 : vector<8xf32> to vector<8x1xf32>
    %cst_147 = arith.constant 3.200000e+01 : f32
    %309 = vector.broadcast %cst_147 : f32 to vector<8x1xf32>
    %310 = arith.divf %308, %309 : vector<8x1xf32>
    %311 = vector.broadcast %310 : vector<8x1xf32> to vector<8x32xf32>
    %312 = arith.subf %306, %311 : vector<8x32xf32>
    %313 = arith.mulf %312, %312 : vector<8x32xf32>
    %cst_148 = arith.constant dense<0.000000e+00> : vector<8xf32>
    %314 = vector.multi_reduction <add>, %313, %cst_148 [1] : vector<8x32xf32> to vector<8xf32>
    %315 = vector.shape_cast %314 : vector<8xf32> to vector<8x1xf32>
    %cst_149 = arith.constant 3.200000e+01 : f32
    %316 = vector.broadcast %cst_149 : f32 to vector<8x1xf32>
    %317 = arith.divf %315, %316 : vector<8x1xf32>
    %318 = vector.broadcast %310 : vector<8x1xf32> to vector<8x32xf32>
    %319 = arith.subf %306, %318 : vector<8x32xf32>
    %cst_150 = arith.constant 9.99999974E-6 : f32
    %320 = vector.broadcast %cst_150 : f32 to vector<8x1xf32>
    %321 = arith.addf %317, %320 : vector<8x1xf32>
    %322 = math.rsqrt %321 : vector<8x1xf32>
    %323 = vector.broadcast %322 : vector<8x1xf32> to vector<8x32xf32>
    %324 = arith.mulf %319, %323 : vector<8x32xf32>
    %325 = vector.broadcast %250 : vector<1x32xf32> to vector<8x32xf32>
    %326 = arith.mulf %324, %325 : vector<8x32xf32>
    %327 = vector.broadcast %251 : vector<1x32xf32> to vector<8x32xf32>
    %328 = arith.addf %326, %327 : vector<8x32xf32>
    %329 = arith.addf %328, %3 : vector<8x32xf32>
    %cst_151 = arith.constant dense<0.000000e+00> : vector<8x32xf32>
    %330 = tpu.matmul %329, %230, %cst_151 {dimension_numbers = #tpu.dot_dimension_numbers<[1], [0], [0], [1], [0, 0, 1, 1], [], []>} : vector<8x32xf32>, vector<32x32xf32>, vector<8x32xf32> -> vector<8x32xf32>
    %331 = vector.broadcast %247 : vector<1x32xf32> to vector<8x32xf32>
    %332 = arith.addf %330, %331 : vector<8x32xf32>
    %cst_152 = arith.constant dense<0.000000e+00> : vector<16x64xf32>
    %333 = tpu.matmul %5, %224, %cst_152 {dimension_numbers = #tpu.dot_dimension_numbers<[1], [0], [0], [1], [0, 0, 1, 1], [], []>} : vector<16x32xf32>, vector<32x64xf32>, vector<16x64xf32> -> vector<16x64xf32>
    %334 = vector.broadcast %240 : vector<1x64xf32> to vector<16x64xf32>
    %335 = arith.addf %333, %334 : vector<16x64xf32>
    %336 = vector.extract_strided_slice %335 {offsets = [0, 0], sizes = [16, 32], strides = [1, 1]} : vector<16x64xf32> to vector<16x32xf32>
    %337 = vector.extract_strided_slice %335 {offsets = [0, 32], sizes = [16, 32], strides = [1, 1]} : vector<16x64xf32> to vector<16x32xf32>
    %338 = vector.extract_strided_slice %332 {offsets = [0, 0], sizes = [8, 8], strides = [1, 1]} : vector<8x32xf32> to vector<8x8xf32>
    %339 = vector.extract_strided_slice %336 {offsets = [0, 0], sizes = [16, 8], strides = [1, 1]} : vector<16x32xf32> to vector<16x8xf32>
    %cst_153 = arith.constant dense<0.000000e+00> : vector<8x16xf32>
    %340 = tpu.matmul %338, %339, %cst_153 {dimension_numbers = #tpu.dot_dimension_numbers<[1], [1], [0], [0], [0, 0, 1, 0], [], []>} : vector<8x8xf32>, vector<16x8xf32>, vector<8x16xf32> -> vector<8x16xf32>
    %341 = vector.extract_strided_slice %332 {offsets = [0, 8], sizes = [8, 8], strides = [1, 1]} : vector<8x32xf32> to vector<8x8xf32>
    %342 = vector.extract_strided_slice %336 {offsets = [0, 8], sizes = [16, 8], strides = [1, 1]} : vector<16x32xf32> to vector<16x8xf32>
    %cst_154 = arith.constant dense<0.000000e+00> : vector<8x16xf32>
    %343 = tpu.matmul %341, %342, %cst_154 {dimension_numbers = #tpu.dot_dimension_numbers<[1], [1], [0], [0], [0, 0, 1, 0], [], []>} : vector<8x8xf32>, vector<16x8xf32>, vector<8x16xf32> -> vector<8x16xf32>
    %344 = vector.extract_strided_slice %332 {offsets = [0, 16], sizes = [8, 8], strides = [1, 1]} : vector<8x32xf32> to vector<8x8xf32>
    %345 = vector.extract_strided_slice %336 {offsets = [0, 16], sizes = [16, 8], strides = [1, 1]} : vector<16x32xf32> to vector<16x8xf32>
    %cst_155 = arith.constant dense<0.000000e+00> : vector<8x16xf32>
    %346 = tpu.matmul %344, %345, %cst_155 {dimension_numbers = #tpu.dot_dimension_numbers<[1], [1], [0], [0], [0, 0, 1, 0], [], []>} : vector<8x8xf32>, vector<16x8xf32>, vector<8x16xf32> -> vector<8x16xf32>
    %347 = vector.extract_strided_slice %332 {offsets = [0, 24], sizes = [8, 8], strides = [1, 1]} : vector<8x32xf32> to vector<8x8xf32>
    %348 = vector.extract_strided_slice %336 {offsets = [0, 24], sizes = [16, 8], strides = [1, 1]} : vector<16x32xf32> to vector<16x8xf32>
    %cst_156 = arith.constant dense<0.000000e+00> : vector<8x16xf32>
    %349 = tpu.matmul %347, %348, %cst_156 {dimension_numbers = #tpu.dot_dimension_numbers<[1], [1], [0], [0], [0, 0, 1, 0], [], []>} : vector<8x8xf32>, vector<16x8xf32>, vector<8x16xf32> -> vector<8x16xf32>
    %350 = tpu.concatenate %340, %343, %346, %349 in 0 : vector<8x16xf32>, vector<8x16xf32>, vector<8x16xf32>, vector<8x16xf32> -> vector<32x16xf32>
    %cst_157 = arith.constant 0.353553385 : f32
    %351 = vector.broadcast %cst_157 : f32 to vector<32x16xf32>
    %352 = arith.mulf %350, %351 : vector<32x16xf32>
    %cst_158 = arith.constant dense<0xFF800000> : vector<32xf32>
    %353 = vector.multi_reduction <maximumf>, %352, %cst_158 [1] : vector<32x16xf32> to vector<32xf32>
    %354 = vector.shape_cast %353 : vector<32xf32> to vector<32x1xf32>
    %355 = vector.broadcast %354 : vector<32x1xf32> to vector<32x16xf32>
    %356 = arith.subf %352, %355 : vector<32x16xf32>
    %357 = math.exp %356 : vector<32x16xf32>
    %cst_159 = arith.constant dense<0.000000e+00> : vector<32xf32>
    %358 = vector.multi_reduction <add>, %357, %cst_159 [1] : vector<32x16xf32> to vector<32xf32>
    %359 = vector.shape_cast %358 : vector<32xf32> to vector<32x1xf32>
    %360 = tpu.reciprocal %359 : vector<32x1xf32> -> vector<32x1xf32>
    %361 = vector.broadcast %360 : vector<32x1xf32> to vector<32x16xf32>
    %362 = arith.mulf %357, %361 : vector<32x16xf32>
    %363 = vector.extract_strided_slice %362 {offsets = [0, 0], sizes = [8, 16], strides = [1, 1]} : vector<32x16xf32> to vector<8x16xf32>
    %364 = vector.extract_strided_slice %337 {offsets = [0, 0], sizes = [16, 8], strides = [1, 1]} : vector<16x32xf32> to vector<16x8xf32>
    %cst_160 = arith.constant dense<0.000000e+00> : vector<8x8xf32>
    %365 = tpu.matmul %363, %364, %cst_160 {dimension_numbers = #tpu.dot_dimension_numbers<[1], [0], [0], [1], [0, 0, 1, 1], [], []>} : vector<8x16xf32>, vector<16x8xf32>, vector<8x8xf32> -> vector<8x8xf32>
    %366 = vector.extract_strided_slice %362 {offsets = [8, 0], sizes = [8, 16], strides = [1, 1]} : vector<32x16xf32> to vector<8x16xf32>
    %367 = vector.extract_strided_slice %337 {offsets = [0, 8], sizes = [16, 8], strides = [1, 1]} : vector<16x32xf32> to vector<16x8xf32>
    %cst_161 = arith.constant dense<0.000000e+00> : vector<8x8xf32>
    %368 = tpu.matmul %366, %367, %cst_161 {dimension_numbers = #tpu.dot_dimension_numbers<[1], [0], [0], [1], [0, 0, 1, 1], [], []>} : vector<8x16xf32>, vector<16x8xf32>, vector<8x8xf32> -> vector<8x8xf32>
    %369 = vector.extract_strided_slice %362 {offsets = [16, 0], sizes = [8, 16], strides = [1, 1]} : vector<32x16xf32> to vector<8x16xf32>
    %370 = vector.extract_strided_slice %337 {offsets = [0, 16], sizes = [16, 8], strides = [1, 1]} : vector<16x32xf32> to vector<16x8xf32>
    %cst_162 = arith.constant dense<0.000000e+00> : vector<8x8xf32>
    %371 = tpu.matmul %369, %370, %cst_162 {dimension_numbers = #tpu.dot_dimension_numbers<[1], [0], [0], [1], [0, 0, 1, 1], [], []>} : vector<8x16xf32>, vector<16x8xf32>, vector<8x8xf32> -> vector<8x8xf32>
    %372 = vector.extract_strided_slice %362 {offsets = [24, 0], sizes = [8, 16], strides = [1, 1]} : vector<32x16xf32> to vector<8x16xf32>
    %373 = vector.extract_strided_slice %337 {offsets = [0, 24], sizes = [16, 8], strides = [1, 1]} : vector<16x32xf32> to vector<16x8xf32>
    %cst_163 = arith.constant dense<0.000000e+00> : vector<8x8xf32>
    %374 = tpu.matmul %372, %373, %cst_163 {dimension_numbers = #tpu.dot_dimension_numbers<[1], [0], [0], [1], [0, 0, 1, 1], [], []>} : vector<8x16xf32>, vector<16x8xf32>, vector<8x8xf32> -> vector<8x8xf32>
    %375 = tpu.concatenate %365, %368, %371, %374 in 1 : vector<8x8xf32>, vector<8x8xf32>, vector<8x8xf32>, vector<8x8xf32> -> vector<8x32xf32>
    %cst_164 = arith.constant dense<0.000000e+00> : vector<8x32xf32>
    %376 = tpu.matmul %375, %232, %cst_164 {dimension_numbers = #tpu.dot_dimension_numbers<[1], [0], [0], [1], [0, 0, 1, 1], [], []>} : vector<8x32xf32>, vector<32x32xf32>, vector<8x32xf32> -> vector<8x32xf32>
    %377 = vector.broadcast %248 : vector<1x32xf32> to vector<8x32xf32>
    %378 = arith.addf %376, %377 : vector<8x32xf32>
    %379 = arith.addf %328, %378 : vector<8x32xf32>
    %cst_165 = arith.constant dense<0.000000e+00> : vector<8xf32>
    %380 = vector.multi_reduction <add>, %379, %cst_165 [1] : vector<8x32xf32> to vector<8xf32>
    %381 = vector.shape_cast %380 : vector<8xf32> to vector<8x1xf32>
    %cst_166 = arith.constant 3.200000e+01 : f32
    %382 = vector.broadcast %cst_166 : f32 to vector<8x1xf32>
    %383 = arith.divf %381, %382 : vector<8x1xf32>
    %384 = vector.broadcast %383 : vector<8x1xf32> to vector<8x32xf32>
    %385 = arith.subf %379, %384 : vector<8x32xf32>
    %386 = arith.mulf %385, %385 : vector<8x32xf32>
    %cst_167 = arith.constant dense<0.000000e+00> : vector<8xf32>
    %387 = vector.multi_reduction <add>, %386, %cst_167 [1] : vector<8x32xf32> to vector<8xf32>
    %388 = vector.shape_cast %387 : vector<8xf32> to vector<8x1xf32>
    %cst_168 = arith.constant 3.200000e+01 : f32
    %389 = vector.broadcast %cst_168 : f32 to vector<8x1xf32>
    %390 = arith.divf %388, %389 : vector<8x1xf32>
    %391 = vector.broadcast %383 : vector<8x1xf32> to vector<8x32xf32>
    %392 = arith.subf %379, %391 : vector<8x32xf32>
    %cst_169 = arith.constant 9.99999974E-6 : f32
    %393 = vector.broadcast %cst_169 : f32 to vector<8x1xf32>
    %394 = arith.addf %390, %393 : vector<8x1xf32>
    %395 = math.rsqrt %394 : vector<8x1xf32>
    %396 = vector.broadcast %395 : vector<8x1xf32> to vector<8x32xf32>
    %397 = arith.mulf %392, %396 : vector<8x32xf32>
    %398 = vector.broadcast %252 : vector<1x32xf32> to vector<8x32xf32>
    %399 = arith.mulf %397, %398 : vector<8x32xf32>
    %400 = vector.broadcast %253 : vector<1x32xf32> to vector<8x32xf32>
    %401 = arith.addf %399, %400 : vector<8x32xf32>
    %cst_170 = arith.constant dense<0.000000e+00> : vector<8x64xf32>
    %402 = tpu.matmul %401, %234, %cst_170 {dimension_numbers = #tpu.dot_dimension_numbers<[1], [0], [0], [1], [0, 0, 1, 1], [], []>} : vector<8x32xf32>, vector<32x64xf32>, vector<8x64xf32> -> vector<8x64xf32>
    %403 = vector.broadcast %242 : vector<1x64xf32> to vector<8x64xf32>
    %404 = arith.addf %402, %403 : vector<8x64xf32>
    %cst_171 = arith.constant 0.000000e+00 : f32
    %405 = vector.broadcast %cst_171 : f32 to vector<8x64xf32>
    %406 = arith.maximumf %404, %405 : vector<8x64xf32>
    %cst_172 = arith.constant dense<0.000000e+00> : vector<8x32xf32>
    %407 = tpu.matmul %406, %236, %cst_172 {dimension_numbers = #tpu.dot_dimension_numbers<[1], [0], [0], [1], [0, 0, 1, 1], [], []>} : vector<8x64xf32>, vector<64x32xf32>, vector<8x32xf32> -> vector<8x32xf32>
    %408 = vector.broadcast %249 : vector<1x32xf32> to vector<8x32xf32>
    %409 = arith.addf %407, %408 : vector<8x32xf32>
    %410 = arith.addf %401, %409 : vector<8x32xf32>
    %cst_173 = arith.constant dense<0.000000e+00> : vector<8xf32>
    %411 = vector.multi_reduction <add>, %410, %cst_173 [1] : vector<8x32xf32> to vector<8xf32>
    %412 = vector.shape_cast %411 : vector<8xf32> to vector<8x1xf32>
    %cst_174 = arith.constant 3.200000e+01 : f32
    %413 = vector.broadcast %cst_174 : f32 to vector<8x1xf32>
    %414 = arith.divf %412, %413 : vector<8x1xf32>
    %415 = vector.broadcast %414 : vector<8x1xf32> to vector<8x32xf32>
    %416 = arith.subf %410, %415 : vector<8x32xf32>
    %417 = arith.mulf %416, %416 : vector<8x32xf32>
    %cst_175 = arith.constant dense<0.000000e+00> : vector<8xf32>
    %418 = vector.multi_reduction <add>, %417, %cst_175 [1] : vector<8x32xf32> to vector<8xf32>
    %419 = vector.shape_cast %418 : vector<8xf32> to vector<8x1xf32>
    %cst_176 = arith.constant 3.200000e+01 : f32
    %420 = vector.broadcast %cst_176 : f32 to vector<8x1xf32>
    %421 = arith.divf %419, %420 : vector<8x1xf32>
    %422 = vector.broadcast %414 : vector<8x1xf32> to vector<8x32xf32>
    %423 = arith.subf %410, %422 : vector<8x32xf32>
    %cst_177 = arith.constant 9.99999974E-6 : f32
    %424 = vector.broadcast %cst_177 : f32 to vector<8x1xf32>
    %425 = arith.addf %421, %424 : vector<8x1xf32>
    %426 = math.rsqrt %425 : vector<8x1xf32>
    %427 = vector.broadcast %426 : vector<8x1xf32> to vector<8x32xf32>
    %428 = arith.mulf %423, %427 : vector<8x32xf32>
    %429 = vector.broadcast %254 : vector<1x32xf32> to vector<8x32xf32>
    %430 = arith.mulf %428, %429 : vector<8x32xf32>
    %431 = vector.broadcast %255 : vector<1x32xf32> to vector<8x32xf32>
    %432 = arith.addf %430, %431 : vector<8x32xf32>
    %c1_178 = arith.constant 1 : index
    %c0_179 = arith.constant 0 : index
    %c0_180 = arith.constant 0 : index
    %c0_181 = arith.constant 0 : index
    %433 = vector.load %arg11[%c1_178, %c0_179, %c0_180, %c0_181] : memref<2x1x8x32xf32, #tpu.memory_space<vmem>>, vector<1x1x8x32xf32>
    %434 = vector.shape_cast %433 : vector<1x1x8x32xf32> to vector<8x32xf32>
    %435 = vector.shape_cast %432 : vector<8x32xf32> to vector<1x1x8x32xf32>
    tpu.vector_store %arg11[%c1_178, %c0_179, %c0_180, %c0_181], %435 {strides = array<i32>} : memref<2x1x8x32xf32, #tpu.memory_space<vmem>>, vector<1x1x8x32xf32>,
    return
  }
  func.func @transform_0(%arg0: i32) -> (i32, i32, i32) {
    %c0_i32 = arith.constant 0 : i32
    %c0_i32_0 = arith.constant 0 : i32
    %c0_i32_1 = arith.constant 0 : i32
    return %arg0, %c0_i32, %c0_i32_0 : i32, i32, i32
  }
  func.func @transform_1(%arg0: i32) -> (i32, i32, i32) {
    %c0_i32 = arith.constant 0 : i32
    %c0_i32_0 = arith.constant 0 : i32
    %c0_i32_1 = arith.constant 0 : i32
    return %arg0, %c0_i32, %c0_i32_0 : i32, i32, i32
  }
  func.func @transform_2(%arg0: i32) -> (i32, i32, i32) {
    %c0_i32 = arith.constant 0 : i32
    %c0_i32_0 = arith.constant 0 : i32
    %c0_i32_1 = arith.constant 0 : i32
    return %arg0, %c0_i32, %c0_i32_0 : i32, i32, i32
  }
  func.func @transform_3(%arg0: i32) -> (i32, i32, i32, i32) {
    %c0_i32 = arith.constant 0 : i32
    %c0_i32_0 = arith.constant 0 : i32
    %c0_i32_1 = arith.constant 0 : i32
    %c0_i32_2 = arith.constant 0 : i32
    %c0_i32_3 = arith.constant 0 : i32
    return %c0_i32, %c0_i32_0, %c0_i32_1, %c0_i32_2 : i32, i32, i32, i32
  }
  func.func @transform_4(%arg0: i32) -> (i32, i32, i32, i32) {
    %c0_i32 = arith.constant 0 : i32
    %c0_i32_0 = arith.constant 0 : i32
    %c0_i32_1 = arith.constant 0 : i32
    %c0_i32_2 = arith.constant 0 : i32
    %c0_i32_3 = arith.constant 0 : i32
    return %c0_i32, %c0_i32_0, %c0_i32_1, %c0_i32_2 : i32, i32, i32, i32
  }
  func.func @transform_5(%arg0: i32) -> (i32, i32, i32) {
    %c0_i32 = arith.constant 0 : i32
    %c0_i32_0 = arith.constant 0 : i32
    %c0_i32_1 = arith.constant 0 : i32
    %c0_i32_2 = arith.constant 0 : i32
    return %c0_i32, %c0_i32_0, %c0_i32_1 : i32, i32, i32
  }
  func.func @transform_6(%arg0: i32) -> (i32, i32, i32) {
    %c0_i32 = arith.constant 0 : i32
    %c0_i32_0 = arith.constant 0 : i32
    %c0_i32_1 = arith.constant 0 : i32
    %c0_i32_2 = arith.constant 0 : i32
    return %c0_i32, %c0_i32_0, %c0_i32_1 : i32, i32, i32
  }
  func.func @transform_7(%arg0: i32) -> (i32, i32, i32) {
    %c0_i32 = arith.constant 0 : i32
    %c0_i32_0 = arith.constant 0 : i32
    %c0_i32_1 = arith.constant 0 : i32
    %c0_i32_2 = arith.constant 0 : i32
    return %c0_i32, %c0_i32_0, %c0_i32_1 : i32, i32, i32
  }
  func.func @transform_8(%arg0: i32) -> (i32, i32, i32) {
    %c0_i32 = arith.constant 0 : i32
    %c0_i32_0 = arith.constant 0 : i32
    %c0_i32_1 = arith.constant 0 : i32
    %c0_i32_2 = arith.constant 0 : i32
    return %c0_i32, %c0_i32_0, %c0_i32_1 : i32, i32, i32
  }
  func.func @transform_9(%arg0: i32) -> (i32, i32, i32) {
    %c0_i32 = arith.constant 0 : i32
    %c0_i32_0 = arith.constant 0 : i32
    %c0_i32_1 = arith.constant 0 : i32
    %c0_i32_2 = arith.constant 0 : i32
    return %c0_i32, %c0_i32_0, %c0_i32_1 : i32, i32, i32
  }
  func.func @transform_10(%arg0: i32) -> (i32, i32, i32, i32) {
    %c0_i32 = arith.constant 0 : i32
    %c0_i32_0 = arith.constant 0 : i32
    %c0_i32_1 = arith.constant 0 : i32
    %c0_i32_2 = arith.constant 0 : i32
    return %c0_i32, %arg0, %c0_i32_0, %c0_i32_1 : i32, i32, i32, i32
  }
}

</mosaic_0001>

<llo_original>
// kernel: tpu_custom_call.1
$region0: #{tpu_custom_call.1}
  #allocation0 [shape = 'u32[]', space=smem, size = 0x4, offset = 0x4, fixed_abs, tag = 'smem constant byte address 0x4 - core index']
  #allocation1 [shape = 'u32[144,128]{1,0:T(1,128)}', space=vmem, size = 0x12000, scoped, tag = 'internal scratch']
  %s0 = inlined_call_operand.hbm [shape: f32[2,8,32], index: 0, kind: input, shape index: {}]
  %s1 = inlined_call_operand.hbm [shape: f32[2,16,32], index: 1, kind: input, shape index: {}]
  %s2 = inlined_call_operand.hbm [shape: f32[2,8,32], index: 2, kind: input, shape index: {}]
  %s3 = inlined_call_operand.hbm [shape: f32[2,2,32,64], index: 3, kind: input, shape index: {}]
  %s4 = inlined_call_operand.vmem [shape: f32[2,4,32,32], index: 4, kind: input, shape index: {}]
  %s5 = inlined_call_operand.hbm [shape: f32[2,32,64], index: 5, kind: input, shape index: {}]
  %s6 = inlined_call_operand.vmem [shape: f32[2,64,32], index: 6, kind: input, shape index: {}]
  %s7 = inlined_call_operand.hbm [shape: f32[2,2,64], index: 7, kind: input, shape index: {}]
  %s8 = inlined_call_operand.vmem [shape: f32[2,1,64], index: 8, kind: input, shape index: {}]
  %s9 = inlined_call_operand.vmem [shape: f32[2,11,32], index: 9, kind: input, shape index: {}]
  %s10 = inlined_call_operand.hbm [shape: f32[2,2,8,32], index: 10, kind: output, shape index: {}]
  %s11 = sld [smem:[#allocation0]]
  $region97: #{tpu_custom_call.1} parent=0
    _
  %s13 = ssub.s32 1, %s11
  %s14 = scalar_select 0, %s13, %s11
  $region1: #{tpu_custom_call.1} parent=0
    #allocation2 [shape = 'u8[8192]{0}', space=vmem, size = 0x2000, scoped, tag = 'input window, operand 0']
    #allocation3 [shape = 's32[2]{0}', space=sflag, size = 0x8, scoped, tag = 'scoped memory for tpu_custom_call.1']
    #allocation4 [shape = 's32[2]{0}', space=sflag, size = 0x8, scoped, tag = 'scoped memory for tpu_custom_call.1']
    #allocation5 [shape = 'u8[16384]{0}', space=vmem, size = 0x4000, scoped, tag = 'input window, operand 1']
    #allocation6 [shape = 's32[2]{0}', space=sflag, size = 0x8, scoped, tag = 'scoped memory for tpu_custom_call.1']
    #allocation7 [shape = 'u8[8192]{0}', space=vmem, size = 0x2000, scoped, tag = 'input window, operand 2']
    #allocation8 [shape = 'u8[65536]{0}', space=vmem, size = 0x10000, scoped, tag = 'input window, operand 3, single buffered']
    #allocation9 [shape = 's32[1]{0}', space=sflag, size = 0x4, scoped, tag = 'scoped memory for tpu_custom_call.1']
    #allocation10 [shape = 'u8[32768]{0}', space=vmem, size = 0x8000, scoped, tag = 'input window, operand 5, single buffered']
    #allocation11 [shape = 'u8[2048]{0}', space=vmem, size = 0x800, scoped, tag = 'input window, operand 7, single buffered']
    #allocation12 [shape = 's32[1]{0}', space=sflag, size = 0x4, scoped, tag = 'scoped memory for tpu_custom_call.1']
    #allocation13 [shape = 'u8[16384]{0}', space=vmem, size = 0x4000, scoped, tag = 'output window, operand 0']
    %15 = vsyncpa [#allocation3], 0
    %s16 = scalar_lea.sflag [#allocation3], 1
    %17 = vsyncpa %s16, 0
    %18 = vsyncpa [#allocation6], 0
    %s19 = scalar_lea.sflag [#allocation6], 1
    %20 = vsyncpa %s19, 0
    %21 = vsyncpa [#allocation9], 0
    %22 = vsyncpa [#allocation12], 0
    %23 = vsyncpa [#allocation4], 0
    %s24 = scalar_lea.sflag [#allocation4], 1
    %25 = vsyncpa %s24, 0
    loop: start=0, step=1, limit=4
    $region2: #{tpu_custom_call.1} parent=1 // loop_pre_header
      _
    $region3: #{tpu_custom_call.1} parent=1 // loop_header
      %s27 = sphi 0, %s31
      %p28 = scmp.ge.s32.totalorder %s27, 4
      %s37 = sphi 0, %s39
      %s40 = sphi 0, %s37
      %s41 = sphi 0, %s40
      %s57 = sphi 0, %s41
      %s63 = sphi 0, %s65
      %s66 = sphi 0, %s63
      %s67 = sphi 0, %s66
      %s83 = sphi 0, %s67
      %s89 = sphi 0, %s91
      %s92 = sphi 0, %s89
      %s93 = sphi 0, %s92
      %s109 = sphi 0, %s93
      %s113 = sphi 0, %s113
      %s115 = sphi 0, %s113
      %s116 = sphi 0, %s115
      %s130 = sphi 0, %s116
      %s134 = sphi 0, %s134
      %s136 = sphi 0, %s134
      %s137 = sphi 0, %s136
      %s151 = sphi 0, %s137
      %s155 = sphi 0, %s155
      %s157 = sphi 0, %s155
      %s158 = sphi 0, %s157
      %s172 = sphi 0, %s158
      %s176 = sphi 0, %s176
      %s178 = sphi 0, %s176
      %s179 = sphi 0, %s178
      %s193 = sphi 0, %s179
      %s197 = sphi 0, %s197
      %s199 = sphi 0, %s197
      %s200 = sphi 0, %s199
      %s214 = sphi 0, %s200
      %s218 = sphi 0, %s218
      %s220 = sphi 0, %s218
      %s221 = sphi 0, %s220
      %s235 = sphi 0, %s221
      %s239 = sphi 0, %s239
      %s241 = sphi 0, %s239
      %s242 = sphi 0, %s241
      %s256 = sphi 0, %s242
      %s262 = sphi 0, %s264
      %s265 = sphi 0, %s262
      %s266 = sphi 0, %s265
      %s282 = sphi 0, %s266
    $region4: #{tpu_custom_call.1} parent=1 // loop_header_branch
      %30 = sbr.rel (%p28) target = $region8
    $region5: #{tpu_custom_call.1} parent=1 // loop_body
      %s32 = ssub.s32 %s27, 1
      %s33 = ssub.s32 %s27, 2
      %s34 = sadd.s32 %s27, 1
      %s35 = ssub.s32 %s27, %s34
      %p36 = scmp.eq.s32.totalorder %s35, 0
      %s38 = sadd.s32 %s37, 1
      %s39 = scalar_select %p36, %s37, %s38
      %p42 = pneg %p36
      %p43 = scmp.eq.s32.totalorder %s27, 1
      %p44 = por %p42, %p43
      %p45 = scmp.ne.s32.totalorder %s37, %s40
      %p46 = scmp.eq.s32.totalorder %s27, 0
      %p47 = por %p45, %p46
      %p48 = scmp.ne.s32.totalorder %s37, %s40
      %p49 = scmp.eq.s32.totalorder %s32, 1
      %p50 = por %p48, %p49
      %p51 = scmp.ne.s32.totalorder %s40, %s41
      %p52 = scmp.eq.s32.totalorder %s32, 0
      %p53 = por %p51, %p52
      %p54 = scmp.ne.s32.totalorder %s40, %s41
      %p55 = scmp.eq.s32.totalorder %s33, 1
      %p56 = por %p54, %p55
      %p58 = scmp.ne.s32.totalorder %s41, %s57
      %p59 = scmp.eq.s32.totalorder %s33, 0
      %p60 = por %p58, %p59
      %s61 = ssub.s32 %s27, %s34
      %p62 = scmp.eq.s32.totalorder %s61, 0
      %s64 = sadd.s32 %s63, 1
      %s65 = scalar_select %p62, %s63, %s64
      %p68 = pneg %p62
      %p69 = scmp.eq.s32.totalorder %s27, 1
      %p70 = por %p68, %p69
      %p71 = scmp.ne.s32.totalorder %s63, %s66
      %p72 = scmp.eq.s32.totalorder %s27, 0
      %p73 = por %p71, %p72
      %p74 = scmp.ne.s32.totalorder %s63, %s66
      %p75 = scmp.eq.s32.totalorder %s32, 1
      %p76 = por %p74, %p75
      %p77 = scmp.ne.s32.totalorder %s66, %s67
      %p78 = scmp.eq.s32.totalorder %s32, 0
      %p79 = por %p77, %p78
      %p80 = scmp.ne.s32.totalorder %s66, %s67
      %p81 = scmp.eq.s32.totalorder %s33, 1
      %p82 = por %p80, %p81
      %p84 = scmp.ne.s32.totalorder %s67, %s83
      %p85 = scmp.eq.s32.totalorder %s33, 0
      %p86 = por %p84, %p85
      %s87 = ssub.s32 %s27, %s34
      %p88 = scmp.eq.s32.totalorder %s87, 0
      %s90 = sadd.s32 %s89, 1
      %s91 = scalar_select %p88, %s89, %s90
      %p94 = pneg %p88
      %p95 = scmp.eq.s32.totalorder %s27, 1
      %p96 = por %p94, %p95
      %p97 = scmp.ne.s32.totalorder %s89, %s92
      %p98 = scmp.eq.s32.totalorder %s27, 0
      %p99 = por %p97, %p98
      %p100 = scmp.ne.s32.totalorder %s89, %s92
      %p101 = scmp.eq.s32.totalorder %s32, 1
      %p102 = por %p100, %p101
      %p103 = scmp.ne.s32.totalorder %s92, %s93
      %p104 = scmp.eq.s32.totalorder %s32, 0
      %p105 = por %p103, %p104
      %p106 = scmp.ne.s32.totalorder %s92, %s93
      %p107 = scmp.eq.s32.totalorder %s33, 1
      %p108 = por %p106, %p107
      %p110 = scmp.ne.s32.totalorder %s93, %s109
      %p111 = scmp.eq.s32.totalorder %s33, 0
      %p112 = por %p110, %p111
      %s114 = sadd.s32 %s113, 1
      %p117 = scmp.eq.s32.totalorder %s27, 1
      %p118 = scmp.ne.s32.totalorder %s113, %s115
      %p119 = scmp.eq.s32.totalorder %s27, 0
      %p120 = por %p118, %p119
      %p121 = scmp.ne.s32.totalorder %s113, %s115
      %p122 = scmp.eq.s32.totalorder %s32, 1
      %p123 = por %p121, %p122
      %p124 = scmp.ne.s32.totalorder %s115, %s116
      %p125 = scmp.eq.s32.totalorder %s32, 0
      %p126 = por %p124, %p125
      %p127 = scmp.ne.s32.totalorder %s115, %s116
      %p128 = scmp.eq.s32.totalorder %s33, 1
      %p129 = por %p127, %p128
      %p131 = scmp.ne.s32.totalorder %s116, %s130
      %p132 = scmp.eq.s32.totalorder %s33, 0
      %p133 = por %p131, %p132
      %s135 = sadd.s32 %s134, 1
      %p138 = scmp.eq.s32.totalorder %s27, 1
      %p139 = scmp.ne.s32.totalorder %s134, %s136
      %p140 = scmp.eq.s32.totalorder %s27, 0
      %p141 = por %p139, %p140
      %p142 = scmp.ne.s32.totalorder %s134, %s136
      %p143 = scmp.eq.s32.totalorder %s32, 1
      %p144 = por %p142, %p143
      %p145 = scmp.ne.s32.totalorder %s136, %s137
      %p146 = scmp.eq.s32.totalorder %s32, 0
      %p147 = por %p145, %p146
      %p148 = scmp.ne.s32.totalorder %s136, %s137
      %p149 = scmp.eq.s32.totalorder %s33, 1
      %p150 = por %p148, %p149
      %p152 = scmp.ne.s32.totalorder %s137, %s151
      %p153 = scmp.eq.s32.totalorder %s33, 0
      %p154 = por %p152, %p153
      %s156 = sadd.s32 %s155, 1
      %p159 = scmp.eq.s32.totalorder %s27, 1
      %p160 = scmp.ne.s32.totalorder %s155, %s157
      %p161 = scmp.eq.s32.totalorder %s27, 0
      %p162 = por %p160, %p161
      %p163 = scmp.ne.s32.totalorder %s155, %s157
      %p164 = scmp.eq.s32.totalorder %s32, 1
      %p165 = por %p163, %p164
      %p166 = scmp.ne.s32.totalorder %s157, %s158
      %p167 = scmp.eq.s32.totalorder %s32, 0
      %p168 = por %p166, %p167
      %p169 = scmp.ne.s32.totalorder %s157, %s158
      %p170 = scmp.eq.s32.totalorder %s33, 1
      %p171 = por %p169, %p170
      %p173 = scmp.ne.s32.totalorder %s158, %s172
      %p174 = scmp.eq.s32.totalorder %s33, 0
      %p175 = por %p173, %p174
      %s177 = sadd.s32 %s176, 1
      %p180 = scmp.eq.s32.totalorder %s27, 1
      %p181 = scmp.ne.s32.totalorder %s176, %s178
      %p182 = scmp.eq.s32.totalorder %s27, 0
      %p183 = por %p181, %p182
      %p184 = scmp.ne.s32.totalorder %s176, %s178
      %p185 = scmp.eq.s32.totalorder %s32, 1
      %p186 = por %p184, %p185
      %p187 = scmp.ne.s32.totalorder %s178, %s179
      %p188 = scmp.eq.s32.totalorder %s32, 0
      %p189 = por %p187, %p188
      %p190 = scmp.ne.s32.totalorder %s178, %s179
      %p191 = scmp.eq.s32.totalorder %s33, 1
      %p192 = por %p190, %p191
      %p194 = scmp.ne.s32.totalorder %s179, %s193
      %p195 = scmp.eq.s32.totalorder %s33, 0
      %p196 = por %p194, %p195
      %s198 = sadd.s32 %s197, 1
      %p201 = scmp.eq.s32.totalorder %s27, 1
      %p202 = scmp.ne.s32.totalorder %s197, %s199
      %p203 = scmp.eq.s32.totalorder %s27, 0
      %p204 = por %p202, %p203
      %p205 = scmp.ne.s32.totalorder %s197, %s199
      %p206 = scmp.eq.s32.totalorder %s32, 1
      %p207 = por %p205, %p206
      %p208 = scmp.ne.s32.totalorder %s199, %s200
      %p209 = scmp.eq.s32.totalorder %s32, 0
      %p210 = por %p208, %p209
      %p211 = scmp.ne.s32.totalorder %s199, %s200
      %p212 = scmp.eq.s32.totalorder %s33, 1
      %p213 = por %p211, %p212
      %p215 = scmp.ne.s32.totalorder %s200, %s214
      %p216 = scmp.eq.s32.totalorder %s33, 0
      %p217 = por %p215, %p216
      %s219 = sadd.s32 %s218, 1
      %p222 = scmp.eq.s32.totalorder %s27, 1
      %p223 = scmp.ne.s32.totalorder %s218, %s220
      %p224 = scmp.eq.s32.totalorder %s27, 0
      %p225 = por %p223, %p224
      %p226 = scmp.ne.s32.totalorder %s218, %s220
      %p227 = scmp.eq.s32.totalorder %s32, 1
      %p228 = por %p226, %p227
      %p229 = scmp.ne.s32.totalorder %s220, %s221
      %p230 = scmp.eq.s32.totalorder %s32, 0
      %p231 = por %p229, %p230
      %p232 = scmp.ne.s32.totalorder %s220, %s221
      %p233 = scmp.eq.s32.totalorder %s33, 1
      %p234 = por %p232, %p233
      %p236 = scmp.ne.s32.totalorder %s221, %s235
      %p237 = scmp.eq.s32.totalorder %s33, 0
      %p238 = por %p236, %p237
      %s240 = sadd.s32 %s239, 1
      %p243 = scmp.eq.s32.totalorder %s27, 1
      %p244 = scmp.ne.s32.totalorder %s239, %s241
      %p245 = scmp.eq.s32.totalorder %s27, 0
      %p246 = por %p244, %p245
      %p247 = scmp.ne.s32.totalorder %s239, %s241
      %p248 = scmp.eq.s32.totalorder %s32, 1
      %p249 = por %p247, %p248
      %p250 = scmp.ne.s32.totalorder %s241, %s242
      %p251 = scmp.eq.s32.totalorder %s32, 0
      %p252 = por %p250, %p251
      %p253 = scmp.ne.s32.totalorder %s241, %s242
      %p254 = scmp.eq.s32.totalorder %s33, 1
      %p255 = por %p253, %p254
      %p257 = scmp.ne.s32.totalorder %s242, %s256
      %p258 = scmp.eq.s32.totalorder %s33, 0
      %p259 = por %p257, %p258
      %s260 = ssub.s32 %s27, %s34
      %p261 = scmp.eq.s32.totalorder %s260, 0
      %s263 = sadd.s32 %s262, 1
      %s264 = scalar_select %p261, %s262, %s263
      %p267 = pneg %p261
      %p268 = scmp.eq.s32.totalorder %s27, 1
      %p269 = por %p267, %p268
      %p270 = scmp.ne.s32.totalorder %s262, %s265
      %p271 = scmp.eq.s32.totalorder %s27, 0
      %p272 = por %p270, %p271
      %p273 = scmp.ne.s32.totalorder %s262, %s265
      %p274 = scmp.eq.s32.totalorder %s32, 1
      %p275 = por %p273, %p274
      %p276 = scmp.ne.s32.totalorder %s265, %s266
      %p277 = scmp.eq.s32.totalorder %s32, 0
      %p278 = por %p276, %p277
      %p279 = scmp.ne.s32.totalorder %s265, %s266
      %p280 = scmp.eq.s32.totalorder %s33, 1
      %p281 = por %p279, %p280
      %p283 = scmp.ne.s32.totalorder %s266, %s282
      %p284 = scmp.eq.s32.totalorder %s33, 0
      %p285 = por %p283, %p284
      %p286 = scmp.le.s32.totalorder 1, %s27
      %p287 = scmp.lt.s32.totalorder %s27, 3
      %p288 = pnand %p286, %p287
      %p289 = pneg %p288
      // Predicated region
      $region9: #{tpu_custom_call.1} parent=5 // pred_check
        _
      $region10: #{tpu_custom_call.1} parent=5 // pred_check_branch
        %291 = sbr.rel (%p288) target = $region12
      $region11: #{tpu_custom_call.1} parent=5 // pred_region
        %s292 = ssub.s32 %s27, 1
        // Predicated region
        $region13: #{tpu_custom_call.1} parent=11 // pred_check
          %p293 = pneg %p126
        $region14: #{tpu_custom_call.1} parent=11 // pred_check_branch
          %295 = sbr.rel (%p293) target = $region16
        $region15: #{tpu_custom_call.1} parent=11 // pred_region
          %s297 = ssub.s32 2048, 2048
          %298 = vsyncadd [#allocation9], %s297
          %s299 = sshll.u32 [#allocation8], 4
          %s300 = int_to_ptr.vmem [resolvable:$true] %s299
          %305 = dma.hbm_to_vmem [thread:$0]  %s3, 2048, %s300, [#allocation9], 128, 128, 8
        $region16: #{tpu_custom_call.1} parent=11 // pred_fallthru
          _
        // Predicated region
        $region17: #{tpu_custom_call.1} parent=11 // pred_check
          %p306 = pneg %p147
        $region18: #{tpu_custom_call.1} parent=11 // pred_check_branch
          %308 = sbr.rel (%p306) target = $region20
        $region19: #{tpu_custom_call.1} parent=11 // pred_region
          _
        $region20: #{tpu_custom_call.1} parent=11 // pred_fallthru
          _
        // Predicated region
        $region21: #{tpu_custom_call.1} parent=11 // pred_check
          %p309 = pneg %p168
        $region22: #{tpu_custom_call.1} parent=11 // pred_check_branch
          %311 = sbr.rel (%p309) target = $region24
        $region23: #{tpu_custom_call.1} parent=11 // pred_region
          %s313 = ssub.s32 1024, 1024
          %314 = vsyncadd [#allocation9], %s313
          %s315 = sshll.u32 [#allocation10], 4
          %s316 = int_to_ptr.vmem [resolvable:$true] %s315
          %321 = dma.hbm_to_vmem [thread:$0]  %s5, 1024, %s316, [#allocation9], 128, 128, 8
        $region24: #{tpu_custom_call.1} parent=11 // pred_fallthru
          _
        // Predicated region
        $region25: #{tpu_custom_call.1} parent=11 // pred_check
          %p322 = pneg %p189
        $region26: #{tpu_custom_call.1} parent=11 // pred_check_branch
          %324 = sbr.rel (%p322) target = $region28
        $region27: #{tpu_custom_call.1} parent=11 // pred_region
          _
        $region28: #{tpu_custom_call.1} parent=11 // pred_fallthru
          _
        // Predicated region
        $region29: #{tpu_custom_call.1} parent=11 // pred_check
          %p325 = pneg %p210
        $region30: #{tpu_custom_call.1} parent=11 // pred_check_branch
          %327 = sbr.rel (%p325) target = $region32
        $region31: #{tpu_custom_call.1} parent=11 // pred_region
          %s329 = ssub.s32 64, 64
          %330 = vsyncadd [#allocation12], %s329
          %s331 = sshll.u32 [#allocation11], 4
          %s332 = int_to_ptr.vmem [resolvable:$true] %s331
          %337 = dma.hbm_to_vmem [thread:$0]  %s7, 64, %s332, [#allocation12], 32, 32, 2
        $region32: #{tpu_custom_call.1} parent=11 // pred_fallthru
          _
        // Predicated region
        $region33: #{tpu_custom_call.1} parent=11 // pred_check
          %p338 = pneg %p231
        $region34: #{tpu_custom_call.1} parent=11 // pred_check_branch
          %340 = sbr.rel (%p338) target = $region36
        $region35: #{tpu_custom_call.1} parent=11 // pred_region
          _
        $region36: #{tpu_custom_call.1} parent=11 // pred_fallthru
          _
        // Predicated region
        $region37: #{tpu_custom_call.1} parent=11 // pred_check
          %p341 = pneg %p252
        $region38: #{tpu_custom_call.1} parent=11 // pred_check_branch
          %343 = sbr.rel (%p341) target = $region40
        $region39: #{tpu_custom_call.1} parent=11 // pred_region
          _
        $region40: #{tpu_custom_call.1} parent=11 // pred_fallthru
          _
      $region12: #{tpu_custom_call.1} parent=5 // pred_fallthru
        _
      %p344 = scmp.lt.s32.totalorder %s27, 2
      // Predicated region
      $region41: #{tpu_custom_call.1} parent=5 // pred_check
        %p345 = pneg %p344
      $region42: #{tpu_custom_call.1} parent=5 // pred_check_branch
        %347 = sbr.rel (%p345) target = $region44
      $region43: #{tpu_custom_call.1} parent=5 // pred_region
        // Predicated region
        $region45: #{tpu_custom_call.1} parent=43 // pred_check
          %p348 = pneg %p47
        $region46: #{tpu_custom_call.1} parent=43 // pred_check_branch
          %350 = sbr.rel (%p348) target = $region48
        $region47: #{tpu_custom_call.1} parent=43 // pred_region
          %s351 = sand.u32 %s37, 1
          %s352 = scalar_lea.sflag [#allocation3], %s351
          %s353 = sand.u32 %s37, 1
          %s354 = smul.addr %s353, 8
          %s355 = scalar_lea.vmem [#allocation2], %s354
          %s357 = ssub.s32 128, 128
          %358 = vsyncadd %s352, %s357
          %s359 = smul.addr %s27, 128
          %s360 = scalar_lea.hbm %s0, %s359
          %s362 = sshll.u32 %s355, 4
          %s363 = int_to_ptr.vmem [resolvable:$true] %s362
          %365 = dma.hbm_to_vmem [thread:$0]  %s360, 128, %s363, %s352
        $region48: #{tpu_custom_call.1} parent=43 // pred_fallthru
          _
        // Predicated region
        $region49: #{tpu_custom_call.1} parent=43 // pred_check
          %p366 = pneg %p73
        $region50: #{tpu_custom_call.1} parent=43 // pred_check_branch
          %368 = sbr.rel (%p366) target = $region52
        $region51: #{tpu_custom_call.1} parent=43 // pred_region
          %s369 = sand.u32 %s27, 1
          %s370 = scalar_lea.sflag [#allocation6], %s369
          %s371 = sand.u32 %s63, 1
          %s372 = smul.addr %s371, 16
          %s373 = scalar_lea.vmem [#allocation5], %s372
          %s375 = ssub.s32 256, 256
          %376 = vsyncadd %s370, %s375
          %s377 = smul.addr %s27, 2
          %s378 = smul.addr %s377, 128
          %s379 = scalar_lea.hbm %s1, %s378
          %s380 = sshll.u32 %s373, 4
          %s381 = int_to_ptr.vmem [resolvable:$true] %s380
          %386 = dma.hbm_to_vmem [thread:$0]  %s379, 256, %s381, %s370, 128, 128, 8
        $region52: #{tpu_custom_call.1} parent=43 // pred_fallthru
          _
        // Predicated region
        $region53: #{tpu_custom_call.1} parent=43 // pred_check
          %p387 = pneg %p99
        $region54: #{tpu_custom_call.1} parent=43 // pred_check_branch
          %389 = sbr.rel (%p387) target = $region56
        $region55: #{tpu_custom_call.1} parent=43 // pred_region
          %s390 = sand.u32 %s27, 1
          %s391 = scalar_lea.sflag [#allocation6], %s390
          %s392 = sand.u32 %s89, 1
          %s393 = smul.addr %s392, 8
          %s394 = scalar_lea.vmem [#allocation7], %s393
          %s396 = ssub.s32 128, 128
          %397 = vsyncadd %s391, %s396
          %s398 = smul.addr %s27, 128
          %s399 = scalar_lea.hbm %s2, %s398
          %s401 = sshll.u32 %s394, 4
          %s402 = int_to_ptr.vmem [resolvable:$true] %s401
          %404 = dma.hbm_to_vmem [thread:$0]  %s399, 128, %s402, %s391
        $region56: #{tpu_custom_call.1} parent=43 // pred_fallthru
          _
      $region44: #{tpu_custom_call.1} parent=5 // pred_fallthru
        _
      %p405 = scmp.le.s32.totalorder 1, %s27
      %p406 = scmp.lt.s32.totalorder %s27, 3
      %p407 = pnand %p405, %p406
      %p408 = pneg %p407
      // Predicated region
      $region57: #{tpu_custom_call.1} parent=5 // pred_check
        _
      $region58: #{tpu_custom_call.1} parent=5 // pred_check_branch
        %410 = sbr.rel (%p407) target = $region60
      $region59: #{tpu_custom_call.1} parent=5 // pred_region
        %s411 = ssub.s32 %s27, 1
        %s412 = sand.u32 %s40, 1
        %s413 = scalar_lea.sflag [#allocation3], %s412
        %s414 = sand.u32 %s40, 1
        %s415 = smul.addr %s414, 8
        %s416 = scalar_lea.vmem [#allocation2], %s415
        // Predicated region
        $region61: #{tpu_custom_call.1} parent=59 // pred_check
          %p417 = pneg %p53
        $region62: #{tpu_custom_call.1} parent=59 // pred_check_branch
          %419 = sbr.rel (%p417) target = $region64
        $region63: #{tpu_custom_call.1} parent=59 // pred_region
          %420 = dma.done %s413, 128
        $region64: #{tpu_custom_call.1} parent=59 // pred_fallthru
          _
        %s421 = sand.u32 %s32, 1
        %s422 = scalar_lea.sflag [#allocation6], %s421
        %s423 = sand.u32 %s66, 1
        %s424 = smul.addr %s423, 16
        %s425 = scalar_lea.vmem [#allocation5], %s424
        // Predicated region
        $region65: #{tpu_custom_call.1} parent=59 // pred_check
          %p426 = pneg %p79
        $region66: #{tpu_custom_call.1} parent=59 // pred_check_branch
          %428 = sbr.rel (%p426) target = $region68
        $region67: #{tpu_custom_call.1} parent=59 // pred_region
          %429 = dma.done %s422, 256
        $region68: #{tpu_custom_call.1} parent=59 // pred_fallthru
          _
        %s430 = sand.u32 %s32, 1
        %s431 = scalar_lea.sflag [#allocation6], %s430
        %s432 = sand.u32 %s92, 1
        %s433 = smul.addr %s432, 8
        %s434 = scalar_lea.vmem [#allocation7], %s433
        // Predicated region
        $region69: #{tpu_custom_call.1} parent=59 // pred_check
          %p435 = pneg %p105
        $region70: #{tpu_custom_call.1} parent=59 // pred_check_branch
          %437 = sbr.rel (%p435) target = $region72
        $region71: #{tpu_custom_call.1} parent=59 // pred_region
          %438 = dma.done %s431, 128
        $region72: #{tpu_custom_call.1} parent=59 // pred_fallthru
          _
        // Predicated region
        $region73: #{tpu_custom_call.1} parent=59 // pred_check
          %p439 = pneg %p126
        $region74: #{tpu_custom_call.1} parent=59 // pred_check_branch
          %441 = sbr.rel (%p439) target = $region76
        $region75: #{tpu_custom_call.1} parent=59 // pred_region
          %442 = dma.done [#allocation9], 2048
        $region76: #{tpu_custom_call.1} parent=59 // pred_fallthru
          _
        // Predicated region
        $region77: #{tpu_custom_call.1} parent=59 // pred_check
          %p443 = pneg %p168
        $region78: #{tpu_custom_call.1} parent=59 // pred_check_branch
          %445 = sbr.rel (%p443) target = $region80
        $region79: #{tpu_custom_call.1} parent=59 // pred_region
          %446 = dma.done [#allocation9], 1024
        $region80: #{tpu_custom_call.1} parent=59 // pred_fallthru
          _
        // Predicated region
        $region81: #{tpu_custom_call.1} parent=59 // pred_check
          %p447 = pneg %p210
        $region82: #{tpu_custom_call.1} parent=59 // pred_check_branch
          %449 = sbr.rel (%p447) target = $region84
        $region83: #{tpu_custom_call.1} parent=59 // pred_region
          %450 = dma.done [#allocation12], 64
        $region84: #{tpu_custom_call.1} parent=59 // pred_fallthru
          _
        %s451 = sand.u32 %s40, 1
        %s452 = scalar_lea.sflag [#allocation3], %s451
        %s453 = sand.u32 %s40, 1
        %s454 = smul.addr %s453, 8
        %s455 = scalar_lea.vmem [#allocation2], %s454
        %p456 = pneg %p53
        %p457 = pneg %p50
        %s458 = sand.u32 %s32, 1
        %s459 = scalar_lea.sflag [#allocation6], %s458
        %s460 = sand.u32 %s66, 1
        %s461 = smul.addr %s460, 16
        %s462 = scalar_lea.vmem [#allocation5], %s461
        %p463 = pneg %p79
        %p464 = pneg %p76
        %s465 = sand.u32 %s32, 1
        %s466 = scalar_lea.sflag [#allocation6], %s465
        %s467 = sand.u32 %s92, 1
        %s468 = smul.addr %s467, 8
        %s469 = scalar_lea.vmem [#allocation7], %s468
        %p470 = pneg %p105
        %p471 = pneg %p102
        %p472 = pneg %p126
        %p473 = pneg %p123
        %p474 = pneg %p147
        %p475 = pneg %p144
        %p476 = pneg %p168
        %p477 = pneg %p165
        %p478 = pneg %p189
        %p479 = pneg %p186
        %p480 = pneg %p210
        %p481 = pneg %p207
        %p482 = pneg %p231
        %p483 = pneg %p228
        %p484 = pneg %p252
        %p485 = pneg %p249
        %p486 = pneg %p278
        %p487 = pneg %p275
        %s488 = sand.u32 %s265, 1
        %s489 = scalar_lea.sflag [#allocation4], %s488
        %s490 = sand.u32 %s265, 1
        %s491 = smul.addr %s490, 16
        %s492 = scalar_lea.vmem [#allocation13], %s491
        %v493 = vld [vmem:[%s416] sm:$0xff]
        %v494 = vld [vmem:[%s434] sm:$0xff]
        %v495 = vld [vmem:[%s425] sm:$0xff]
        %v496 = vld [vmem:[%s425 + $0x8] sm:$0xff]
        %v497 = vld [vmem:[#allocation8] sm:$0xff]
        %v498 = vld [vmem:[#allocation8 + $0x8] sm:$0xff]
        %v499 = vld [vmem:[#allocation8 + $0x10] sm:$0xff]
        %v500 = vld [vmem:[#allocation8 + $0x18] sm:$0xff]
        %s501 = scalar_lea.vmem [#allocation8], 32
        %v502 = vld [vmem:[%s501] sm:$0xff]
        %v503 = vld [vmem:[%s501 + $0x8] sm:$0xff]
        %v504 = vld [vmem:[%s501 + $0x10] sm:$0xff]
        %v505 = vld [vmem:[%s501 + $0x18] sm:$0xff]
        %v506 = vld [vmem:[%s4] sm:$0xff]
        %v507 = vld [vmem:[%s4 + $0x8] sm:$0xff]
        %v508 = vld [vmem:[%s4 + $0x10] sm:$0xff]
        %v509 = vld [vmem:[%s4 + $0x18] sm:$0xff]
        %s510 = scalar_lea.vmem %s4, 32
        %v511 = vld [vmem:[%s510] sm:$0xff]
        %v512 = vld [vmem:[%s510 + $0x8] sm:$0xff]
        %v513 = vld [vmem:[%s510 + $0x10] sm:$0xff]
        %v514 = vld [vmem:[%s510 + $0x18] sm:$0xff]
        %s515 = scalar_lea.vmem %s4, 64
        %v516 = vld [vmem:[%s515] sm:$0xff]
        %v517 = vld [vmem:[%s515 + $0x8] sm:$0xff]
        %v518 = vld [vmem:[%s515 + $0x10] sm:$0xff]
        %v519 = vld [vmem:[%s515 + $0x18] sm:$0xff]
        %s520 = scalar_lea.vmem %s4, 96
        %v521 = vld [vmem:[%s520] sm:$0xff]
        %v522 = vld [vmem:[%s520 + $0x8] sm:$0xff]
        %v523 = vld [vmem:[%s520 + $0x10] sm:$0xff]
        %v524 = vld [vmem:[%s520 + $0x18] sm:$0xff]
        %v525 = vld [vmem:[#allocation10] sm:$0xff]
        %v526 = vld [vmem:[#allocation10 + $0x8] sm:$0xff]
        %v527 = vld [vmem:[#allocation10 + $0x10] sm:$0xff]
        %v528 = vld [vmem:[#allocation10 + $0x18] sm:$0xff]
        %v529 = vld [vmem:[%s6] sm:$0xff]
        %v530 = vld [vmem:[%s6 + $0x8] sm:$0xff]
        %v531 = vld [vmem:[%s6 + $0x10] sm:$0xff]
        %v532 = vld [vmem:[%s6 + $0x18] sm:$0xff]
        %v533 = vld [vmem:[%s6 + $0x20] sm:$0xff]
        %v534 = vld [vmem:[%s6 + $0x28] sm:$0xff]
        %v535 = vld [vmem:[%s6 + $0x30] sm:$0xff]
        %v536 = vld [vmem:[%s6 + $0x38] sm:$0xff]
        %v537 = vld [vmem:[#allocation11] sm:$0x3]
        %v538 = vld [vmem:[%s8] sm:$0x1]
        %v539 = vld [vmem:[%s9] sm:$0xff]
        %v540 = vld [vmem:[%s9 + $0x8] sm:$0x7]
        %v541 = vadd.f32 %v493, %v494
        %v542 = vlaneseq
        %v543 = vshrl.u32 %v542, 7
        %v544 = vsub.s32 0, %v543
        %v545 = vrot.slane %v537, %v544
        %vm546 = vcmask 261120
        %v548 = vsel %vm546, %v541, 0
        %550 = vmatprep.subr.mxu0 0.0
        %551 = vmatpush1.msra.mxu0 %v497
        %552 = vmatprep.subr.mxu0 0.0
        %553 = vmatpush1.msra.mxu0 %v498
        %554 = vmatprep.subr.mxu0 0.0
        %555 = vmatpush1.msra.mxu0 %v499
        %556 = vmatprep.subr.mxu0 0.0
        %557 = vmatpush1.msra.mxu0 %v500
        %558 = vmatprep.subr.mxu0 0.0
        %559 = vmatpush1.msra.mxu0 0.0
        %560 = vmatprep.subr.mxu0 0.0
        %561 = vmatpush1.msra.mxu0 0.0
        %562 = vmatprep.subr.mxu0 0.0
        %563 = vmatpush1.msra.mxu0 0.0
        %564 = vmatprep.subr.mxu0 0.0
        %565 = vmatpush1.msra.mxu0 0.0
        %566 = vmatprep.subr.mxu0 0.0
        %567 = vmatpush1.msra.mxu0 0.0
        %568 = vmatprep.subr.mxu0 0.0
        %569 = vmatpush1.msra.mxu0 0.0
        %570 = vmatprep.subr.mxu0 0.0
        %571 = vmatpush1.msra.mxu0 0.0
        %572 = vmatprep.subr.mxu0 0.0
        %573 = vmatpush1.msra.mxu0 0.0
        %574 = vmatprep.subr.mxu0 0.0
        %575 = vmatpush1.msra.mxu0 0.0
        %576 = vmatprep.subr.mxu0 0.0
        %577 = vmatpush1.msra.mxu0 0.0
        %578 = vmatprep.subr.mxu0 0.0
        %579 = vmatpush1.msra.mxu0 0.0
        %580 = vmatprep.subr.mxu0 0.0
        %581 = vmatpush1.msra.mxu0 0.0
        %582 = vmatprep.subr.mxu0 0.0
        %583 = vmatpush1.msra.mxu0 0.0
        %584 = vmatprep.subr.mxu0 0.0
        %585 = vmatpush1.msra.mxu0 0.0
        %586 = vmatprep.subr.mxu0 0.0
        %587 = vmatpush1.msra.mxu0 0.0
        %588 = vmatprep.subr.mxu0 0.0
        %589 = vmatpush1.msra.mxu0 0.0
        %590 = vmatprep.subr.mxu0 0.0
        %591 = vmatpush1.msra.mxu0 0.0
        %592 = vmatprep.subr.mxu0 0.0
        %593 = vmatpush1.msra.mxu0 0.0
        %594 = vmatprep.subr.mxu0 0.0
        %595 = vmatpush1.msra.mxu0 0.0
        %596 = vmatprep.subr.mxu0 0.0
        %597 = vmatpush1.msra.mxu0 0.0
        %598 = vmatprep.subr.mxu0 0.0
        %599 = vmatpush1.msra.mxu0 0.0
        %600 = vmatprep.subr.mxu0 0.0
        %601 = vmatpush1.msra.mxu0 0.0
        %602 = vmatprep.subr.mxu0 0.0
        %603 = vmatpush1.msra.mxu0 0.0
        %604 = vmatprep.subr.mxu0 0.0
        %605 = vmatpush1.msra.mxu0 0.0
        %606 = vmatprep.subr.mxu0 0.0
        %607 = vmatpush1.msra.mxu0 0.0
        %608 = vmatprep.subr.mxu0 0.0
        %609 = vmatpush1.msra.mxu0 0.0
        %610 = vmatprep.subr.mxu0 0.0
        %611 = vmatpush1.msra.mxu0 0.0
        %612 = vmatprep.subr.mxu0 0.0
        %613 = vmatpush1.msra.mxu0 0.0
        %614 = vmatprep.mubr.f32.mxu0 0.0
        %615 = vmatmul.mubr.f32.gmra.mrb[0].mxu0 %v548
        %v616 = vpop.f32.mrb[0].mxu0
        %v617 = vadd.f32 %v545, %v616
        %v618 = vpop.f32.mrb[0].mxu0
        %619 = vdwg.mxu0
        %v620 = vlaneseq
        %v621 = vshrl.u32 %v620, 7
        %v622 = vsub.s32 0, %v621
        %v623 = vrot.slane %v539, %v622
        %v625 = vsel %vm546, %v493, 0
        %627 = vmatprep.subr.mxu0 0.0
        %628 = vmatpush1.msra.mxu0 %v506
        %629 = vmatprep.subr.mxu0 0.0
        %630 = vmatpush1.msra.mxu0 %v507
        %631 = vmatprep.subr.mxu0 0.0
        %632 = vmatpush1.msra.mxu0 %v508
        %633 = vmatprep.subr.mxu0 0.0
        %634 = vmatpush1.msra.mxu0 %v509
        %635 = vmatprep.subr.mxu0 0.0
        %636 = vmatpush1.msra.mxu0 0.0
        %637 = vmatprep.subr.mxu0 0.0
        %638 = vmatpush1.msra.mxu0 0.0
        %639 = vmatprep.subr.mxu0 0.0
        %640 = vmatpush1.msra.mxu0 0.0
        %641 = vmatprep.subr.mxu0 0.0
        %642 = vmatpush1.msra.mxu0 0.0
        %643 = vmatprep.subr.mxu0 0.0
        %644 = vmatpush1.msra.mxu0 0.0
        %645 = vmatprep.subr.mxu0 0.0
        %646 = vmatpush1.msra.mxu0 0.0
        %647 = vmatprep.subr.mxu0 0.0
        %648 = vmatpush1.msra.mxu0 0.0
        %649 = vmatprep.subr.mxu0 0.0
        %650 = vmatpush1.msra.mxu0 0.0
        %651 = vmatprep.subr.mxu0 0.0
        %652 = vmatpush1.msra.mxu0 0.0
        %653 = vmatprep.subr.mxu0 0.0
        %654 = vmatpush1.msra.mxu0 0.0
        %655 = vmatprep.subr.mxu0 0.0
        %656 = vmatpush1.msra.mxu0 0.0
        %657 = vmatprep.subr.mxu0 0.0
        %658 = vmatpush1.msra.mxu0 0.0
        %659 = vmatprep.subr.mxu0 0.0
        %660 = vmatpush1.msra.mxu0 0.0
        %661 = vmatprep.subr.mxu0 0.0
        %662 = vmatpush1.msra.mxu0 0.0
        %663 = vmatprep.subr.mxu0 0.0
        %664 = vmatpush1.msra.mxu0 0.0
        %665 = vmatprep.subr.mxu0 0.0
        %666 = vmatpush1.msra.mxu0 0.0
        %667 = vmatprep.subr.mxu0 0.0
        %668 = vmatpush1.msra.mxu0 0.0
        %669 = vmatprep.subr.mxu0 0.0
        %670 = vmatpush1.msra.mxu0 0.0
        %671 = vmatprep.subr.mxu0 0.0
        %672 = vmatpush1.msra.mxu0 0.0
        %673 = vmatprep.subr.mxu0 0.0
        %674 = vmatpush1.msra.mxu0 0.0
        %675 = vmatprep.subr.mxu0 0.0
        %676 = vmatpush1.msra.mxu0 0.0
        %677 = vmatprep.subr.mxu0 0.0
        %678 = vmatpush1.msra.mxu0 0.0
        %679 = vmatprep.subr.mxu0 0.0
        %680 = vmatpush1.msra.mxu0 0.0
        %681 = vmatprep.subr.mxu0 0.0
        %682 = vmatpush1.msra.mxu0 0.0
        %683 = vmatprep.subr.mxu0 0.0
        %684 = vmatpush1.msra.mxu0 0.0
        %685 = vmatprep.subr.mxu0 0.0
        %686 = vmatpush1.msra.mxu0 0.0
        %687 = vmatprep.subr.mxu0 0.0
        %688 = vmatpush1.msra.mxu0 0.0
        %689 = vmatprep.subr.mxu0 0.0
        %690 = vmatpush1.msra.mxu0 0.0
        %691 = vmatprep.mubr.f32.mxu0 0.0
        %692 = vmatmul.mubr.f32.gmra.mrb[0].mxu0 %v625
        %v693 = vpop.f32.mrb[0].mxu0
        %v694 = vadd.f32 %v623, %v693
        %v695 = vpop.f32.mrb[0].mxu0
        %696 = vdwg.mxu0
        %698 = vrot.lane.b32.xlu0 %v617, 96
        %v699 = vpop.permute.xlu0 %698
        %vm700 = vcmask 64512
        %v701 = vsel %vm700, %v617, 0
        %v703 = vsel %vm700, %v699, 0
        %705 = vmatprep.subr.mxu0 0.0
        %706 = vmatpush1.xpose.msra.mxu0 %v703
        %707 = vmatprep.subr.mxu0 0.0
        %708 = vmatpush1.xpose.msra.mxu0 0.0
        %709 = vmatprep.subr.mxu0 0.0
        %710 = vmatpush1.xpose.msra.mxu0 0.0
        %711 = vmatprep.subr.mxu0 0.0
        %712 = vmatpush1.xpose.msra.mxu0 0.0
        %713 = vmatprep.subr.mxu0 0.0
        %714 = vmatpush1.xpose.msra.mxu0 0.0
        %715 = vmatprep.subr.mxu0 0.0
        %716 = vmatpush1.xpose.msra.mxu0 0.0
        %717 = vmatprep.subr.mxu0 0.0
        %718 = vmatpush1.xpose.msra.mxu0 0.0
        %719 = vmatprep.subr.mxu0 0.0
        %720 = vmatpush1.xpose.msra.mxu0 0.0
        %721 = vmatprep.subr.mxu0 0.0
        %722 = vmatpush1.xpose.msra.mxu0 0.0
        %723 = vmatprep.subr.mxu0 0.0
        %724 = vmatpush1.xpose.msra.mxu0 0.0
        %725 = vmatprep.subr.mxu0 0.0
        %726 = vmatpush1.xpose.msra.mxu0 0.0
        %727 = vmatprep.subr.mxu0 0.0
        %728 = vmatpush1.xpose.msra.mxu0 0.0
        %729 = vmatprep.subr.mxu0 0.0
        %730 = vmatpush1.xpose.msra.mxu0 0.0
        %731 = vmatprep.subr.mxu0 0.0
        %732 = vmatpush1.xpose.msra.mxu0 0.0
        %733 = vmatprep.subr.mxu0 0.0
        %734 = vmatpush1.xpose.msra.mxu0 0.0
        %735 = vmatprep.subr.mxu0 0.0
        %736 = vmatpush1.xpose.msra.mxu0 0.0
        %737 = vmatprep.subr.mxu0 0.0
        %738 = vmatpush1.xpose.msra.mxu0 0.0
        %739 = vmatprep.subr.mxu0 0.0
        %740 = vmatpush1.xpose.msra.mxu0 0.0
        %741 = vmatprep.subr.mxu0 0.0
        %742 = vmatpush1.xpose.msra.mxu0 0.0
        %743 = vmatprep.subr.mxu0 0.0
        %744 = vmatpush1.xpose.msra.mxu0 0.0
        %745 = vmatprep.subr.mxu0 0.0
        %746 = vmatpush1.xpose.msra.mxu0 0.0
        %747 = vmatprep.subr.mxu0 0.0
        %748 = vmatpush1.xpose.msra.mxu0 0.0
        %749 = vmatprep.subr.mxu0 0.0
        %750 = vmatpush1.xpose.msra.mxu0 0.0
        %751 = vmatprep.subr.mxu0 0.0
        %752 = vmatpush1.xpose.msra.mxu0 0.0
        %753 = vmatprep.subr.mxu0 0.0
        %754 = vmatpush1.xpose.msra.mxu0 0.0
        %755 = vmatprep.subr.mxu0 0.0
        %756 = vmatpush1.xpose.msra.mxu0 0.0
        %757 = vmatprep.subr.mxu0 0.0
        %758 = vmatpush1.xpose.msra.mxu0 0.0
        %759 = vmatprep.subr.mxu0 0.0
        %760 = vmatpush1.xpose.msra.mxu0 0.0
        %761 = vmatprep.subr.mxu0 0.0
        %762 = vmatpush1.xpose.msra.mxu0 0.0
        %763 = vmatprep.subr.mxu0 0.0
        %764 = vmatpush1.xpose.msra.mxu0 0.0
        %765 = vmatprep.subr.mxu0 0.0
        %766 = vmatpush1.xpose.msra.mxu0 0.0
        %767 = vmatprep.subr.mxu0 0.0
        %768 = vmatpush1.xpose.msra.mxu0 0.0
        %769 = vmatprep.mubr.f32.mxu0 0.0
        %770 = vmatmul.mubr.f32.gmra.mrb[0].mxu0 %v701
        %v771 = vpop.f32.mrb[0].mxu0
        %v772 = vadd.f32 0.0, %v771
        %v773 = vpop.f32.mrb[0].mxu0
        %774 = vdwg.mxu0
        %775 = vrot.lane.b32.xlu0 %v617, 120
        %v776 = vpop.permute.xlu0 %775
        %777 = vrot.lane.b32.xlu0 %v617, 88
        %v778 = vpop.permute.xlu0 %777
        %v779 = vsel %vm700, %v776, 0
        %v781 = vsel %vm700, %v778, 0
        %783 = vmatprep.subr.mxu0 0.0
        %784 = vmatpush1.xpose.msra.mxu0 %v781
        %785 = vmatprep.subr.mxu0 0.0
        %786 = vmatpush1.xpose.msra.mxu0 0.0
        %787 = vmatprep.subr.mxu0 0.0
        %788 = vmatpush1.xpose.msra.mxu0 0.0
        %789 = vmatprep.subr.mxu0 0.0
        %790 = vmatpush1.xpose.msra.mxu0 0.0
        %791 = vmatprep.subr.mxu0 0.0
        %792 = vmatpush1.xpose.msra.mxu0 0.0
        %793 = vmatprep.subr.mxu0 0.0
        %794 = vmatpush1.xpose.msra.mxu0 0.0
        %795 = vmatprep.subr.mxu0 0.0
        %796 = vmatpush1.xpose.msra.mxu0 0.0
        %797 = vmatprep.subr.mxu0 0.0
        %798 = vmatpush1.xpose.msra.mxu0 0.0
        %799 = vmatprep.subr.mxu0 0.0
        %800 = vmatpush1.xpose.msra.mxu0 0.0
        %801 = vmatprep.subr.mxu0 0.0
        %802 = vmatpush1.xpose.msra.mxu0 0.0
        %803 = vmatprep.subr.mxu0 0.0
        %804 = vmatpush1.xpose.msra.mxu0 0.0
        %805 = vmatprep.subr.mxu0 0.0
        %806 = vmatpush1.xpose.msra.mxu0 0.0
        %807 = vmatprep.subr.mxu0 0.0
        %808 = vmatpush1.xpose.msra.mxu0 0.0
        %809 = vmatprep.subr.mxu0 0.0
        %810 = vmatpush1.xpose.msra.mxu0 0.0
        %811 = vmatprep.subr.mxu0 0.0
        %812 = vmatpush1.xpose.msra.mxu0 0.0
        %813 = vmatprep.subr.mxu0 0.0
        %814 = vmatpush1.xpose.msra.mxu0 0.0
        %815 = vmatprep.subr.mxu0 0.0
        %816 = vmatpush1.xpose.msra.mxu0 0.0
        %817 = vmatprep.subr.mxu0 0.0
        %818 = vmatpush1.xpose.msra.mxu0 0.0
        %819 = vmatprep.subr.mxu0 0.0
        %820 = vmatpush1.xpose.msra.mxu0 0.0
        %821 = vmatprep.subr.mxu0 0.0
        %822 = vmatpush1.xpose.msra.mxu0 0.0
        %823 = vmatprep.subr.mxu0 0.0
        %824 = vmatpush1.xpose.msra.mxu0 0.0
        %825 = vmatprep.subr.mxu0 0.0
        %826 = vmatpush1.xpose.msra.mxu0 0.0
        %827 = vmatprep.subr.mxu0 0.0
        %828 = vmatpush1.xpose.msra.mxu0 0.0
        %829 = vmatprep.subr.mxu0 0.0
        %830 = vmatpush1.xpose.msra.mxu0 0.0
        %831 = vmatprep.subr.mxu0 0.0
        %832 = vmatpush1.xpose.msra.mxu0 0.0
        %833 = vmatprep.subr.mxu0 0.0
        %834 = vmatpush1.xpose.msra.mxu0 0.0
        %835 = vmatprep.subr.mxu0 0.0
        %836 = vmatpush1.xpose.msra.mxu0 0.0
        %837 = vmatprep.subr.mxu0 0.0
        %838 = vmatpush1.xpose.msra.mxu0 0.0
        %839 = vmatprep.subr.mxu0 0.0
        %840 = vmatpush1.xpose.msra.mxu0 0.0
        %841 = vmatprep.subr.mxu0 0.0
        %842 = vmatpush1.xpose.msra.mxu0 0.0
        %843 = vmatprep.subr.mxu0 0.0
        %844 = vmatpush1.xpose.msra.mxu0 0.0
        %845 = vmatprep.subr.mxu0 0.0
        %846 = vmatpush1.xpose.msra.mxu0 0.0
        %847 = vmatprep.mubr.f32.mxu0 0.0
        %848 = vmatmul.mubr.f32.gmra.mrb[0].mxu0 %v779
        %v849 = vpop.f32.mrb[0].mxu0
        %v850 = vadd.f32 0.0, %v849
        %v851 = vpop.f32.mrb[0].mxu0
        %852 = vdwg.mxu0
        %853 = vrot.lane.b32.xlu0 %v617, 112
        %v854 = vpop.permute.xlu0 %853
        %855 = vrot.lane.b32.xlu0 %v617, 80
        %v856 = vpop.permute.xlu0 %855
        %v857 = vsel %vm700, %v854, 0
        %v859 = vsel %vm700, %v856, 0
        %861 = vmatprep.subr.mxu0 0.0
        %862 = vmatpush1.xpose.msra.mxu0 %v859
        %863 = vmatprep.subr.mxu0 0.0
        %864 = vmatpush1.xpose.msra.mxu0 0.0
        %865 = vmatprep.subr.mxu0 0.0
        %866 = vmatpush1.xpose.msra.mxu0 0.0
        %867 = vmatprep.subr.mxu0 0.0
        %868 = vmatpush1.xpose.msra.mxu0 0.0
        %869 = vmatprep.subr.mxu0 0.0
        %870 = vmatpush1.xpose.msra.mxu0 0.0
        %871 = vmatprep.subr.mxu0 0.0
        %872 = vmatpush1.xpose.msra.mxu0 0.0
        %873 = vmatprep.subr.mxu0 0.0
        %874 = vmatpush1.xpose.msra.mxu0 0.0
        %875 = vmatprep.subr.mxu0 0.0
        %876 = vmatpush1.xpose.msra.mxu0 0.0
        %877 = vmatprep.subr.mxu0 0.0
        %878 = vmatpush1.xpose.msra.mxu0 0.0
        %879 = vmatprep.subr.mxu0 0.0
        %880 = vmatpush1.xpose.msra.mxu0 0.0
        %881 = vmatprep.subr.mxu0 0.0
        %882 = vmatpush1.xpose.msra.mxu0 0.0
        %883 = vmatprep.subr.mxu0 0.0
        %884 = vmatpush1.xpose.msra.mxu0 0.0
        %885 = vmatprep.subr.mxu0 0.0
        %886 = vmatpush1.xpose.msra.mxu0 0.0
        %887 = vmatprep.subr.mxu0 0.0
        %888 = vmatpush1.xpose.msra.mxu0 0.0
        %889 = vmatprep.subr.mxu0 0.0
        %890 = vmatpush1.xpose.msra.mxu0 0.0
        %891 = vmatprep.subr.mxu0 0.0
        %892 = vmatpush1.xpose.msra.mxu0 0.0
        %893 = vmatprep.subr.mxu0 0.0
        %894 = vmatpush1.xpose.msra.mxu0 0.0
        %895 = vmatprep.subr.mxu0 0.0
        %896 = vmatpush1.xpose.msra.mxu0 0.0
        %897 = vmatprep.subr.mxu0 0.0
        %898 = vmatpush1.xpose.msra.mxu0 0.0
        %899 = vmatprep.subr.mxu0 0.0
        %900 = vmatpush1.xpose.msra.mxu0 0.0
        %901 = vmatprep.subr.mxu0 0.0
        %902 = vmatpush1.xpose.msra.mxu0 0.0
        %903 = vmatprep.subr.mxu0 0.0
        %904 = vmatpush1.xpose.msra.mxu0 0.0
        %905 = vmatprep.subr.mxu0 0.0
        %906 = vmatpush1.xpose.msra.mxu0 0.0
        %907 = vmatprep.subr.mxu0 0.0
        %908 = vmatpush1.xpose.msra.mxu0 0.0
        %909 = vmatprep.subr.mxu0 0.0
        %910 = vmatpush1.xpose.msra.mxu0 0.0
        %911 = vmatprep.subr.mxu0 0.0
        %912 = vmatpush1.xpose.msra.mxu0 0.0
        %913 = vmatprep.subr.mxu0 0.0
        %914 = vmatpush1.xpose.msra.mxu0 0.0
        %915 = vmatprep.subr.mxu0 0.0
        %916 = vmatpush1.xpose.msra.mxu0 0.0
        %917 = vmatprep.subr.mxu0 0.0
        %918 = vmatpush1.xpose.msra.mxu0 0.0
        %919 = vmatprep.subr.mxu0 0.0
        %920 = vmatpush1.xpose.msra.mxu0 0.0
        %921 = vmatprep.subr.mxu0 0.0
        %922 = vmatpush1.xpose.msra.mxu0 0.0
        %923 = vmatprep.subr.mxu0 0.0
        %924 = vmatpush1.xpose.msra.mxu0 0.0
        %925 = vmatprep.mubr.f32.mxu0 0.0
        %926 = vmatmul.mubr.f32.gmra.mrb[0].mxu0 %v857
        %v927 = vpop.f32.mrb[0].mxu0
        %v928 = vadd.f32 0.0, %v927
        %v929 = vpop.f32.mrb[0].mxu0
        %930 = vdwg.mxu0
        %931 = vrot.lane.b32.xlu0 %v617, 104
        %v932 = vpop.permute.xlu0 %931
        %933 = vrot.lane.b32.xlu0 %v617, 72
        %v934 = vpop.permute.xlu0 %933
        %v935 = vsel %vm700, %v932, 0
        %v937 = vsel %vm700, %v934, 0
        %939 = vmatprep.subr.mxu0 0.0
        %940 = vmatpush1.xpose.msra.mxu0 %v937
        %941 = vmatprep.subr.mxu0 0.0
        %942 = vmatpush1.xpose.msra.mxu0 0.0
        %943 = vmatprep.subr.mxu0 0.0
        %944 = vmatpush1.xpose.msra.mxu0 0.0
        %945 = vmatprep.subr.mxu0 0.0
        %946 = vmatpush1.xpose.msra.mxu0 0.0
        %947 = vmatprep.subr.mxu0 0.0
        %948 = vmatpush1.xpose.msra.mxu0 0.0
        %949 = vmatprep.subr.mxu0 0.0
        %950 = vmatpush1.xpose.msra.mxu0 0.0
        %951 = vmatprep.subr.mxu0 0.0
        %952 = vmatpush1.xpose.msra.mxu0 0.0
        %953 = vmatprep.subr.mxu0 0.0
        %954 = vmatpush1.xpose.msra.mxu0 0.0
        %955 = vmatprep.subr.mxu0 0.0
        %956 = vmatpush1.xpose.msra.mxu0 0.0
        %957 = vmatprep.subr.mxu0 0.0
        %958 = vmatpush1.xpose.msra.mxu0 0.0
        %959 = vmatprep.subr.mxu0 0.0
        %960 = vmatpush1.xpose.msra.mxu0 0.0
        %961 = vmatprep.subr.mxu0 0.0
        %962 = vmatpush1.xpose.msra.mxu0 0.0
        %963 = vmatprep.subr.mxu0 0.0
        %964 = vmatpush1.xpose.msra.mxu0 0.0
        %965 = vmatprep.subr.mxu0 0.0
        %966 = vmatpush1.xpose.msra.mxu0 0.0
        %967 = vmatprep.subr.mxu0 0.0
        %968 = vmatpush1.xpose.msra.mxu0 0.0
        %969 = vmatprep.subr.mxu0 0.0
        %970 = vmatpush1.xpose.msra.mxu0 0.0
        %971 = vmatprep.subr.mxu0 0.0
        %972 = vmatpush1.xpose.msra.mxu0 0.0
        %973 = vmatprep.subr.mxu0 0.0
        %974 = vmatpush1.xpose.msra.mxu0 0.0
        %975 = vmatprep.subr.mxu0 0.0
        %976 = vmatpush1.xpose.msra.mxu0 0.0
        %977 = vmatprep.subr.mxu0 0.0
        %978 = vmatpush1.xpose.msra.mxu0 0.0
        %979 = vmatprep.subr.mxu0 0.0
        %980 = vmatpush1.xpose.msra.mxu0 0.0
        %981 = vmatprep.subr.mxu0 0.0
        %982 = vmatpush1.xpose.msra.mxu0 0.0
        %983 = vmatprep.subr.mxu0 0.0
        %984 = vmatpush1.xpose.msra.mxu0 0.0
        %985 = vmatprep.subr.mxu0 0.0
        %986 = vmatpush1.xpose.msra.mxu0 0.0
        %987 = vmatprep.subr.mxu0 0.0
        %988 = vmatpush1.xpose.msra.mxu0 0.0
        %989 = vmatprep.subr.mxu0 0.0
        %990 = vmatpush1.xpose.msra.mxu0 0.0
        %991 = vmatprep.subr.mxu0 0.0
        %992 = vmatpush1.xpose.msra.mxu0 0.0
        %993 = vmatprep.subr.mxu0 0.0
        %994 = vmatpush1.xpose.msra.mxu0 0.0
        %995 = vmatprep.subr.mxu0 0.0
        %996 = vmatpush1.xpose.msra.mxu0 0.0
        %997 = vmatprep.subr.mxu0 0.0
        %998 = vmatpush1.xpose.msra.mxu0 0.0
        %999 = vmatprep.subr.mxu0 0.0
        %1000 = vmatpush1.xpose.msra.mxu0 0.0
        %1001 = vmatprep.subr.mxu0 0.0
        %1002 = vmatpush1.xpose.msra.mxu0 0.0
        %1003 = vmatprep.mubr.f32.mxu0 0.0
        %1004 = vmatmul.mubr.f32.gmra.mrb[0].mxu0 %v935
        %v1005 = vpop.f32.mrb[0].mxu0
        %v1006 = vadd.f32 0.0, %v1005
        %v1007 = vpop.f32.mrb[0].mxu0
        %1008 = vdwg.mxu0
        %v1009 = vmul.f32 %v772, 0.35355338
        %v1010 = vmul.f32 %v850, 0.35355338
        %v1011 = vmul.f32 %v928, 0.35355338
        %v1012 = vmul.f32 %v1006, 0.35355338
        %v1013 = vsel %vm700, %v1009, -inf
        %1014 = vmax.xlane.f32.xlu0 %v1013
        %v1015 = vpop.xlane.xlu0 %1014
        %v1016 = vsel %vm700, %v1010, -inf
        %1017 = vmax.xlane.f32.xlu0 %v1016
        %v1018 = vpop.xlane.xlu0 %1017
        %v1019 = vsel %vm700, %v1011, -inf
        %1020 = vmax.xlane.f32.xlu0 %v1019
        %v1021 = vpop.xlane.xlu0 %1020
        %v1022 = vsel %vm700, %v1012, -inf
        %1023 = vmax.xlane.f32.xlu0 %v1022
        %v1024 = vpop.xlane.xlu0 %1023
        %v1025 = vsub.f32 %v1009, %v1015
        %v1026 = vsub.f32 %v1010, %v1018
        %v1027 = vsub.f32 %v1011, %v1021
        %v1028 = vsub.f32 %v1012, %v1024
        %v1029 = vmul.f32 %v1025, 1.442695
        %v1030 = vpow.pop %v1029
        %v1031 = vmul.f32 %v1026, 1.442695
        %v1032 = vpow.pop %v1031
        %v1033 = vmul.f32 %v1027, 1.442695
        %v1034 = vpow.pop %v1033
        %v1035 = vmul.f32 %v1028, 1.442695
        %v1036 = vpow.pop %v1035
        %v1037 = vsel %vm700, %v1030, 0.0
        %1038 = vadd.xlane.f32.xlu0 %v1037
        %v1039 = vpop.xlane.xlu0 %1038
        %v1040 = vsel %vm700, %v1032, 0.0
        %1041 = vadd.xlane.f32.xlu0 %v1040
        %v1042 = vpop.xlane.xlu0 %1041
        %v1043 = vsel %vm700, %v1034, 0.0
        %1044 = vadd.xlane.f32.xlu0 %v1043
        %v1045 = vpop.xlane.xlu0 %1044
        %v1046 = vsel %vm700, %v1036, 0.0
        %1047 = vadd.xlane.f32.xlu0 %v1046
        %v1048 = vpop.xlane.xlu0 %1047
        %v1049 = vrcp.pop %v1039
        %v1050 = vrcp.pop %v1042
        %v1051 = vrcp.pop %v1045
        %v1052 = vrcp.pop %v1048
        %v1053 = vmul.f32 %v1030, %v1049
        %v1054 = vmul.f32 %v1032, %v1050
        %v1055 = vmul.f32 %v1034, %v1051
        %v1056 = vmul.f32 %v1036, %v1052
        %v1058 = vsel %vm700, %v1053, 0
        %1060 = vmatprep.subr.mxu0 0.0
        %1061 = vmatpush1.msra.mxu0 %v694
        %1062 = vmatprep.subr.mxu0 0.0
        %1063 = vmatpush1.msra.mxu0 0.0
        %1064 = vmatprep.subr.mxu0 0.0
        %1065 = vmatpush1.msra.mxu0 0.0
        %1066 = vmatprep.subr.mxu0 0.0
        %1067 = vmatpush1.msra.mxu0 0.0
        %1068 = vmatprep.subr.mxu0 0.0
        %1069 = vmatpush1.msra.mxu0 0.0
        %1070 = vmatprep.subr.mxu0 0.0
        %1071 = vmatpush1.msra.mxu0 0.0
        %1072 = vmatprep.subr.mxu0 0.0
        %1073 = vmatpush1.msra.mxu0 0.0
        %1074 = vmatprep.subr.mxu0 0.0
        %1075 = vmatpush1.msra.mxu0 0.0
        %1076 = vmatprep.subr.mxu0 0.0
        %1077 = vmatpush1.msra.mxu0 0.0
        %1078 = vmatprep.subr.mxu0 0.0
        %1079 = vmatpush1.msra.mxu0 0.0
        %1080 = vmatprep.subr.mxu0 0.0
        %1081 = vmatpush1.msra.mxu0 0.0
        %1082 = vmatprep.subr.mxu0 0.0
        %1083 = vmatpush1.msra.mxu0 0.0
        %1084 = vmatprep.subr.mxu0 0.0
        %1085 = vmatpush1.msra.mxu0 0.0
        %1086 = vmatprep.subr.mxu0 0.0
        %1087 = vmatpush1.msra.mxu0 0.0
        %1088 = vmatprep.subr.mxu0 0.0
        %1089 = vmatpush1.msra.mxu0 0.0
        %1090 = vmatprep.subr.mxu0 0.0
        %1091 = vmatpush1.msra.mxu0 0.0
        %1092 = vmatprep.subr.mxu0 0.0
        %1093 = vmatpush1.msra.mxu0 0.0
        %1094 = vmatprep.subr.mxu0 0.0
        %1095 = vmatpush1.msra.mxu0 0.0
        %1096 = vmatprep.subr.mxu0 0.0
        %1097 = vmatpush1.msra.mxu0 0.0
        %1098 = vmatprep.subr.mxu0 0.0
        %1099 = vmatpush1.msra.mxu0 0.0
        %1100 = vmatprep.subr.mxu0 0.0
        %1101 = vmatpush1.msra.mxu0 0.0
        %1102 = vmatprep.subr.mxu0 0.0
        %1103 = vmatpush1.msra.mxu0 0.0
        %1104 = vmatprep.subr.mxu0 0.0
        %1105 = vmatpush1.msra.mxu0 0.0
        %1106 = vmatprep.subr.mxu0 0.0
        %1107 = vmatpush1.msra.mxu0 0.0
        %1108 = vmatprep.subr.mxu0 0.0
        %1109 = vmatpush1.msra.mxu0 0.0
        %1110 = vmatprep.subr.mxu0 0.0
        %1111 = vmatpush1.msra.mxu0 0.0
        %1112 = vmatprep.subr.mxu0 0.0
        %1113 = vmatpush1.msra.mxu0 0.0
        %1114 = vmatprep.subr.mxu0 0.0
        %1115 = vmatpush1.msra.mxu0 0.0
        %1116 = vmatprep.subr.mxu0 0.0
        %1117 = vmatpush1.msra.mxu0 0.0
        %1118 = vmatprep.subr.mxu0 0.0
        %1119 = vmatpush1.msra.mxu0 0.0
        %1120 = vmatprep.subr.mxu0 0.0
        %1121 = vmatpush1.msra.mxu0 0.0
        %1122 = vmatprep.subr.mxu0 0.0
        %1123 = vmatpush1.msra.mxu0 0.0
        %1124 = vmatprep.mubr.f32.mxu0 0.0
        %1125 = vmatmul.mubr.f32.gmra.mrb[0].mxu0 %v1058
        %v1126 = vpop.f32.mrb[0].mxu0
        %v1127 = vadd.f32 0.0, %v1126
        %v1128 = vpop.f32.mrb[0].mxu0
        %1129 = vdwg.mxu0
        %1131 = vrot.lane.b32.xlu0 %v694, 120
        %v1132 = vpop.permute.xlu0 %1131
        %v1135 = vsel %vm700, %v1054, 0
        %1137 = vmatprep.subr.mxu0 0.0
        %1138 = vmatpush1.msra.mxu0 %v1132
        %1139 = vmatprep.subr.mxu0 0.0
        %1140 = vmatpush1.msra.mxu0 0.0
        %1141 = vmatprep.subr.mxu0 0.0
        %1142 = vmatpush1.msra.mxu0 0.0
        %1143 = vmatprep.subr.mxu0 0.0
        %1144 = vmatpush1.msra.mxu0 0.0
        %1145 = vmatprep.subr.mxu0 0.0
        %1146 = vmatpush1.msra.mxu0 0.0
        %1147 = vmatprep.subr.mxu0 0.0
        %1148 = vmatpush1.msra.mxu0 0.0
        %1149 = vmatprep.subr.mxu0 0.0
        %1150 = vmatpush1.msra.mxu0 0.0
        %1151 = vmatprep.subr.mxu0 0.0
        %1152 = vmatpush1.msra.mxu0 0.0
        %1153 = vmatprep.subr.mxu0 0.0
        %1154 = vmatpush1.msra.mxu0 0.0
        %1155 = vmatprep.subr.mxu0 0.0
        %1156 = vmatpush1.msra.mxu0 0.0
        %1157 = vmatprep.subr.mxu0 0.0
        %1158 = vmatpush1.msra.mxu0 0.0
        %1159 = vmatprep.subr.mxu0 0.0
        %1160 = vmatpush1.msra.mxu0 0.0
        %1161 = vmatprep.subr.mxu0 0.0
        %1162 = vmatpush1.msra.mxu0 0.0
        %1163 = vmatprep.subr.mxu0 0.0
        %1164 = vmatpush1.msra.mxu0 0.0
        %1165 = vmatprep.subr.mxu0 0.0
        %1166 = vmatpush1.msra.mxu0 0.0
        %1167 = vmatprep.subr.mxu0 0.0
        %1168 = vmatpush1.msra.mxu0 0.0
        %1169 = vmatprep.subr.mxu0 0.0
        %1170 = vmatpush1.msra.mxu0 0.0
        %1171 = vmatprep.subr.mxu0 0.0
        %1172 = vmatpush1.msra.mxu0 0.0
        %1173 = vmatprep.subr.mxu0 0.0
        %1174 = vmatpush1.msra.mxu0 0.0
        %1175 = vmatprep.subr.mxu0 0.0
        %1176 = vmatpush1.msra.mxu0 0.0
        %1177 = vmatprep.subr.mxu0 0.0
        %1178 = vmatpush1.msra.mxu0 0.0
        %1179 = vmatprep.subr.mxu0 0.0
        %1180 = vmatpush1.msra.mxu0 0.0
        %1181 = vmatprep.subr.mxu0 0.0
        %1182 = vmatpush1.msra.mxu0 0.0
        %1183 = vmatprep.subr.mxu0 0.0
        %1184 = vmatpush1.msra.mxu0 0.0
        %1185 = vmatprep.subr.mxu0 0.0
        %1186 = vmatpush1.msra.mxu0 0.0
        %1187 = vmatprep.subr.mxu0 0.0
        %1188 = vmatpush1.msra.mxu0 0.0
        %1189 = vmatprep.subr.mxu0 0.0
        %1190 = vmatpush1.msra.mxu0 0.0
        %1191 = vmatprep.subr.mxu0 0.0
        %1192 = vmatpush1.msra.mxu0 0.0
        %1193 = vmatprep.subr.mxu0 0.0
        %1194 = vmatpush1.msra.mxu0 0.0
        %1195 = vmatprep.subr.mxu0 0.0
        %1196 = vmatpush1.msra.mxu0 0.0
        %1197 = vmatprep.subr.mxu0 0.0
        %1198 = vmatpush1.msra.mxu0 0.0
        %1199 = vmatprep.subr.mxu0 0.0
        %1200 = vmatpush1.msra.mxu0 0.0
        %1201 = vmatprep.mubr.f32.mxu0 0.0
        %1202 = vmatmul.mubr.f32.gmra.mrb[0].mxu0 %v1135
        %v1203 = vpop.f32.mrb[0].mxu0
        %v1204 = vadd.f32 0.0, %v1203
        %v1205 = vpop.f32.mrb[0].mxu0
        %1206 = vdwg.mxu0
        %1207 = vrot.lane.b32.xlu0 %v694, 112
        %v1208 = vpop.permute.xlu0 %1207
        %v1211 = vsel %vm700, %v1055, 0
        %1213 = vmatprep.subr.mxu0 0.0
        %1214 = vmatpush1.msra.mxu0 %v1208
        %1215 = vmatprep.subr.mxu0 0.0
        %1216 = vmatpush1.msra.mxu0 0.0
        %1217 = vmatprep.subr.mxu0 0.0
        %1218 = vmatpush1.msra.mxu0 0.0
        %1219 = vmatprep.subr.mxu0 0.0
        %1220 = vmatpush1.msra.mxu0 0.0
        %1221 = vmatprep.subr.mxu0 0.0
        %1222 = vmatpush1.msra.mxu0 0.0
        %1223 = vmatprep.subr.mxu0 0.0
        %1224 = vmatpush1.msra.mxu0 0.0
        %1225 = vmatprep.subr.mxu0 0.0
        %1226 = vmatpush1.msra.mxu0 0.0
        %1227 = vmatprep.subr.mxu0 0.0
        %1228 = vmatpush1.msra.mxu0 0.0
        %1229 = vmatprep.subr.mxu0 0.0
        %1230 = vmatpush1.msra.mxu0 0.0
        %1231 = vmatprep.subr.mxu0 0.0
        %1232 = vmatpush1.msra.mxu0 0.0
        %1233 = vmatprep.subr.mxu0 0.0
        %1234 = vmatpush1.msra.mxu0 0.0
        %1235 = vmatprep.subr.mxu0 0.0
        %1236 = vmatpush1.msra.mxu0 0.0
        %1237 = vmatprep.subr.mxu0 0.0
        %1238 = vmatpush1.msra.mxu0 0.0
        %1239 = vmatprep.subr.mxu0 0.0
        %1240 = vmatpush1.msra.mxu0 0.0
        %1241 = vmatprep.subr.mxu0 0.0
        %1242 = vmatpush1.msra.mxu0 0.0
        %1243 = vmatprep.subr.mxu0 0.0
        %1244 = vmatpush1.msra.mxu0 0.0
        %1245 = vmatprep.subr.mxu0 0.0
        %1246 = vmatpush1.msra.mxu0 0.0
        %1247 = vmatprep.subr.mxu0 0.0
        %1248 = vmatpush1.msra.mxu0 0.0
        %1249 = vmatprep.subr.mxu0 0.0
        %1250 = vmatpush1.msra.mxu0 0.0
        %1251 = vmatprep.subr.mxu0 0.0
        %1252 = vmatpush1.msra.mxu0 0.0
        %1253 = vmatprep.subr.mxu0 0.0
        %1254 = vmatpush1.msra.mxu0 0.0
        %1255 = vmatprep.subr.mxu0 0.0
        %1256 = vmatpush1.msra.mxu0 0.0
        %1257 = vmatprep.subr.mxu0 0.0
        %1258 = vmatpush1.msra.mxu0 0.0
        %1259 = vmatprep.subr.mxu0 0.0
        %1260 = vmatpush1.msra.mxu0 0.0
        %1261 = vmatprep.subr.mxu0 0.0
        %1262 = vmatpush1.msra.mxu0 0.0
        %1263 = vmatprep.subr.mxu0 0.0
        %1264 = vmatpush1.msra.mxu0 0.0
        %1265 = vmatprep.subr.mxu0 0.0
        %1266 = vmatpush1.msra.mxu0 0.0
        %1267 = vmatprep.subr.mxu0 0.0
        %1268 = vmatpush1.msra.mxu0 0.0
        %1269 = vmatprep.subr.mxu0 0.0
        %1270 = vmatpush1.msra.mxu0 0.0
        %1271 = vmatprep.subr.mxu0 0.0
        %1272 = vmatpush1.msra.mxu0 0.0
        %1273 = vmatprep.subr.mxu0 0.0
        %1274 = vmatpush1.msra.mxu0 0.0
        %1275 = vmatprep.subr.mxu0 0.0
        %1276 = vmatpush1.msra.mxu0 0.0
        %1277 = vmatprep.mubr.f32.mxu0 0.0
        %1278 = vmatmul.mubr.f32.gmra.mrb[0].mxu0 %v1211
        %v1279 = vpop.f32.mrb[0].mxu0
        %v1280 = vadd.f32 0.0, %v1279
        %v1281 = vpop.f32.mrb[0].mxu0
        %1282 = vdwg.mxu0
        %1283 = vrot.lane.b32.xlu0 %v694, 104
        %v1284 = vpop.permute.xlu0 %1283
        %v1287 = vsel %vm700, %v1056, 0
        %1289 = vmatprep.subr.mxu0 0.0
        %1290 = vmatpush1.msra.mxu0 %v1284
        %1291 = vmatprep.subr.mxu0 0.0
        %1292 = vmatpush1.msra.mxu0 0.0
        %1293 = vmatprep.subr.mxu0 0.0
        %1294 = vmatpush1.msra.mxu0 0.0
        %1295 = vmatprep.subr.mxu0 0.0
        %1296 = vmatpush1.msra.mxu0 0.0
        %1297 = vmatprep.subr.mxu0 0.0
        %1298 = vmatpush1.msra.mxu0 0.0
        %1299 = vmatprep.subr.mxu0 0.0
        %1300 = vmatpush1.msra.mxu0 0.0
        %1301 = vmatprep.subr.mxu0 0.0
        %1302 = vmatpush1.msra.mxu0 0.0
        %1303 = vmatprep.subr.mxu0 0.0
        %1304 = vmatpush1.msra.mxu0 0.0
        %1305 = vmatprep.subr.mxu0 0.0
        %1306 = vmatpush1.msra.mxu0 0.0
        %1307 = vmatprep.subr.mxu0 0.0
        %1308 = vmatpush1.msra.mxu0 0.0
        %1309 = vmatprep.subr.mxu0 0.0
        %1310 = vmatpush1.msra.mxu0 0.0
        %1311 = vmatprep.subr.mxu0 0.0
        %1312 = vmatpush1.msra.mxu0 0.0
        %1313 = vmatprep.subr.mxu0 0.0
        %1314 = vmatpush1.msra.mxu0 0.0
        %1315 = vmatprep.subr.mxu0 0.0
        %1316 = vmatpush1.msra.mxu0 0.0
        %1317 = vmatprep.subr.mxu0 0.0
        %1318 = vmatpush1.msra.mxu0 0.0
        %1319 = vmatprep.subr.mxu0 0.0
        %1320 = vmatpush1.msra.mxu0 0.0
        %1321 = vmatprep.subr.mxu0 0.0
        %1322 = vmatpush1.msra.mxu0 0.0
        %1323 = vmatprep.subr.mxu0 0.0
        %1324 = vmatpush1.msra.mxu0 0.0
        %1325 = vmatprep.subr.mxu0 0.0
        %1326 = vmatpush1.msra.mxu0 0.0
        %1327 = vmatprep.subr.mxu0 0.0
        %1328 = vmatpush1.msra.mxu0 0.0
        %1329 = vmatprep.subr.mxu0 0.0
        %1330 = vmatpush1.msra.mxu0 0.0
        %1331 = vmatprep.subr.mxu0 0.0
        %1332 = vmatpush1.msra.mxu0 0.0
        %1333 = vmatprep.subr.mxu0 0.0
        %1334 = vmatpush1.msra.mxu0 0.0
        %1335 = vmatprep.subr.mxu0 0.0
        %1336 = vmatpush1.msra.mxu0 0.0
        %1337 = vmatprep.subr.mxu0 0.0
        %1338 = vmatpush1.msra.mxu0 0.0
        %1339 = vmatprep.subr.mxu0 0.0
        %1340 = vmatpush1.msra.mxu0 0.0
        %1341 = vmatprep.subr.mxu0 0.0
        %1342 = vmatpush1.msra.mxu0 0.0
        %1343 = vmatprep.subr.mxu0 0.0
        %1344 = vmatpush1.msra.mxu0 0.0
        %1345 = vmatprep.subr.mxu0 0.0
        %1346 = vmatpush1.msra.mxu0 0.0
        %1347 = vmatprep.subr.mxu0 0.0
        %1348 = vmatpush1.msra.mxu0 0.0
        %1349 = vmatprep.subr.mxu0 0.0
        %1350 = vmatpush1.msra.mxu0 0.0
        %1351 = vmatprep.subr.mxu0 0.0
        %1352 = vmatpush1.msra.mxu0 0.0
        %1353 = vmatprep.mubr.f32.mxu0 0.0
        %1354 = vmatmul.mubr.f32.gmra.mrb[0].mxu0 %v1287
        %v1355 = vpop.f32.mrb[0].mxu0
        %v1356 = vadd.f32 0.0, %v1355
        %v1357 = vpop.f32.mrb[0].mxu0
        %1358 = vdwg.mxu0
        %1360 = vrot.lane.b32.xlu0 %v1204, 8
        %v1361 = vpop.permute.xlu0 %1360
        %1364 = vrot.lane.b32.xlu0 %v1280, 16
        %v1365 = vpop.permute.xlu0 %1364
        %1368 = vrot.lane.b32.xlu0 %v1356, 24
        %v1369 = vpop.permute.xlu0 %1368
        %v1371 = vsel %vm700, %v1127, %v1361
        %vm1372 = vcmask 130048
        %v1373 = vsel %vm1372, %v1371, %v1365
        %vm1374 = vcmask 195584
        %v1375 = vsel %vm1374, %v1373, %v1369
        %v1376 = vlaneseq
        %v1377 = vshrl.u32 %v1376, 7
        %v1378 = vsub.s32 1, %v1377
        %v1379 = vrot.slane %v539, %v1378
        %v1381 = vsel %vm546, %v1375, 0
        %1383 = vmatprep.subr.mxu0 0.0
        %1384 = vmatpush1.msra.mxu0 %v511
        %1385 = vmatprep.subr.mxu0 0.0
        %1386 = vmatpush1.msra.mxu0 %v512
        %1387 = vmatprep.subr.mxu0 0.0
        %1388 = vmatpush1.msra.mxu0 %v513
        %1389 = vmatprep.subr.mxu0 0.0
        %1390 = vmatpush1.msra.mxu0 %v514
        %1391 = vmatprep.subr.mxu0 0.0
        %1392 = vmatpush1.msra.mxu0 0.0
        %1393 = vmatprep.subr.mxu0 0.0
        %1394 = vmatpush1.msra.mxu0 0.0
        %1395 = vmatprep.subr.mxu0 0.0
        %1396 = vmatpush1.msra.mxu0 0.0
        %1397 = vmatprep.subr.mxu0 0.0
        %1398 = vmatpush1.msra.mxu0 0.0
        %1399 = vmatprep.subr.mxu0 0.0
        %1400 = vmatpush1.msra.mxu0 0.0
        %1401 = vmatprep.subr.mxu0 0.0
        %1402 = vmatpush1.msra.mxu0 0.0
        %1403 = vmatprep.subr.mxu0 0.0
        %1404 = vmatpush1.msra.mxu0 0.0
        %1405 = vmatprep.subr.mxu0 0.0
        %1406 = vmatpush1.msra.mxu0 0.0
        %1407 = vmatprep.subr.mxu0 0.0
        %1408 = vmatpush1.msra.mxu0 0.0
        %1409 = vmatprep.subr.mxu0 0.0
        %1410 = vmatpush1.msra.mxu0 0.0
        %1411 = vmatprep.subr.mxu0 0.0
        %1412 = vmatpush1.msra.mxu0 0.0
        %1413 = vmatprep.subr.mxu0 0.0
        %1414 = vmatpush1.msra.mxu0 0.0
        %1415 = vmatprep.subr.mxu0 0.0
        %1416 = vmatpush1.msra.mxu0 0.0
        %1417 = vmatprep.subr.mxu0 0.0
        %1418 = vmatpush1.msra.mxu0 0.0
        %1419 = vmatprep.subr.mxu0 0.0
        %1420 = vmatpush1.msra.mxu0 0.0
        %1421 = vmatprep.subr.mxu0 0.0
        %1422 = vmatpush1.msra.mxu0 0.0
        %1423 = vmatprep.subr.mxu0 0.0
        %1424 = vmatpush1.msra.mxu0 0.0
        %1425 = vmatprep.subr.mxu0 0.0
        %1426 = vmatpush1.msra.mxu0 0.0
        %1427 = vmatprep.subr.mxu0 0.0
        %1428 = vmatpush1.msra.mxu0 0.0
        %1429 = vmatprep.subr.mxu0 0.0
        %1430 = vmatpush1.msra.mxu0 0.0
        %1431 = vmatprep.subr.mxu0 0.0
        %1432 = vmatpush1.msra.mxu0 0.0
        %1433 = vmatprep.subr.mxu0 0.0
        %1434 = vmatpush1.msra.mxu0 0.0
        %1435 = vmatprep.subr.mxu0 0.0
        %1436 = vmatpush1.msra.mxu0 0.0
        %1437 = vmatprep.subr.mxu0 0.0
        %1438 = vmatpush1.msra.mxu0 0.0
        %1439 = vmatprep.subr.mxu0 0.0
        %1440 = vmatpush1.msra.mxu0 0.0
        %1441 = vmatprep.subr.mxu0 0.0
        %1442 = vmatpush1.msra.mxu0 0.0
        %1443 = vmatprep.subr.mxu0 0.0
        %1444 = vmatpush1.msra.mxu0 0.0
        %1445 = vmatprep.subr.mxu0 0.0
        %1446 = vmatpush1.msra.mxu0 0.0
        %1447 = vmatprep.mubr.f32.mxu0 0.0
        %1448 = vmatmul.mubr.f32.gmra.mrb[0].mxu0 %v1381
        %v1449 = vpop.f32.mrb[0].mxu0
        %v1450 = vadd.f32 %v1379, %v1449
        %v1451 = vpop.f32.mrb[0].mxu0
        %1452 = vdwg.mxu0
        %v1453 = vadd.f32 %v493, %v1450
        %v1454 = vsel %vm546, %v1453, 0.0
        %1455 = vadd.xlane.f32.xlu0 %v1454
        %v1456 = vpop.xlane.xlu0 %1455
        %v1457 = vrcp.pop 32.0
        %v1458 = vmul.f32 %v1456, %v1457
        %v1459 = vsub.f32 %v1453, %v1458
        %v1460 = vmul.f32 %v1459, %v1459
        %v1461 = vsel %vm546, %v1460, 0.0
        %1462 = vadd.xlane.f32.xlu0 %v1461
        %v1463 = vpop.xlane.xlu0 %1462
        %v1464 = vmul.f32 %v1463, %v1457
        %v1465 = vadd.f32 %v1464, 1e-05
        %v1466 = vrsqrt.pop %v1465
        %v1467 = vmul.f32 %v1459, %v1466
        %v1468 = vlaneseq
        %v1469 = vshrl.u32 %v1468, 7
        %v1470 = vsub.s32 5, %v1469
        %v1471 = vrot.slane %v539, %v1470
        %v1472 = vmul.f32 %v1467, %v1471
        %v1473 = vlaneseq
        %v1474 = vshrl.u32 %v1473, 7
        %v1475 = vsub.s32 6, %v1474
        %v1476 = vrot.slane %v539, %v1475
        %v1477 = vadd.f32 %v1472, %v1476
        %v1478 = vadd.f32 %v1477, %v494
        %v1479 = vlaneseq
        %v1480 = vshrl.u32 %v1479, 7
        %v1481 = vsub.s32 2, %v1480
        %v1482 = vrot.slane %v539, %v1481
        %v1484 = vsel %vm546, %v1478, 0
        %1486 = vmatprep.subr.mxu0 0.0
        %1487 = vmatpush1.msra.mxu0 %v516
        %1488 = vmatprep.subr.mxu0 0.0
        %1489 = vmatpush1.msra.mxu0 %v517
        %1490 = vmatprep.subr.mxu0 0.0
        %1491 = vmatpush1.msra.mxu0 %v518
        %1492 = vmatprep.subr.mxu0 0.0
        %1493 = vmatpush1.msra.mxu0 %v519
        %1494 = vmatprep.subr.mxu0 0.0
        %1495 = vmatpush1.msra.mxu0 0.0
        %1496 = vmatprep.subr.mxu0 0.0
        %1497 = vmatpush1.msra.mxu0 0.0
        %1498 = vmatprep.subr.mxu0 0.0
        %1499 = vmatpush1.msra.mxu0 0.0
        %1500 = vmatprep.subr.mxu0 0.0
        %1501 = vmatpush1.msra.mxu0 0.0
        %1502 = vmatprep.subr.mxu0 0.0
        %1503 = vmatpush1.msra.mxu0 0.0
        %1504 = vmatprep.subr.mxu0 0.0
        %1505 = vmatpush1.msra.mxu0 0.0
        %1506 = vmatprep.subr.mxu0 0.0
        %1507 = vmatpush1.msra.mxu0 0.0
        %1508 = vmatprep.subr.mxu0 0.0
        %1509 = vmatpush1.msra.mxu0 0.0
        %1510 = vmatprep.subr.mxu0 0.0
        %1511 = vmatpush1.msra.mxu0 0.0
        %1512 = vmatprep.subr.mxu0 0.0
        %1513 = vmatpush1.msra.mxu0 0.0
        %1514 = vmatprep.subr.mxu0 0.0
        %1515 = vmatpush1.msra.mxu0 0.0
        %1516 = vmatprep.subr.mxu0 0.0
        %1517 = vmatpush1.msra.mxu0 0.0
        %1518 = vmatprep.subr.mxu0 0.0
        %1519 = vmatpush1.msra.mxu0 0.0
        %1520 = vmatprep.subr.mxu0 0.0
        %1521 = vmatpush1.msra.mxu0 0.0
        %1522 = vmatprep.subr.mxu0 0.0
        %1523 = vmatpush1.msra.mxu0 0.0
        %1524 = vmatprep.subr.mxu0 0.0
        %1525 = vmatpush1.msra.mxu0 0.0
        %1526 = vmatprep.subr.mxu0 0.0
        %1527 = vmatpush1.msra.mxu0 0.0
        %1528 = vmatprep.subr.mxu0 0.0
        %1529 = vmatpush1.msra.mxu0 0.0
        %1530 = vmatprep.subr.mxu0 0.0
        %1531 = vmatpush1.msra.mxu0 0.0
        %1532 = vmatprep.subr.mxu0 0.0
        %1533 = vmatpush1.msra.mxu0 0.0
        %1534 = vmatprep.subr.mxu0 0.0
        %1535 = vmatpush1.msra.mxu0 0.0
        %1536 = vmatprep.subr.mxu0 0.0
        %1537 = vmatpush1.msra.mxu0 0.0
        %1538 = vmatprep.subr.mxu0 0.0
        %1539 = vmatpush1.msra.mxu0 0.0
        %1540 = vmatprep.subr.mxu0 0.0
        %1541 = vmatpush1.msra.mxu0 0.0
        %1542 = vmatprep.subr.mxu0 0.0
        %1543 = vmatpush1.msra.mxu0 0.0
        %1544 = vmatprep.subr.mxu0 0.0
        %1545 = vmatpush1.msra.mxu0 0.0
        %1546 = vmatprep.subr.mxu0 0.0
        %1547 = vmatpush1.msra.mxu0 0.0
        %1548 = vmatprep.subr.mxu0 0.0
        %1549 = vmatpush1.msra.mxu0 0.0
        %1550 = vmatprep.mubr.f32.mxu0 0.0
        %1551 = vmatmul.mubr.f32.gmra.mrb[0].mxu0 %v1484
        %v1552 = vpop.f32.mrb[0].mxu0
        %v1553 = vadd.f32 %v1482, %v1552
        %v1554 = vpop.f32.mrb[0].mxu0
        %1555 = vdwg.mxu0
        %v1556 = vlaneseq
        %v1557 = vshrl.u32 %v1556, 7
        %v1558 = vsub.s32 1, %v1557
        %v1559 = vrot.slane %v537, %v1558
        %v1561 = vsel %vm546, %v495, 0
        %v1564 = vsel %vm546, %v496, 0
        %1566 = vmatprep.subr.mxu0 0.0
        %1567 = vmatpush1.msra.mxu0 %v502
        %1568 = vmatprep.subr.mxu0 0.0
        %1569 = vmatpush1.msra.mxu0 %v503
        %1570 = vmatprep.subr.mxu0 0.0
        %1571 = vmatpush1.msra.mxu0 %v504
        %1572 = vmatprep.subr.mxu0 0.0
        %1573 = vmatpush1.msra.mxu0 %v505
        %1574 = vmatprep.subr.mxu0 0.0
        %1575 = vmatpush1.msra.mxu0 0.0
        %1576 = vmatprep.subr.mxu0 0.0
        %1577 = vmatpush1.msra.mxu0 0.0
        %1578 = vmatprep.subr.mxu0 0.0
        %1579 = vmatpush1.msra.mxu0 0.0
        %1580 = vmatprep.subr.mxu0 0.0
        %1581 = vmatpush1.msra.mxu0 0.0
        %1582 = vmatprep.subr.mxu0 0.0
        %1583 = vmatpush1.msra.mxu0 0.0
        %1584 = vmatprep.subr.mxu0 0.0
        %1585 = vmatpush1.msra.mxu0 0.0
        %1586 = vmatprep.subr.mxu0 0.0
        %1587 = vmatpush1.msra.mxu0 0.0
        %1588 = vmatprep.subr.mxu0 0.0
        %1589 = vmatpush1.msra.mxu0 0.0
        %1590 = vmatprep.subr.mxu0 0.0
        %1591 = vmatpush1.msra.mxu0 0.0
        %1592 = vmatprep.subr.mxu0 0.0
        %1593 = vmatpush1.msra.mxu0 0.0
        %1594 = vmatprep.subr.mxu0 0.0
        %1595 = vmatpush1.msra.mxu0 0.0
        %1596 = vmatprep.subr.mxu0 0.0
        %1597 = vmatpush1.msra.mxu0 0.0
        %1598 = vmatprep.subr.mxu0 0.0
        %1599 = vmatpush1.msra.mxu0 0.0
        %1600 = vmatprep.subr.mxu0 0.0
        %1601 = vmatpush1.msra.mxu0 0.0
        %1602 = vmatprep.subr.mxu0 0.0
        %1603 = vmatpush1.msra.mxu0 0.0
        %1604 = vmatprep.subr.mxu0 0.0
        %1605 = vmatpush1.msra.mxu0 0.0
        %1606 = vmatprep.subr.mxu0 0.0
        %1607 = vmatpush1.msra.mxu0 0.0
        %1608 = vmatprep.subr.mxu0 0.0
        %1609 = vmatpush1.msra.mxu0 0.0
        %1610 = vmatprep.subr.mxu0 0.0
        %1611 = vmatpush1.msra.mxu0 0.0
        %1612 = vmatprep.subr.mxu0 0.0
        %1613 = vmatpush1.msra.mxu0 0.0
        %1614 = vmatprep.subr.mxu0 0.0
        %1615 = vmatpush1.msra.mxu0 0.0
        %1616 = vmatprep.subr.mxu0 0.0
        %1617 = vmatpush1.msra.mxu0 0.0
        %1618 = vmatprep.subr.mxu0 0.0
        %1619 = vmatpush1.msra.mxu0 0.0
        %1620 = vmatprep.subr.mxu0 0.0
        %1621 = vmatpush1.msra.mxu0 0.0
        %1622 = vmatprep.subr.mxu0 0.0
        %1623 = vmatpush1.msra.mxu0 0.0
        %1624 = vmatprep.subr.mxu0 0.0
        %1625 = vmatpush1.msra.mxu0 0.0
        %1626 = vmatprep.subr.mxu0 0.0
        %1627 = vmatpush1.msra.mxu0 0.0
        %1628 = vmatprep.subr.mxu0 0.0
        %1629 = vmatpush1.msra.mxu0 0.0
        %1630 = vmatprep.mubr.f32.mxu0 0.0
        %1631 = vmatmul.mubr.f32.gmra.mrb[0].mxu0 %v1561
        %v1632 = vpop.f32.mrb[0].mxu0
        %v1633 = vadd.f32 %v1559, %v1632
        %v1634 = vpop.f32.mrb[0].mxu0
        %1635 = vmatprep.mubr.f32.mxu0 0.0
        %1636 = vmatmul.mubr.f32.gmra.mrb[0].mxu0 %v1564
        %v1637 = vpop.f32.mrb[0].mxu0
        %v1638 = vadd.f32 %v1559, %v1637
        %v1639 = vpop.f32.mrb[0].mxu0
        %1640 = vdwg.mxu0
        %v1642 = vsel %vm700, %v1553, 0
        %v1645 = vsel %vm700, %v1633, 0
        %v1648 = vsel %vm700, %v1638, 0
        %1650 = vmatprep.subr.mxu0 0.0
        %1651 = vmatpush1.xpose.msra.mxu0 %v1645
        %1652 = vmatprep.subr.mxu0 0.0
        %1653 = vmatpush1.xpose.msra.mxu0 %v1648
        %1654 = vmatprep.subr.mxu0 0.0
        %1655 = vmatpush1.xpose.msra.mxu0 0.0
        %1656 = vmatprep.subr.mxu0 0.0
        %1657 = vmatpush1.xpose.msra.mxu0 0.0
        %1658 = vmatprep.subr.mxu0 0.0
        %1659 = vmatpush1.xpose.msra.mxu0 0.0
        %1660 = vmatprep.subr.mxu0 0.0
        %1661 = vmatpush1.xpose.msra.mxu0 0.0
        %1662 = vmatprep.subr.mxu0 0.0
        %1663 = vmatpush1.xpose.msra.mxu0 0.0
        %1664 = vmatprep.subr.mxu0 0.0
        %1665 = vmatpush1.xpose.msra.mxu0 0.0
        %1666 = vmatprep.subr.mxu0 0.0
        %1667 = vmatpush1.xpose.msra.mxu0 0.0
        %1668 = vmatprep.subr.mxu0 0.0
        %1669 = vmatpush1.xpose.msra.mxu0 0.0
        %1670 = vmatprep.subr.mxu0 0.0
        %1671 = vmatpush1.xpose.msra.mxu0 0.0
        %1672 = vmatprep.subr.mxu0 0.0
        %1673 = vmatpush1.xpose.msra.mxu0 0.0
        %1674 = vmatprep.subr.mxu0 0.0
        %1675 = vmatpush1.xpose.msra.mxu0 0.0
        %1676 = vmatprep.subr.mxu0 0.0
        %1677 = vmatpush1.xpose.msra.mxu0 0.0
        %1678 = vmatprep.subr.mxu0 0.0
        %1679 = vmatpush1.xpose.msra.mxu0 0.0
        %1680 = vmatprep.subr.mxu0 0.0
        %1681 = vmatpush1.xpose.msra.mxu0 0.0
        %1682 = vmatprep.subr.mxu0 0.0
        %1683 = vmatpush1.xpose.msra.mxu0 0.0
        %1684 = vmatprep.subr.mxu0 0.0
        %1685 = vmatpush1.xpose.msra.mxu0 0.0
        %1686 = vmatprep.subr.mxu0 0.0
        %1687 = vmatpush1.xpose.msra.mxu0 0.0
        %1688 = vmatprep.subr.mxu0 0.0
        %1689 = vmatpush1.xpose.msra.mxu0 0.0
        %1690 = vmatprep.subr.mxu0 0.0
        %1691 = vmatpush1.xpose.msra.mxu0 0.0
        %1692 = vmatprep.subr.mxu0 0.0
        %1693 = vmatpush1.xpose.msra.mxu0 0.0
        %1694 = vmatprep.subr.mxu0 0.0
        %1695 = vmatpush1.xpose.msra.mxu0 0.0
        %1696 = vmatprep.subr.mxu0 0.0
        %1697 = vmatpush1.xpose.msra.mxu0 0.0
        %1698 = vmatprep.subr.mxu0 0.0
        %1699 = vmatpush1.xpose.msra.mxu0 0.0
        %1700 = vmatprep.subr.mxu0 0.0
        %1701 = vmatpush1.xpose.msra.mxu0 0.0
        %1702 = vmatprep.subr.mxu0 0.0
        %1703 = vmatpush1.xpose.msra.mxu0 0.0
        %1704 = vmatprep.subr.mxu0 0.0
        %1705 = vmatpush1.xpose.msra.mxu0 0.0
        %1706 = vmatprep.subr.mxu0 0.0
        %1707 = vmatpush1.xpose.msra.mxu0 0.0
        %1708 = vmatprep.subr.mxu0 0.0
        %1709 = vmatpush1.xpose.msra.mxu0 0.0
        %1710 = vmatprep.subr.mxu0 0.0
        %1711 = vmatpush1.xpose.msra.mxu0 0.0
        %1712 = vmatprep.subr.mxu0 0.0
        %1713 = vmatpush1.xpose.msra.mxu0 0.0
        %1714 = vmatprep.mubr.f32.mxu0 0.0
        %1715 = vmatmul.mubr.f32.gmra.mrb[0].mxu0 %v1642
        %v1716 = vpop.f32.mrb[0].mxu0
        %v1717 = vadd.f32 0.0, %v1716
        %v1718 = vpop.f32.mrb[0].mxu0
        %1719 = vdwg.mxu0
        %1720 = vrot.lane.b32.xlu0 %v1553, 120
        %v1721 = vpop.permute.xlu0 %1720
        %1722 = vrot.lane.b32.xlu0 %v1633, 120
        %v1723 = vpop.permute.xlu0 %1722
        %1724 = vrot.lane.b32.xlu0 %v1638, 120
        %v1725 = vpop.permute.xlu0 %1724
        %v1726 = vsel %vm700, %v1721, 0
        %v1728 = vsel %vm700, %v1723, 0
        %v1730 = vsel %vm700, %v1725, 0
        %1732 = vmatprep.subr.mxu0 0.0
        %1733 = vmatpush1.xpose.msra.mxu0 %v1728
        %1734 = vmatprep.subr.mxu0 0.0
        %1735 = vmatpush1.xpose.msra.mxu0 %v1730
        %1736 = vmatprep.subr.mxu0 0.0
        %1737 = vmatpush1.xpose.msra.mxu0 0.0
        %1738 = vmatprep.subr.mxu0 0.0
        %1739 = vmatpush1.xpose.msra.mxu0 0.0
        %1740 = vmatprep.subr.mxu0 0.0
        %1741 = vmatpush1.xpose.msra.mxu0 0.0
        %1742 = vmatprep.subr.mxu0 0.0
        %1743 = vmatpush1.xpose.msra.mxu0 0.0
        %1744 = vmatprep.subr.mxu0 0.0
        %1745 = vmatpush1.xpose.msra.mxu0 0.0
        %1746 = vmatprep.subr.mxu0 0.0
        %1747 = vmatpush1.xpose.msra.mxu0 0.0
        %1748 = vmatprep.subr.mxu0 0.0
        %1749 = vmatpush1.xpose.msra.mxu0 0.0
        %1750 = vmatprep.subr.mxu0 0.0
        %1751 = vmatpush1.xpose.msra.mxu0 0.0
        %1752 = vmatprep.subr.mxu0 0.0
        %1753 = vmatpush1.xpose.msra.mxu0 0.0
        %1754 = vmatprep.subr.mxu0 0.0
        %1755 = vmatpush1.xpose.msra.mxu0 0.0
        %1756 = vmatprep.subr.mxu0 0.0
        %1757 = vmatpush1.xpose.msra.mxu0 0.0
        %1758 = vmatprep.subr.mxu0 0.0
        %1759 = vmatpush1.xpose.msra.mxu0 0.0
        %1760 = vmatprep.subr.mxu0 0.0
        %1761 = vmatpush1.xpose.msra.mxu0 0.0
        %1762 = vmatprep.subr.mxu0 0.0
        %1763 = vmatpush1.xpose.msra.mxu0 0.0
        %1764 = vmatprep.subr.mxu0 0.0
        %1765 = vmatpush1.xpose.msra.mxu0 0.0
        %1766 = vmatprep.subr.mxu0 0.0
        %1767 = vmatpush1.xpose.msra.mxu0 0.0
        %1768 = vmatprep.subr.mxu0 0.0
        %1769 = vmatpush1.xpose.msra.mxu0 0.0
        %1770 = vmatprep.subr.mxu0 0.0
        %1771 = vmatpush1.xpose.msra.mxu0 0.0
        %1772 = vmatprep.subr.mxu0 0.0
        %1773 = vmatpush1.xpose.msra.mxu0 0.0
        %1774 = vmatprep.subr.mxu0 0.0
        %1775 = vmatpush1.xpose.msra.mxu0 0.0
        %1776 = vmatprep.subr.mxu0 0.0
        %1777 = vmatpush1.xpose.msra.mxu0 0.0
        %1778 = vmatprep.subr.mxu0 0.0
        %1779 = vmatpush1.xpose.msra.mxu0 0.0
        %1780 = vmatprep.subr.mxu0 0.0
        %1781 = vmatpush1.xpose.msra.mxu0 0.0
        %1782 = vmatprep.subr.mxu0 0.0
        %1783 = vmatpush1.xpose.msra.mxu0 0.0
        %1784 = vmatprep.subr.mxu0 0.0
        %1785 = vmatpush1.xpose.msra.mxu0 0.0
        %1786 = vmatprep.subr.mxu0 0.0
        %1787 = vmatpush1.xpose.msra.mxu0 0.0
        %1788 = vmatprep.subr.mxu0 0.0
        %1789 = vmatpush1.xpose.msra.mxu0 0.0
        %1790 = vmatprep.subr.mxu0 0.0
        %1791 = vmatpush1.xpose.msra.mxu0 0.0
        %1792 = vmatprep.subr.mxu0 0.0
        %1793 = vmatpush1.xpose.msra.mxu0 0.0
        %1794 = vmatprep.subr.mxu0 0.0
        %1795 = vmatpush1.xpose.msra.mxu0 0.0
        %1796 = vmatprep.mubr.f32.mxu0 0.0
        %1797 = vmatmul.mubr.f32.gmra.mrb[0].mxu0 %v1726
        %v1798 = vpop.f32.mrb[0].mxu0
        %v1799 = vadd.f32 0.0, %v1798
        %v1800 = vpop.f32.mrb[0].mxu0
        %1801 = vdwg.mxu0
        %1802 = vrot.lane.b32.xlu0 %v1553, 112
        %v1803 = vpop.permute.xlu0 %1802
        %1804 = vrot.lane.b32.xlu0 %v1633, 112
        %v1805 = vpop.permute.xlu0 %1804
        %1806 = vrot.lane.b32.xlu0 %v1638, 112
        %v1807 = vpop.permute.xlu0 %1806
        %v1808 = vsel %vm700, %v1803, 0
        %v1810 = vsel %vm700, %v1805, 0
        %v1812 = vsel %vm700, %v1807, 0
        %1814 = vmatprep.subr.mxu0 0.0
        %1815 = vmatpush1.xpose.msra.mxu0 %v1810
        %1816 = vmatprep.subr.mxu0 0.0
        %1817 = vmatpush1.xpose.msra.mxu0 %v1812
        %1818 = vmatprep.subr.mxu0 0.0
        %1819 = vmatpush1.xpose.msra.mxu0 0.0
        %1820 = vmatprep.subr.mxu0 0.0
        %1821 = vmatpush1.xpose.msra.mxu0 0.0
        %1822 = vmatprep.subr.mxu0 0.0
        %1823 = vmatpush1.xpose.msra.mxu0 0.0
        %1824 = vmatprep.subr.mxu0 0.0
        %1825 = vmatpush1.xpose.msra.mxu0 0.0
        %1826 = vmatprep.subr.mxu0 0.0
        %1827 = vmatpush1.xpose.msra.mxu0 0.0
        %1828 = vmatprep.subr.mxu0 0.0
        %1829 = vmatpush1.xpose.msra.mxu0 0.0
        %1830 = vmatprep.subr.mxu0 0.0
        %1831 = vmatpush1.xpose.msra.mxu0 0.0
        %1832 = vmatprep.subr.mxu0 0.0
        %1833 = vmatpush1.xpose.msra.mxu0 0.0
        %1834 = vmatprep.subr.mxu0 0.0
        %1835 = vmatpush1.xpose.msra.mxu0 0.0
        %1836 = vmatprep.subr.mxu0 0.0
        %1837 = vmatpush1.xpose.msra.mxu0 0.0
        %1838 = vmatprep.subr.mxu0 0.0
        %1839 = vmatpush1.xpose.msra.mxu0 0.0
        %1840 = vmatprep.subr.mxu0 0.0
        %1841 = vmatpush1.xpose.msra.mxu0 0.0
        %1842 = vmatprep.subr.mxu0 0.0
        %1843 = vmatpush1.xpose.msra.mxu0 0.0
        %1844 = vmatprep.subr.mxu0 0.0
        %1845 = vmatpush1.xpose.msra.mxu0 0.0
        %1846 = vmatprep.subr.mxu0 0.0
        %1847 = vmatpush1.xpose.msra.mxu0 0.0
        %1848 = vmatprep.subr.mxu0 0.0
        %1849 = vmatpush1.xpose.msra.mxu0 0.0
        %1850 = vmatprep.subr.mxu0 0.0
        %1851 = vmatpush1.xpose.msra.mxu0 0.0
        %1852 = vmatprep.subr.mxu0 0.0
        %1853 = vmatpush1.xpose.msra.mxu0 0.0
        %1854 = vmatprep.subr.mxu0 0.0
        %1855 = vmatpush1.xpose.msra.mxu0 0.0
        %1856 = vmatprep.subr.mxu0 0.0
        %1857 = vmatpush1.xpose.msra.mxu0 0.0
        %1858 = vmatprep.subr.mxu0 0.0
        %1859 = vmatpush1.xpose.msra.mxu0 0.0
        %1860 = vmatprep.subr.mxu0 0.0
        %1861 = vmatpush1.xpose.msra.mxu0 0.0
        %1862 = vmatprep.subr.mxu0 0.0
        %1863 = vmatpush1.xpose.msra.mxu0 0.0
        %1864 = vmatprep.subr.mxu0 0.0
        %1865 = vmatpush1.xpose.msra.mxu0 0.0
        %1866 = vmatprep.subr.mxu0 0.0
        %1867 = vmatpush1.xpose.msra.mxu0 0.0
        %1868 = vmatprep.subr.mxu0 0.0
        %1869 = vmatpush1.xpose.msra.mxu0 0.0
        %1870 = vmatprep.subr.mxu0 0.0
        %1871 = vmatpush1.xpose.msra.mxu0 0.0
        %1872 = vmatprep.subr.mxu0 0.0
        %1873 = vmatpush1.xpose.msra.mxu0 0.0
        %1874 = vmatprep.subr.mxu0 0.0
        %1875 = vmatpush1.xpose.msra.mxu0 0.0
        %1876 = vmatprep.subr.mxu0 0.0
        %1877 = vmatpush1.xpose.msra.mxu0 0.0
        %1878 = vmatprep.mubr.f32.mxu0 0.0
        %1879 = vmatmul.mubr.f32.gmra.mrb[0].mxu0 %v1808
        %v1880 = vpop.f32.mrb[0].mxu0
        %v1881 = vadd.f32 0.0, %v1880
        %v1882 = vpop.f32.mrb[0].mxu0
        %1883 = vdwg.mxu0
        %1884 = vrot.lane.b32.xlu0 %v1553, 104
        %v1885 = vpop.permute.xlu0 %1884
        %1886 = vrot.lane.b32.xlu0 %v1633, 104
        %v1887 = vpop.permute.xlu0 %1886
        %1888 = vrot.lane.b32.xlu0 %v1638, 104
        %v1889 = vpop.permute.xlu0 %1888
        %v1890 = vsel %vm700, %v1885, 0
        %v1892 = vsel %vm700, %v1887, 0
        %v1894 = vsel %vm700, %v1889, 0
        %1896 = vmatprep.subr.mxu0 0.0
        %1897 = vmatpush1.xpose.msra.mxu0 %v1892
        %1898 = vmatprep.subr.mxu0 0.0
        %1899 = vmatpush1.xpose.msra.mxu0 %v1894
        %1900 = vmatprep.subr.mxu0 0.0
        %1901 = vmatpush1.xpose.msra.mxu0 0.0
        %1902 = vmatprep.subr.mxu0 0.0
        %1903 = vmatpush1.xpose.msra.mxu0 0.0
        %1904 = vmatprep.subr.mxu0 0.0
        %1905 = vmatpush1.xpose.msra.mxu0 0.0
        %1906 = vmatprep.subr.mxu0 0.0
        %1907 = vmatpush1.xpose.msra.mxu0 0.0
        %1908 = vmatprep.subr.mxu0 0.0
        %1909 = vmatpush1.xpose.msra.mxu0 0.0
        %1910 = vmatprep.subr.mxu0 0.0
        %1911 = vmatpush1.xpose.msra.mxu0 0.0
        %1912 = vmatprep.subr.mxu0 0.0
        %1913 = vmatpush1.xpose.msra.mxu0 0.0
        %1914 = vmatprep.subr.mxu0 0.0
        %1915 = vmatpush1.xpose.msra.mxu0 0.0
        %1916 = vmatprep.subr.mxu0 0.0
        %1917 = vmatpush1.xpose.msra.mxu0 0.0
        %1918 = vmatprep.subr.mxu0 0.0
        %1919 = vmatpush1.xpose.msra.mxu0 0.0
        %1920 = vmatprep.subr.mxu0 0.0
        %1921 = vmatpush1.xpose.msra.mxu0 0.0
        %1922 = vmatprep.subr.mxu0 0.0
        %1923 = vmatpush1.xpose.msra.mxu0 0.0
        %1924 = vmatprep.subr.mxu0 0.0
        %1925 = vmatpush1.xpose.msra.mxu0 0.0
        %1926 = vmatprep.subr.mxu0 0.0
        %1927 = vmatpush1.xpose.msra.mxu0 0.0
        %1928 = vmatprep.subr.mxu0 0.0
        %1929 = vmatpush1.xpose.msra.mxu0 0.0
        %1930 = vmatprep.subr.mxu0 0.0
        %1931 = vmatpush1.xpose.msra.mxu0 0.0
        %1932 = vmatprep.subr.mxu0 0.0
        %1933 = vmatpush1.xpose.msra.mxu0 0.0
        %1934 = vmatprep.subr.mxu0 0.0
        %1935 = vmatpush1.xpose.msra.mxu0 0.0
        %1936 = vmatprep.subr.mxu0 0.0
        %1937 = vmatpush1.xpose.msra.mxu0 0.0
        %1938 = vmatprep.subr.mxu0 0.0
        %1939 = vmatpush1.xpose.msra.mxu0 0.0
        %1940 = vmatprep.subr.mxu0 0.0
        %1941 = vmatpush1.xpose.msra.mxu0 0.0
        %1942 = vmatprep.subr.mxu0 0.0
        %1943 = vmatpush1.xpose.msra.mxu0 0.0
        %1944 = vmatprep.subr.mxu0 0.0
        %1945 = vmatpush1.xpose.msra.mxu0 0.0
        %1946 = vmatprep.subr.mxu0 0.0
        %1947 = vmatpush1.xpose.msra.mxu0 0.0
        %1948 = vmatprep.subr.mxu0 0.0
        %1949 = vmatpush1.xpose.msra.mxu0 0.0
        %1950 = vmatprep.subr.mxu0 0.0
        %1951 = vmatpush1.xpose.msra.mxu0 0.0
        %1952 = vmatprep.subr.mxu0 0.0
        %1953 = vmatpush1.xpose.msra.mxu0 0.0
        %1954 = vmatprep.subr.mxu0 0.0
        %1955 = vmatpush1.xpose.msra.mxu0 0.0
        %1956 = vmatprep.subr.mxu0 0.0
        %1957 = vmatpush1.xpose.msra.mxu0 0.0
        %1958 = vmatprep.subr.mxu0 0.0
        %1959 = vmatpush1.xpose.msra.mxu0 0.0
        %1960 = vmatprep.mubr.f32.mxu0 0.0
        %1961 = vmatmul.mubr.f32.gmra.mrb[0].mxu0 %v1890
        %v1962 = vpop.f32.mrb[0].mxu0
        %v1963 = vadd.f32 0.0, %v1962
        %v1964 = vpop.f32.mrb[0].mxu0
        %1965 = vdwg.mxu0
        %v1966 = vmul.f32 %v1717, 0.35355338
        %v1967 = vmul.f32 %v1799, 0.35355338
        %v1968 = vmul.f32 %v1881, 0.35355338
        %v1969 = vmul.f32 %v1963, 0.35355338
        %v1970 = vsel %vm1372, %v1966, -inf
        %1971 = vmax.xlane.f32.xlu0 %v1970
        %v1972 = vpop.xlane.xlu0 %1971
        %v1973 = vsel %vm1372, %v1967, -inf
        %1974 = vmax.xlane.f32.xlu0 %v1973
        %v1975 = vpop.xlane.xlu0 %1974
        %v1976 = vsel %vm1372, %v1968, -inf
        %1977 = vmax.xlane.f32.xlu0 %v1976
        %v1978 = vpop.xlane.xlu0 %1977
        %v1979 = vsel %vm1372, %v1969, -inf
        %1980 = vmax.xlane.f32.xlu0 %v1979
        %v1981 = vpop.xlane.xlu0 %1980
        %v1982 = vsub.f32 %v1966, %v1972
        %v1983 = vsub.f32 %v1967, %v1975
        %v1984 = vsub.f32 %v1968, %v1978
        %v1985 = vsub.f32 %v1969, %v1981
        %v1986 = vmul.f32 %v1982, 1.442695
        %v1987 = vpow.pop %v1986
        %v1988 = vmul.f32 %v1983, 1.442695
        %v1989 = vpow.pop %v1988
        %v1990 = vmul.f32 %v1984, 1.442695
        %v1991 = vpow.pop %v1990
        %v1992 = vmul.f32 %v1985, 1.442695
        %v1993 = vpow.pop %v1992
        %v1994 = vsel %vm1372, %v1987, 0.0
        %1995 = vadd.xlane.f32.xlu0 %v1994
        %v1996 = vpop.xlane.xlu0 %1995
        %v1997 = vsel %vm1372, %v1989, 0.0
        %1998 = vadd.xlane.f32.xlu0 %v1997
        %v1999 = vpop.xlane.xlu0 %1998
        %v2000 = vsel %vm1372, %v1991, 0.0
        %2001 = vadd.xlane.f32.xlu0 %v2000
        %v2002 = vpop.xlane.xlu0 %2001
        %v2003 = vsel %vm1372, %v1993, 0.0
        %2004 = vadd.xlane.f32.xlu0 %v2003
        %v2005 = vpop.xlane.xlu0 %2004
        %v2006 = vrcp.pop %v1996
        %v2007 = vrcp.pop %v1999
        %v2008 = vrcp.pop %v2002
        %v2009 = vrcp.pop %v2005
        %v2010 = vmul.f32 %v1987, %v2006
        %v2011 = vmul.f32 %v1989, %v2007
        %v2012 = vmul.f32 %v1991, %v2008
        %v2013 = vmul.f32 %v1993, %v2009
        %2014 = vrot.lane.b32.xlu0 %v1633, 96
        %v2015 = vpop.permute.xlu0 %2014
        %2016 = vrot.lane.b32.xlu0 %v1638, 96
        %v2017 = vpop.permute.xlu0 %2016
        %v2021 = vsel %vm1372, %v2010, 0
        %2023 = vmatprep.subr.mxu0 0.0
        %2024 = vmatpush1.msra.mxu0 %v2015
        %2025 = vmatprep.subr.mxu0 0.0
        %2026 = vmatpush1.msra.mxu0 %v2017
        %2027 = vmatprep.subr.mxu0 0.0
        %2028 = vmatpush1.msra.mxu0 0.0
        %2029 = vmatprep.subr.mxu0 0.0
        %2030 = vmatpush1.msra.mxu0 0.0
        %2031 = vmatprep.subr.mxu0 0.0
        %2032 = vmatpush1.msra.mxu0 0.0
        %2033 = vmatprep.subr.mxu0 0.0
        %2034 = vmatpush1.msra.mxu0 0.0
        %2035 = vmatprep.subr.mxu0 0.0
        %2036 = vmatpush1.msra.mxu0 0.0
        %2037 = vmatprep.subr.mxu0 0.0
        %2038 = vmatpush1.msra.mxu0 0.0
        %2039 = vmatprep.subr.mxu0 0.0
        %2040 = vmatpush1.msra.mxu0 0.0
        %2041 = vmatprep.subr.mxu0 0.0
        %2042 = vmatpush1.msra.mxu0 0.0
        %2043 = vmatprep.subr.mxu0 0.0
        %2044 = vmatpush1.msra.mxu0 0.0
        %2045 = vmatprep.subr.mxu0 0.0
        %2046 = vmatpush1.msra.mxu0 0.0
        %2047 = vmatprep.subr.mxu0 0.0
        %2048 = vmatpush1.msra.mxu0 0.0
        %2049 = vmatprep.subr.mxu0 0.0
        %2050 = vmatpush1.msra.mxu0 0.0
        %2051 = vmatprep.subr.mxu0 0.0
        %2052 = vmatpush1.msra.mxu0 0.0
        %2053 = vmatprep.subr.mxu0 0.0
        %2054 = vmatpush1.msra.mxu0 0.0
        %2055 = vmatprep.subr.mxu0 0.0
        %2056 = vmatpush1.msra.mxu0 0.0
        %2057 = vmatprep.subr.mxu0 0.0
        %2058 = vmatpush1.msra.mxu0 0.0
        %2059 = vmatprep.subr.mxu0 0.0
        %2060 = vmatpush1.msra.mxu0 0.0
        %2061 = vmatprep.subr.mxu0 0.0
        %2062 = vmatpush1.msra.mxu0 0.0
        %2063 = vmatprep.subr.mxu0 0.0
        %2064 = vmatpush1.msra.mxu0 0.0
        %2065 = vmatprep.subr.mxu0 0.0
        %2066 = vmatpush1.msra.mxu0 0.0
        %2067 = vmatprep.subr.mxu0 0.0
        %2068 = vmatpush1.msra.mxu0 0.0
        %2069 = vmatprep.subr.mxu0 0.0
        %2070 = vmatpush1.msra.mxu0 0.0
        %2071 = vmatprep.subr.mxu0 0.0
        %2072 = vmatpush1.msra.mxu0 0.0
        %2073 = vmatprep.subr.mxu0 0.0
        %2074 = vmatpush1.msra.mxu0 0.0
        %2075 = vmatprep.subr.mxu0 0.0
        %2076 = vmatpush1.msra.mxu0 0.0
        %2077 = vmatprep.subr.mxu0 0.0
        %2078 = vmatpush1.msra.mxu0 0.0
        %2079 = vmatprep.subr.mxu0 0.0
        %2080 = vmatpush1.msra.mxu0 0.0
        %2081 = vmatprep.subr.mxu0 0.0
        %2082 = vmatpush1.msra.mxu0 0.0
        %2083 = vmatprep.subr.mxu0 0.0
        %2084 = vmatpush1.msra.mxu0 0.0
        %2085 = vmatprep.subr.mxu0 0.0
        %2086 = vmatpush1.msra.mxu0 0.0
        %2087 = vmatprep.mubr.f32.mxu0 0.0
        %2088 = vmatmul.mubr.f32.gmra.mrb[0].mxu0 %v2021
        %v2089 = vpop.f32.mrb[0].mxu0
        %v2090 = vadd.f32 0.0, %v2089
        %v2091 = vpop.f32.mrb[0].mxu0
        %2092 = vdwg.mxu0
        %2093 = vrot.lane.b32.xlu0 %v1633, 88
        %v2094 = vpop.permute.xlu0 %2093
        %2095 = vrot.lane.b32.xlu0 %v1638, 88
        %v2096 = vpop.permute.xlu0 %2095
        %v2100 = vsel %vm1372, %v2011, 0
        %2102 = vmatprep.subr.mxu0 0.0
        %2103 = vmatpush1.msra.mxu0 %v2094
        %2104 = vmatprep.subr.mxu0 0.0
        %2105 = vmatpush1.msra.mxu0 %v2096
        %2106 = vmatprep.subr.mxu0 0.0
        %2107 = vmatpush1.msra.mxu0 0.0
        %2108 = vmatprep.subr.mxu0 0.0
        %2109 = vmatpush1.msra.mxu0 0.0
        %2110 = vmatprep.subr.mxu0 0.0
        %2111 = vmatpush1.msra.mxu0 0.0
        %2112 = vmatprep.subr.mxu0 0.0
        %2113 = vmatpush1.msra.mxu0 0.0
        %2114 = vmatprep.subr.mxu0 0.0
        %2115 = vmatpush1.msra.mxu0 0.0
        %2116 = vmatprep.subr.mxu0 0.0
        %2117 = vmatpush1.msra.mxu0 0.0
        %2118 = vmatprep.subr.mxu0 0.0
        %2119 = vmatpush1.msra.mxu0 0.0
        %2120 = vmatprep.subr.mxu0 0.0
        %2121 = vmatpush1.msra.mxu0 0.0
        %2122 = vmatprep.subr.mxu0 0.0
        %2123 = vmatpush1.msra.mxu0 0.0
        %2124 = vmatprep.subr.mxu0 0.0
        %2125 = vmatpush1.msra.mxu0 0.0
        %2126 = vmatprep.subr.mxu0 0.0
        %2127 = vmatpush1.msra.mxu0 0.0
        %2128 = vmatprep.subr.mxu0 0.0
        %2129 = vmatpush1.msra.mxu0 0.0
        %2130 = vmatprep.subr.mxu0 0.0
        %2131 = vmatpush1.msra.mxu0 0.0
        %2132 = vmatprep.subr.mxu0 0.0
        %2133 = vmatpush1.msra.mxu0 0.0
        %2134 = vmatprep.subr.mxu0 0.0
        %2135 = vmatpush1.msra.mxu0 0.0
        %2136 = vmatprep.subr.mxu0 0.0
        %2137 = vmatpush1.msra.mxu0 0.0
        %2138 = vmatprep.subr.mxu0 0.0
        %2139 = vmatpush1.msra.mxu0 0.0
        %2140 = vmatprep.subr.mxu0 0.0
        %2141 = vmatpush1.msra.mxu0 0.0
        %2142 = vmatprep.subr.mxu0 0.0
        %2143 = vmatpush1.msra.mxu0 0.0
        %2144 = vmatprep.subr.mxu0 0.0
        %2145 = vmatpush1.msra.mxu0 0.0
        %2146 = vmatprep.subr.mxu0 0.0
        %2147 = vmatpush1.msra.mxu0 0.0
        %2148 = vmatprep.subr.mxu0 0.0
        %2149 = vmatpush1.msra.mxu0 0.0
        %2150 = vmatprep.subr.mxu0 0.0
        %2151 = vmatpush1.msra.mxu0 0.0
        %2152 = vmatprep.subr.mxu0 0.0
        %2153 = vmatpush1.msra.mxu0 0.0
        %2154 = vmatprep.subr.mxu0 0.0
        %2155 = vmatpush1.msra.mxu0 0.0
        %2156 = vmatprep.subr.mxu0 0.0
        %2157 = vmatpush1.msra.mxu0 0.0
        %2158 = vmatprep.subr.mxu0 0.0
        %2159 = vmatpush1.msra.mxu0 0.0
        %2160 = vmatprep.subr.mxu0 0.0
        %2161 = vmatpush1.msra.mxu0 0.0
        %2162 = vmatprep.subr.mxu0 0.0
        %2163 = vmatpush1.msra.mxu0 0.0
        %2164 = vmatprep.subr.mxu0 0.0
        %2165 = vmatpush1.msra.mxu0 0.0
        %2166 = vmatprep.mubr.f32.mxu0 0.0
        %2167 = vmatmul.mubr.f32.gmra.mrb[0].mxu0 %v2100
        %v2168 = vpop.f32.mrb[0].mxu0
        %v2169 = vadd.f32 0.0, %v2168
        %v2170 = vpop.f32.mrb[0].mxu0
        %2171 = vdwg.mxu0
        %2172 = vrot.lane.b32.xlu0 %v1633, 80
        %v2173 = vpop.permute.xlu0 %2172
        %2174 = vrot.lane.b32.xlu0 %v1638, 80
        %v2175 = vpop.permute.xlu0 %2174
        %v2179 = vsel %vm1372, %v2012, 0
        %2181 = vmatprep.subr.mxu0 0.0
        %2182 = vmatpush1.msra.mxu0 %v2173
        %2183 = vmatprep.subr.mxu0 0.0
        %2184 = vmatpush1.msra.mxu0 %v2175
        %2185 = vmatprep.subr.mxu0 0.0
        %2186 = vmatpush1.msra.mxu0 0.0
        %2187 = vmatprep.subr.mxu0 0.0
        %2188 = vmatpush1.msra.mxu0 0.0
        %2189 = vmatprep.subr.mxu0 0.0
        %2190 = vmatpush1.msra.mxu0 0.0
        %2191 = vmatprep.subr.mxu0 0.0
        %2192 = vmatpush1.msra.mxu0 0.0
        %2193 = vmatprep.subr.mxu0 0.0
        %2194 = vmatpush1.msra.mxu0 0.0
        %2195 = vmatprep.subr.mxu0 0.0
        %2196 = vmatpush1.msra.mxu0 0.0
        %2197 = vmatprep.subr.mxu0 0.0
        %2198 = vmatpush1.msra.mxu0 0.0
        %2199 = vmatprep.subr.mxu0 0.0
        %2200 = vmatpush1.msra.mxu0 0.0
        %2201 = vmatprep.subr.mxu0 0.0
        %2202 = vmatpush1.msra.mxu0 0.0
        %2203 = vmatprep.subr.mxu0 0.0
        %2204 = vmatpush1.msra.mxu0 0.0
        %2205 = vmatprep.subr.mxu0 0.0
        %2206 = vmatpush1.msra.mxu0 0.0
        %2207 = vmatprep.subr.mxu0 0.0
        %2208 = vmatpush1.msra.mxu0 0.0
        %2209 = vmatprep.subr.mxu0 0.0
        %2210 = vmatpush1.msra.mxu0 0.0
        %2211 = vmatprep.subr.mxu0 0.0
        %2212 = vmatpush1.msra.mxu0 0.0
        %2213 = vmatprep.subr.mxu0 0.0
        %2214 = vmatpush1.msra.mxu0 0.0
        %2215 = vmatprep.subr.mxu0 0.0
        %2216 = vmatpush1.msra.mxu0 0.0
        %2217 = vmatprep.subr.mxu0 0.0
        %2218 = vmatpush1.msra.mxu0 0.0
        %2219 = vmatprep.subr.mxu0 0.0
        %2220 = vmatpush1.msra.mxu0 0.0
        %2221 = vmatprep.subr.mxu0 0.0
        %2222 = vmatpush1.msra.mxu0 0.0
        %2223 = vmatprep.subr.mxu0 0.0
        %2224 = vmatpush1.msra.mxu0 0.0
        %2225 = vmatprep.subr.mxu0 0.0
        %2226 = vmatpush1.msra.mxu0 0.0
        %2227 = vmatprep.subr.mxu0 0.0
        %2228 = vmatpush1.msra.mxu0 0.0
        %2229 = vmatprep.subr.mxu0 0.0
        %2230 = vmatpush1.msra.mxu0 0.0
        %2231 = vmatprep.subr.mxu0 0.0
        %2232 = vmatpush1.msra.mxu0 0.0
        %2233 = vmatprep.subr.mxu0 0.0
        %2234 = vmatpush1.msra.mxu0 0.0
        %2235 = vmatprep.subr.mxu0 0.0
        %2236 = vmatpush1.msra.mxu0 0.0
        %2237 = vmatprep.subr.mxu0 0.0
        %2238 = vmatpush1.msra.mxu0 0.0
        %2239 = vmatprep.subr.mxu0 0.0
        %2240 = vmatpush1.msra.mxu0 0.0
        %2241 = vmatprep.subr.mxu0 0.0
        %2242 = vmatpush1.msra.mxu0 0.0
        %2243 = vmatprep.subr.mxu0 0.0
        %2244 = vmatpush1.msra.mxu0 0.0
        %2245 = vmatprep.mubr.f32.mxu0 0.0
        %2246 = vmatmul.mubr.f32.gmra.mrb[0].mxu0 %v2179
        %v2247 = vpop.f32.mrb[0].mxu0
        %v2248 = vadd.f32 0.0, %v2247
        %v2249 = vpop.f32.mrb[0].mxu0
        %2250 = vdwg.mxu0
        %2251 = vrot.lane.b32.xlu0 %v1633, 72
        %v2252 = vpop.permute.xlu0 %2251
        %2253 = vrot.lane.b32.xlu0 %v1638, 72
        %v2254 = vpop.permute.xlu0 %2253
        %v2258 = vsel %vm1372, %v2013, 0
        %2260 = vmatprep.subr.mxu0 0.0
        %2261 = vmatpush1.msra.mxu0 %v2252
        %2262 = vmatprep.subr.mxu0 0.0
        %2263 = vmatpush1.msra.mxu0 %v2254
        %2264 = vmatprep.subr.mxu0 0.0
        %2265 = vmatpush1.msra.mxu0 0.0
        %2266 = vmatprep.subr.mxu0 0.0
        %2267 = vmatpush1.msra.mxu0 0.0
        %2268 = vmatprep.subr.mxu0 0.0
        %2269 = vmatpush1.msra.mxu0 0.0
        %2270 = vmatprep.subr.mxu0 0.0
        %2271 = vmatpush1.msra.mxu0 0.0
        %2272 = vmatprep.subr.mxu0 0.0
        %2273 = vmatpush1.msra.mxu0 0.0
        %2274 = vmatprep.subr.mxu0 0.0
        %2275 = vmatpush1.msra.mxu0 0.0
        %2276 = vmatprep.subr.mxu0 0.0
        %2277 = vmatpush1.msra.mxu0 0.0
        %2278 = vmatprep.subr.mxu0 0.0
        %2279 = vmatpush1.msra.mxu0 0.0
        %2280 = vmatprep.subr.mxu0 0.0
        %2281 = vmatpush1.msra.mxu0 0.0
        %2282 = vmatprep.subr.mxu0 0.0
        %2283 = vmatpush1.msra.mxu0 0.0
        %2284 = vmatprep.subr.mxu0 0.0
        %2285 = vmatpush1.msra.mxu0 0.0
        %2286 = vmatprep.subr.mxu0 0.0
        %2287 = vmatpush1.msra.mxu0 0.0
        %2288 = vmatprep.subr.mxu0 0.0
        %2289 = vmatpush1.msra.mxu0 0.0
        %2290 = vmatprep.subr.mxu0 0.0
        %2291 = vmatpush1.msra.mxu0 0.0
        %2292 = vmatprep.subr.mxu0 0.0
        %2293 = vmatpush1.msra.mxu0 0.0
        %2294 = vmatprep.subr.mxu0 0.0
        %2295 = vmatpush1.msra.mxu0 0.0
        %2296 = vmatprep.subr.mxu0 0.0
        %2297 = vmatpush1.msra.mxu0 0.0
        %2298 = vmatprep.subr.mxu0 0.0
        %2299 = vmatpush1.msra.mxu0 0.0
        %2300 = vmatprep.subr.mxu0 0.0
        %2301 = vmatpush1.msra.mxu0 0.0
        %2302 = vmatprep.subr.mxu0 0.0
        %2303 = vmatpush1.msra.mxu0 0.0
        %2304 = vmatprep.subr.mxu0 0.0
        %2305 = vmatpush1.msra.mxu0 0.0
        %2306 = vmatprep.subr.mxu0 0.0
        %2307 = vmatpush1.msra.mxu0 0.0
        %2308 = vmatprep.subr.mxu0 0.0
        %2309 = vmatpush1.msra.mxu0 0.0
        %2310 = vmatprep.subr.mxu0 0.0
        %2311 = vmatpush1.msra.mxu0 0.0
        %2312 = vmatprep.subr.mxu0 0.0
        %2313 = vmatpush1.msra.mxu0 0.0
        %2314 = vmatprep.subr.mxu0 0.0
        %2315 = vmatpush1.msra.mxu0 0.0
        %2316 = vmatprep.subr.mxu0 0.0
        %2317 = vmatpush1.msra.mxu0 0.0
        %2318 = vmatprep.subr.mxu0 0.0
        %2319 = vmatpush1.msra.mxu0 0.0
        %2320 = vmatprep.subr.mxu0 0.0
        %2321 = vmatpush1.msra.mxu0 0.0
        %2322 = vmatprep.subr.mxu0 0.0
        %2323 = vmatpush1.msra.mxu0 0.0
        %2324 = vmatprep.mubr.f32.mxu0 0.0
        %2325 = vmatmul.mubr.f32.gmra.mrb[0].mxu0 %v2258
        %v2326 = vpop.f32.mrb[0].mxu0
        %v2327 = vadd.f32 0.0, %v2326
        %v2328 = vpop.f32.mrb[0].mxu0
        %2329 = vdwg.mxu0
        %2331 = vrot.lane.b32.xlu0 %v2169, 8
        %v2332 = vpop.permute.xlu0 %2331
        %2335 = vrot.lane.b32.xlu0 %v2248, 16
        %v2336 = vpop.permute.xlu0 %2335
        %2339 = vrot.lane.b32.xlu0 %v2327, 24
        %v2340 = vpop.permute.xlu0 %2339
        %v2342 = vsel %vm700, %v2090, %v2332
        %v2343 = vsel %vm1372, %v2342, %v2336
        %v2344 = vsel %vm1374, %v2343, %v2340
        %v2345 = vlaneseq
        %v2346 = vshrl.u32 %v2345, 7
        %v2347 = vsub.s32 3, %v2346
        %v2348 = vrot.slane %v539, %v2347
        %v2350 = vsel %vm546, %v2344, 0
        %2352 = vmatprep.subr.mxu0 0.0
        %2353 = vmatpush1.msra.mxu0 %v521
        %2354 = vmatprep.subr.mxu0 0.0
        %2355 = vmatpush1.msra.mxu0 %v522
        %2356 = vmatprep.subr.mxu0 0.0
        %2357 = vmatpush1.msra.mxu0 %v523
        %2358 = vmatprep.subr.mxu0 0.0
        %2359 = vmatpush1.msra.mxu0 %v524
        %2360 = vmatprep.subr.mxu0 0.0
        %2361 = vmatpush1.msra.mxu0 0.0
        %2362 = vmatprep.subr.mxu0 0.0
        %2363 = vmatpush1.msra.mxu0 0.0
        %2364 = vmatprep.subr.mxu0 0.0
        %2365 = vmatpush1.msra.mxu0 0.0
        %2366 = vmatprep.subr.mxu0 0.0
        %2367 = vmatpush1.msra.mxu0 0.0
        %2368 = vmatprep.subr.mxu0 0.0
        %2369 = vmatpush1.msra.mxu0 0.0
        %2370 = vmatprep.subr.mxu0 0.0
        %2371 = vmatpush1.msra.mxu0 0.0
        %2372 = vmatprep.subr.mxu0 0.0
        %2373 = vmatpush1.msra.mxu0 0.0
        %2374 = vmatprep.subr.mxu0 0.0
        %2375 = vmatpush1.msra.mxu0 0.0
        %2376 = vmatprep.subr.mxu0 0.0
        %2377 = vmatpush1.msra.mxu0 0.0
        %2378 = vmatprep.subr.mxu0 0.0
        %2379 = vmatpush1.msra.mxu0 0.0
        %2380 = vmatprep.subr.mxu0 0.0
        %2381 = vmatpush1.msra.mxu0 0.0
        %2382 = vmatprep.subr.mxu0 0.0
        %2383 = vmatpush1.msra.mxu0 0.0
        %2384 = vmatprep.subr.mxu0 0.0
        %2385 = vmatpush1.msra.mxu0 0.0
        %2386 = vmatprep.subr.mxu0 0.0
        %2387 = vmatpush1.msra.mxu0 0.0
        %2388 = vmatprep.subr.mxu0 0.0
        %2389 = vmatpush1.msra.mxu0 0.0
        %2390 = vmatprep.subr.mxu0 0.0
        %2391 = vmatpush1.msra.mxu0 0.0
        %2392 = vmatprep.subr.mxu0 0.0
        %2393 = vmatpush1.msra.mxu0 0.0
        %2394 = vmatprep.subr.mxu0 0.0
        %2395 = vmatpush1.msra.mxu0 0.0
        %2396 = vmatprep.subr.mxu0 0.0
        %2397 = vmatpush1.msra.mxu0 0.0
        %2398 = vmatprep.subr.mxu0 0.0
        %2399 = vmatpush1.msra.mxu0 0.0
        %2400 = vmatprep.subr.mxu0 0.0
        %2401 = vmatpush1.msra.mxu0 0.0
        %2402 = vmatprep.subr.mxu0 0.0
        %2403 = vmatpush1.msra.mxu0 0.0
        %2404 = vmatprep.subr.mxu0 0.0
        %2405 = vmatpush1.msra.mxu0 0.0
        %2406 = vmatprep.subr.mxu0 0.0
        %2407 = vmatpush1.msra.mxu0 0.0
        %2408 = vmatprep.subr.mxu0 0.0
        %2409 = vmatpush1.msra.mxu0 0.0
        %2410 = vmatprep.subr.mxu0 0.0
        %2411 = vmatpush1.msra.mxu0 0.0
        %2412 = vmatprep.subr.mxu0 0.0
        %2413 = vmatpush1.msra.mxu0 0.0
        %2414 = vmatprep.subr.mxu0 0.0
        %2415 = vmatpush1.msra.mxu0 0.0
        %2416 = vmatprep.mubr.f32.mxu0 0.0
        %2417 = vmatmul.mubr.f32.gmra.mrb[0].mxu0 %v2350
        %v2418 = vpop.f32.mrb[0].mxu0
        %v2419 = vadd.f32 %v2348, %v2418
        %v2420 = vpop.f32.mrb[0].mxu0
        %2421 = vdwg.mxu0
        %v2422 = vadd.f32 %v1477, %v2419
        %v2423 = vsel %vm546, %v2422, 0.0
        %2424 = vadd.xlane.f32.xlu0 %v2423
        %v2425 = vpop.xlane.xlu0 %2424
        %v2426 = vmul.f32 %v2425, %v1457
        %v2427 = vsub.f32 %v2422, %v2426
        %v2428 = vmul.f32 %v2427, %v2427
        %v2429 = vsel %vm546, %v2428, 0.0
        %2430 = vadd.xlane.f32.xlu0 %v2429
        %v2431 = vpop.xlane.xlu0 %2430
        %v2432 = vmul.f32 %v2431, %v1457
        %v2433 = vadd.f32 %v2432, 1e-05
        %v2434 = vrsqrt.pop %v2433
        %v2435 = vmul.f32 %v2427, %v2434
        %v2436 = vlaneseq
        %v2437 = vshrl.u32 %v2436, 7
        %v2438 = vsub.s32 7, %v2437
        %v2439 = vrot.slane %v539, %v2438
        %v2440 = vmul.f32 %v2435, %v2439
        %v2441 = vlaneseq
        %v2442 = vshrl.u32 %v2441, 7
        %v2443 = vsub.s32 0, %v2442
        %v2444 = vrot.slane %v540, %v2443
        %v2445 = vadd.f32 %v2440, %v2444
        %v2447 = vlaneseq
        %v2448 = vshrl.u32 %v2447, 7
        %v2449 = vsub.s32 0, %v2448
        %v2450 = vrot.slane %v538, %v2449
        %v2453 = vsel %vm546, %v2445, 0
        %2455 = vmatprep.subr.mxu0 0.0
        %2456 = vmatpush1.msra.mxu0 %v525
        %2457 = vmatprep.subr.mxu0 0.0
        %2458 = vmatpush1.msra.mxu0 %v526
        %2459 = vmatprep.subr.mxu0 0.0
        %2460 = vmatpush1.msra.mxu0 %v527
        %2461 = vmatprep.subr.mxu0 0.0
        %2462 = vmatpush1.msra.mxu0 %v528
        %2463 = vmatprep.subr.mxu0 0.0
        %2464 = vmatpush1.msra.mxu0 0.0
        %2465 = vmatprep.subr.mxu0 0.0
        %2466 = vmatpush1.msra.mxu0 0.0
        %2467 = vmatprep.subr.mxu0 0.0
        %2468 = vmatpush1.msra.mxu0 0.0
        %2469 = vmatprep.subr.mxu0 0.0
        %2470 = vmatpush1.msra.mxu0 0.0
        %2471 = vmatprep.subr.mxu0 0.0
        %2472 = vmatpush1.msra.mxu0 0.0
        %2473 = vmatprep.subr.mxu0 0.0
        %2474 = vmatpush1.msra.mxu0 0.0
        %2475 = vmatprep.subr.mxu0 0.0
        %2476 = vmatpush1.msra.mxu0 0.0
        %2477 = vmatprep.subr.mxu0 0.0
        %2478 = vmatpush1.msra.mxu0 0.0
        %2479 = vmatprep.subr.mxu0 0.0
        %2480 = vmatpush1.msra.mxu0 0.0
        %2481 = vmatprep.subr.mxu0 0.0
        %2482 = vmatpush1.msra.mxu0 0.0
        %2483 = vmatprep.subr.mxu0 0.0
        %2484 = vmatpush1.msra.mxu0 0.0
        %2485 = vmatprep.subr.mxu0 0.0
        %2486 = vmatpush1.msra.mxu0 0.0
        %2487 = vmatprep.subr.mxu0 0.0
        %2488 = vmatpush1.msra.mxu0 0.0
        %2489 = vmatprep.subr.mxu0 0.0
        %2490 = vmatpush1.msra.mxu0 0.0
        %2491 = vmatprep.subr.mxu0 0.0
        %2492 = vmatpush1.msra.mxu0 0.0
        %2493 = vmatprep.subr.mxu0 0.0
        %2494 = vmatpush1.msra.mxu0 0.0
        %2495 = vmatprep.subr.mxu0 0.0
        %2496 = vmatpush1.msra.mxu0 0.0
        %2497 = vmatprep.subr.mxu0 0.0
        %2498 = vmatpush1.msra.mxu0 0.0
        %2499 = vmatprep.subr.mxu0 0.0
        %2500 = vmatpush1.msra.mxu0 0.0
        %2501 = vmatprep.subr.mxu0 0.0
        %2502 = vmatpush1.msra.mxu0 0.0
        %2503 = vmatprep.subr.mxu0 0.0
        %2504 = vmatpush1.msra.mxu0 0.0
        %2505 = vmatprep.subr.mxu0 0.0
        %2506 = vmatpush1.msra.mxu0 0.0
        %2507 = vmatprep.subr.mxu0 0.0
        %2508 = vmatpush1.msra.mxu0 0.0
        %2509 = vmatprep.subr.mxu0 0.0
        %2510 = vmatpush1.msra.mxu0 0.0
        %2511 = vmatprep.subr.mxu0 0.0
        %2512 = vmatpush1.msra.mxu0 0.0
        %2513 = vmatprep.subr.mxu0 0.0
        %2514 = vmatpush1.msra.mxu0 0.0
        %2515 = vmatprep.subr.mxu0 0.0
        %2516 = vmatpush1.msra.mxu0 0.0
        %2517 = vmatprep.subr.mxu0 0.0
        %2518 = vmatpush1.msra.mxu0 0.0
        %2519 = vmatprep.mubr.f32.mxu0 0.0
        %2520 = vmatmul.mubr.f32.gmra.mrb[0].mxu0 %v2453
        %v2521 = vpop.f32.mrb[0].mxu0
        %v2522 = vadd.f32 %v2450, %v2521
        %v2523 = vpop.f32.mrb[0].mxu0
        %2524 = vdwg.mxu0
        %v2525 = vmax.f32 %v2522, 0.0
        %v2526 = vlaneseq
        %v2527 = vshrl.u32 %v2526, 7
        %v2528 = vsub.s32 4, %v2527
        %v2529 = vrot.slane %v539, %v2528
        %vm2530 = vcmask 523264
        %v2532 = vsel %vm2530, %v2525, 0
        %2534 = vmatprep.subr.mxu0 0.0
        %2535 = vmatpush1.msra.mxu0 %v529
        %2536 = vmatprep.subr.mxu0 0.0
        %2537 = vmatpush1.msra.mxu0 %v530
        %2538 = vmatprep.subr.mxu0 0.0
        %2539 = vmatpush1.msra.mxu0 %v531
        %2540 = vmatprep.subr.mxu0 0.0
        %2541 = vmatpush1.msra.mxu0 %v532
        %2542 = vmatprep.subr.mxu0 0.0
        %2543 = vmatpush1.msra.mxu0 %v533
        %2544 = vmatprep.subr.mxu0 0.0
        %2545 = vmatpush1.msra.mxu0 %v534
        %2546 = vmatprep.subr.mxu0 0.0
        %2547 = vmatpush1.msra.mxu0 %v535
        %2548 = vmatprep.subr.mxu0 0.0
        %2549 = vmatpush1.msra.mxu0 %v536
        %2550 = vmatprep.subr.mxu0 0.0
        %2551 = vmatpush1.msra.mxu0 0.0
        %2552 = vmatprep.subr.mxu0 0.0
        %2553 = vmatpush1.msra.mxu0 0.0
        %2554 = vmatprep.subr.mxu0 0.0
        %2555 = vmatpush1.msra.mxu0 0.0
        %2556 = vmatprep.subr.mxu0 0.0
        %2557 = vmatpush1.msra.mxu0 0.0
        %2558 = vmatprep.subr.mxu0 0.0
        %2559 = vmatpush1.msra.mxu0 0.0
        %2560 = vmatprep.subr.mxu0 0.0
        %2561 = vmatpush1.msra.mxu0 0.0
        %2562 = vmatprep.subr.mxu0 0.0
        %2563 = vmatpush1.msra.mxu0 0.0
        %2564 = vmatprep.subr.mxu0 0.0
        %2565 = vmatpush1.msra.mxu0 0.0
        %2566 = vmatprep.subr.mxu0 0.0
        %2567 = vmatpush1.msra.mxu0 0.0
        %2568 = vmatprep.subr.mxu0 0.0
        %2569 = vmatpush1.msra.mxu0 0.0
        %2570 = vmatprep.subr.mxu0 0.0
        %2571 = vmatpush1.msra.mxu0 0.0
        %2572 = vmatprep.subr.mxu0 0.0
        %2573 = vmatpush1.msra.mxu0 0.0
        %2574 = vmatprep.subr.mxu0 0.0
        %2575 = vmatpush1.msra.mxu0 0.0
        %2576 = vmatprep.subr.mxu0 0.0
        %2577 = vmatpush1.msra.mxu0 0.0
        %2578 = vmatprep.subr.mxu0 0.0
        %2579 = vmatpush1.msra.mxu0 0.0
        %2580 = vmatprep.subr.mxu0 0.0
        %2581 = vmatpush1.msra.mxu0 0.0
        %2582 = vmatprep.subr.mxu0 0.0
        %2583 = vmatpush1.msra.mxu0 0.0
        %2584 = vmatprep.subr.mxu0 0.0
        %2585 = vmatpush1.msra.mxu0 0.0
        %2586 = vmatprep.subr.mxu0 0.0
        %2587 = vmatpush1.msra.mxu0 0.0
        %2588 = vmatprep.subr.mxu0 0.0
        %2589 = vmatpush1.msra.mxu0 0.0
        %2590 = vmatprep.subr.mxu0 0.0
        %2591 = vmatpush1.msra.mxu0 0.0
        %2592 = vmatprep.subr.mxu0 0.0
        %2593 = vmatpush1.msra.mxu0 0.0
        %2594 = vmatprep.subr.mxu0 0.0
        %2595 = vmatpush1.msra.mxu0 0.0
        %2596 = vmatprep.subr.mxu0 0.0
        %2597 = vmatpush1.msra.mxu0 0.0
        %2598 = vmatprep.mubr.f32.mxu0 0.0
        %2599 = vmatmul.mubr.f32.gmra.mrb[0].mxu0 %v2532
        %v2600 = vpop.f32.mrb[0].mxu0
        %v2601 = vadd.f32 %v2529, %v2600
        %v2602 = vpop.f32.mrb[0].mxu0
        %2603 = vdwg.mxu0
        %v2604 = vadd.f32 %v2445, %v2601
        %v2605 = vsel %vm546, %v2604, 0.0
        %2606 = vadd.xlane.f32.xlu0 %v2605
        %v2607 = vpop.xlane.xlu0 %2606
        %v2608 = vmul.f32 %v2607, %v1457
        %v2609 = vsub.f32 %v2604, %v2608
        %v2610 = vmul.f32 %v2609, %v2609
        %v2611 = vsel %vm546, %v2610, 0.0
        %2612 = vadd.xlane.f32.xlu0 %v2611
        %v2613 = vpop.xlane.xlu0 %2612
        %v2614 = vmul.f32 %v2613, %v1457
        %v2615 = vadd.f32 %v2614, 1e-05
        %v2616 = vrsqrt.pop %v2615
        %v2617 = vmul.f32 %v2609, %v2616
        %v2618 = vlaneseq
        %v2619 = vshrl.u32 %v2618, 7
        %v2620 = vsub.s32 1, %v2619
        %v2621 = vrot.slane %v540, %v2620
        %v2622 = vmul.f32 %v2617, %v2621
        %v2623 = vlaneseq
        %v2624 = vshrl.u32 %v2623, 7
        %v2625 = vsub.s32 2, %v2624
        %v2626 = vrot.slane %v540, %v2625
        %v2627 = vadd.f32 %v2622, %v2626
        %2628 = vst.msk [vmem:[%s492] sm:$0xff] %vm546, %v2627
        %s2629 = scalar_lea.vmem [#allocation8], 64
        %v2630 = vld [vmem:[%s2629] sm:$0xff]
        %v2631 = vld [vmem:[%s2629 + $0x8] sm:$0xff]
        %v2632 = vld [vmem:[%s2629 + $0x10] sm:$0xff]
        %v2633 = vld [vmem:[%s2629 + $0x18] sm:$0xff]
        %s2634 = scalar_lea.vmem [#allocation8], 96
        %v2635 = vld [vmem:[%s2634] sm:$0xff]
        %v2636 = vld [vmem:[%s2634 + $0x8] sm:$0xff]
        %v2637 = vld [vmem:[%s2634 + $0x10] sm:$0xff]
        %v2638 = vld [vmem:[%s2634 + $0x18] sm:$0xff]
        %s2639 = scalar_lea.vmem %s4, 128
        %v2640 = vld [vmem:[%s2639] sm:$0xff]
        %v2641 = vld [vmem:[%s2639 + $0x8] sm:$0xff]
        %v2642 = vld [vmem:[%s2639 + $0x10] sm:$0xff]
        %v2643 = vld [vmem:[%s2639 + $0x18] sm:$0xff]
        %s2644 = scalar_lea.vmem %s4, 160
        %v2645 = vld [vmem:[%s2644] sm:$0xff]
        %v2646 = vld [vmem:[%s2644 + $0x8] sm:$0xff]
        %v2647 = vld [vmem:[%s2644 + $0x10] sm:$0xff]
        %v2648 = vld [vmem:[%s2644 + $0x18] sm:$0xff]
        %s2649 = scalar_lea.vmem %s4, 192
        %v2650 = vld [vmem:[%s2649] sm:$0xff]
        %v2651 = vld [vmem:[%s2649 + $0x8] sm:$0xff]
        %v2652 = vld [vmem:[%s2649 + $0x10] sm:$0xff]
        %v2653 = vld [vmem:[%s2649 + $0x18] sm:$0xff]
        %s2654 = scalar_lea.vmem %s4, 224
        %v2655 = vld [vmem:[%s2654] sm:$0xff]
        %v2656 = vld [vmem:[%s2654 + $0x8] sm:$0xff]
        %v2657 = vld [vmem:[%s2654 + $0x10] sm:$0xff]
        %v2658 = vld [vmem:[%s2654 + $0x18] sm:$0xff]
        %s2659 = scalar_lea.vmem [#allocation10], 32
        %v2660 = vld [vmem:[%s2659] sm:$0xff]
        %v2661 = vld [vmem:[%s2659 + $0x8] sm:$0xff]
        %v2662 = vld [vmem:[%s2659 + $0x10] sm:$0xff]
        %v2663 = vld [vmem:[%s2659 + $0x18] sm:$0xff]
        %s2664 = scalar_lea.vmem %s6, 64
        %v2665 = vld [vmem:[%s2664] sm:$0xff]
        %v2666 = vld [vmem:[%s2664 + $0x8] sm:$0xff]
        %v2667 = vld [vmem:[%s2664 + $0x10] sm:$0xff]
        %v2668 = vld [vmem:[%s2664 + $0x18] sm:$0xff]
        %v2669 = vld [vmem:[%s2664 + $0x20] sm:$0xff]
        %v2670 = vld [vmem:[%s2664 + $0x28] sm:$0xff]
        %v2671 = vld [vmem:[%s2664 + $0x30] sm:$0xff]
        %v2672 = vld [vmem:[%s2664 + $0x38] sm:$0xff]
        %s2673 = scalar_lea.vmem [#allocation11], 2
        %v2674 = vld [vmem:[%s2673] sm:$0x3]
        %s2675 = scalar_lea.vmem %s8, 1
        %v2676 = vld [vmem:[%s2675] sm:$0x1]
        %s2677 = scalar_lea.vmem %s9, 16
        %v2678 = vld [vmem:[%s2677] sm:$0xff]
        %v2679 = vld [vmem:[%s2677 + $0x8] sm:$0x7]
        %v2680 = vadd.f32 %v2627, %v494
        %v2681 = vlaneseq
        %v2682 = vshrl.u32 %v2681, 7
        %v2683 = vsub.s32 0, %v2682
        %v2684 = vrot.slane %v2674, %v2683
        %v2686 = vsel %vm546, %v2680, 0
        %2688 = vmatprep.subr.mxu0 0.0
        %2689 = vmatpush1.msra.mxu0 %v2630
        %2690 = vmatprep.subr.mxu0 0.0
        %2691 = vmatpush1.msra.mxu0 %v2631
        %2692 = vmatprep.subr.mxu0 0.0
        %2693 = vmatpush1.msra.mxu0 %v2632
        %2694 = vmatprep.subr.mxu0 0.0
        %2695 = vmatpush1.msra.mxu0 %v2633
        %2696 = vmatprep.subr.mxu0 0.0
        %2697 = vmatpush1.msra.mxu0 0.0
        %2698 = vmatprep.subr.mxu0 0.0
        %2699 = vmatpush1.msra.mxu0 0.0
        %2700 = vmatprep.subr.mxu0 0.0
        %2701 = vmatpush1.msra.mxu0 0.0
        %2702 = vmatprep.subr.mxu0 0.0
        %2703 = vmatpush1.msra.mxu0 0.0
        %2704 = vmatprep.subr.mxu0 0.0
        %2705 = vmatpush1.msra.mxu0 0.0
        %2706 = vmatprep.subr.mxu0 0.0
        %2707 = vmatpush1.msra.mxu0 0.0
        %2708 = vmatprep.subr.mxu0 0.0
        %2709 = vmatpush1.msra.mxu0 0.0
        %2710 = vmatprep.subr.mxu0 0.0
        %2711 = vmatpush1.msra.mxu0 0.0
        %2712 = vmatprep.subr.mxu0 0.0
        %2713 = vmatpush1.msra.mxu0 0.0
        %2714 = vmatprep.subr.mxu0 0.0
        %2715 = vmatpush1.msra.mxu0 0.0
        %2716 = vmatprep.subr.mxu0 0.0
        %2717 = vmatpush1.msra.mxu0 0.0
        %2718 = vmatprep.subr.mxu0 0.0
        %2719 = vmatpush1.msra.mxu0 0.0
        %2720 = vmatprep.subr.mxu0 0.0
        %2721 = vmatpush1.msra.mxu0 0.0
        %2722 = vmatprep.subr.mxu0 0.0
        %2723 = vmatpush1.msra.mxu0 0.0
        %2724 = vmatprep.subr.mxu0 0.0
        %2725 = vmatpush1.msra.mxu0 0.0
        %2726 = vmatprep.subr.mxu0 0.0
        %2727 = vmatpush1.msra.mxu0 0.0
        %2728 = vmatprep.subr.mxu0 0.0
        %2729 = vmatpush1.msra.mxu0 0.0
        %2730 = vmatprep.subr.mxu0 0.0
        %2731 = vmatpush1.msra.mxu0 0.0
        %2732 = vmatprep.subr.mxu0 0.0
        %2733 = vmatpush1.msra.mxu0 0.0
        %2734 = vmatprep.subr.mxu0 0.0
        %2735 = vmatpush1.msra.mxu0 0.0
        %2736 = vmatprep.subr.mxu0 0.0
        %2737 = vmatpush1.msra.mxu0 0.0
        %2738 = vmatprep.subr.mxu0 0.0
        %2739 = vmatpush1.msra.mxu0 0.0
        %2740 = vmatprep.subr.mxu0 0.0
        %2741 = vmatpush1.msra.mxu0 0.0
        %2742 = vmatprep.subr.mxu0 0.0
        %2743 = vmatpush1.msra.mxu0 0.0
        %2744 = vmatprep.subr.mxu0 0.0
        %2745 = vmatpush1.msra.mxu0 0.0
        %2746 = vmatprep.subr.mxu0 0.0
        %2747 = vmatpush1.msra.mxu0 0.0
        %2748 = vmatprep.subr.mxu0 0.0
        %2749 = vmatpush1.msra.mxu0 0.0
        %2750 = vmatprep.subr.mxu0 0.0
        %2751 = vmatpush1.msra.mxu0 0.0
        %2752 = vmatprep.mubr.f32.mxu0 0.0
        %2753 = vmatmul.mubr.f32.gmra.mrb[0].mxu0 %v2686
        %v2754 = vpop.f32.mrb[0].mxu0
        %v2755 = vadd.f32 %v2684, %v2754
        %v2756 = vpop.f32.mrb[0].mxu0
        %2757 = vdwg.mxu0
        %v2758 = vlaneseq
        %v2759 = vshrl.u32 %v2758, 7
        %v2760 = vsub.s32 0, %v2759
        %v2761 = vrot.slane %v2678, %v2760
        %v2763 = vsel %vm546, %v2627, 0
        %2765 = vmatprep.subr.mxu0 0.0
        %2766 = vmatpush1.msra.mxu0 %v2640
        %2767 = vmatprep.subr.mxu0 0.0
        %2768 = vmatpush1.msra.mxu0 %v2641
        %2769 = vmatprep.subr.mxu0 0.0
        %2770 = vmatpush1.msra.mxu0 %v2642
        %2771 = vmatprep.subr.mxu0 0.0
        %2772 = vmatpush1.msra.mxu0 %v2643
        %2773 = vmatprep.subr.mxu0 0.0
        %2774 = vmatpush1.msra.mxu0 0.0
        %2775 = vmatprep.subr.mxu0 0.0
        %2776 = vmatpush1.msra.mxu0 0.0
        %2777 = vmatprep.subr.mxu0 0.0
        %2778 = vmatpush1.msra.mxu0 0.0
        %2779 = vmatprep.subr.mxu0 0.0
        %2780 = vmatpush1.msra.mxu0 0.0
        %2781 = vmatprep.subr.mxu0 0.0
        %2782 = vmatpush1.msra.mxu0 0.0
        %2783 = vmatprep.subr.mxu0 0.0
        %2784 = vmatpush1.msra.mxu0 0.0
        %2785 = vmatprep.subr.mxu0 0.0
        %2786 = vmatpush1.msra.mxu0 0.0
        %2787 = vmatprep.subr.mxu0 0.0
        %2788 = vmatpush1.msra.mxu0 0.0
        %2789 = vmatprep.subr.mxu0 0.0
        %2790 = vmatpush1.msra.mxu0 0.0
        %2791 = vmatprep.subr.mxu0 0.0
        %2792 = vmatpush1.msra.mxu0 0.0
        %2793 = vmatprep.subr.mxu0 0.0
        %2794 = vmatpush1.msra.mxu0 0.0
        %2795 = vmatprep.subr.mxu0 0.0
        %2796 = vmatpush1.msra.mxu0 0.0
        %2797 = vmatprep.subr.mxu0 0.0
        %2798 = vmatpush1.msra.mxu0 0.0
        %2799 = vmatprep.subr.mxu0 0.0
        %2800 = vmatpush1.msra.mxu0 0.0
        %2801 = vmatprep.subr.mxu0 0.0
        %2802 = vmatpush1.msra.mxu0 0.0
        %2803 = vmatprep.subr.mxu0 0.0
        %2804 = vmatpush1.msra.mxu0 0.0
        %2805 = vmatprep.subr.mxu0 0.0
        %2806 = vmatpush1.msra.mxu0 0.0
        %2807 = vmatprep.subr.mxu0 0.0
        %2808 = vmatpush1.msra.mxu0 0.0
        %2809 = vmatprep.subr.mxu0 0.0
        %2810 = vmatpush1.msra.mxu0 0.0
        %2811 = vmatprep.subr.mxu0 0.0
        %2812 = vmatpush1.msra.mxu0 0.0
        %2813 = vmatprep.subr.mxu0 0.0
        %2814 = vmatpush1.msra.mxu0 0.0
        %2815 = vmatprep.subr.mxu0 0.0
        %2816 = vmatpush1.msra.mxu0 0.0
        %2817 = vmatprep.subr.mxu0 0.0
        %2818 = vmatpush1.msra.mxu0 0.0
        %2819 = vmatprep.subr.mxu0 0.0
        %2820 = vmatpush1.msra.mxu0 0.0
        %2821 = vmatprep.subr.mxu0 0.0
        %2822 = vmatpush1.msra.mxu0 0.0
        %2823 = vmatprep.subr.mxu0 0.0
        %2824 = vmatpush1.msra.mxu0 0.0
        %2825 = vmatprep.subr.mxu0 0.0
        %2826 = vmatpush1.msra.mxu0 0.0
        %2827 = vmatprep.subr.mxu0 0.0
        %2828 = vmatpush1.msra.mxu0 0.0
        %2829 = vmatprep.mubr.f32.mxu0 0.0
        %2830 = vmatmul.mubr.f32.gmra.mrb[0].mxu0 %v2763
        %v2831 = vpop.f32.mrb[0].mxu0
        %v2832 = vadd.f32 %v2761, %v2831
        %v2833 = vpop.f32.mrb[0].mxu0
        %2834 = vdwg.mxu0
        %2836 = vrot.lane.b32.xlu0 %v2755, 96
        %v2837 = vpop.permute.xlu0 %2836
        %v2838 = vsel %vm700, %v2755, 0
        %v2840 = vsel %vm700, %v2837, 0
        %2842 = vmatprep.subr.mxu0 0.0
        %2843 = vmatpush1.xpose.msra.mxu0 %v2840
        %2844 = vmatprep.subr.mxu0 0.0
        %2845 = vmatpush1.xpose.msra.mxu0 0.0
        %2846 = vmatprep.subr.mxu0 0.0
        %2847 = vmatpush1.xpose.msra.mxu0 0.0
        %2848 = vmatprep.subr.mxu0 0.0
        %2849 = vmatpush1.xpose.msra.mxu0 0.0
        %2850 = vmatprep.subr.mxu0 0.0
        %2851 = vmatpush1.xpose.msra.mxu0 0.0
        %2852 = vmatprep.subr.mxu0 0.0
        %2853 = vmatpush1.xpose.msra.mxu0 0.0
        %2854 = vmatprep.subr.mxu0 0.0
        %2855 = vmatpush1.xpose.msra.mxu0 0.0
        %2856 = vmatprep.subr.mxu0 0.0
        %2857 = vmatpush1.xpose.msra.mxu0 0.0
        %2858 = vmatprep.subr.mxu0 0.0
        %2859 = vmatpush1.xpose.msra.mxu0 0.0
        %2860 = vmatprep.subr.mxu0 0.0
        %2861 = vmatpush1.xpose.msra.mxu0 0.0
        %2862 = vmatprep.subr.mxu0 0.0
        %2863 = vmatpush1.xpose.msra.mxu0 0.0
        %2864 = vmatprep.subr.mxu0 0.0
        %2865 = vmatpush1.xpose.msra.mxu0 0.0
        %2866 = vmatprep.subr.mxu0 0.0
        %2867 = vmatpush1.xpose.msra.mxu0 0.0
        %2868 = vmatprep.subr.mxu0 0.0
        %2869 = vmatpush1.xpose.msra.mxu0 0.0
        %2870 = vmatprep.subr.mxu0 0.0
        %2871 = vmatpush1.xpose.msra.mxu0 0.0
        %2872 = vmatprep.subr.mxu0 0.0
        %2873 = vmatpush1.xpose.msra.mxu0 0.0
        %2874 = vmatprep.subr.mxu0 0.0
        %2875 = vmatpush1.xpose.msra.mxu0 0.0
        %2876 = vmatprep.subr.mxu0 0.0
        %2877 = vmatpush1.xpose.msra.mxu0 0.0
        %2878 = vmatprep.subr.mxu0 0.0
        %2879 = vmatpush1.xpose.msra.mxu0 0.0
        %2880 = vmatprep.subr.mxu0 0.0
        %2881 = vmatpush1.xpose.msra.mxu0 0.0
        %2882 = vmatprep.subr.mxu0 0.0
        %2883 = vmatpush1.xpose.msra.mxu0 0.0
        %2884 = vmatprep.subr.mxu0 0.0
        %2885 = vmatpush1.xpose.msra.mxu0 0.0
        %2886 = vmatprep.subr.mxu0 0.0
        %2887 = vmatpush1.xpose.msra.mxu0 0.0
        %2888 = vmatprep.subr.mxu0 0.0
        %2889 = vmatpush1.xpose.msra.mxu0 0.0
        %2890 = vmatprep.subr.mxu0 0.0
        %2891 = vmatpush1.xpose.msra.mxu0 0.0
        %2892 = vmatprep.subr.mxu0 0.0
        %2893 = vmatpush1.xpose.msra.mxu0 0.0
        %2894 = vmatprep.subr.mxu0 0.0
        %2895 = vmatpush1.xpose.msra.mxu0 0.0
        %2896 = vmatprep.subr.mxu0 0.0
        %2897 = vmatpush1.xpose.msra.mxu0 0.0
        %2898 = vmatprep.subr.mxu0 0.0
        %2899 = vmatpush1.xpose.msra.mxu0 0.0
        %2900 = vmatprep.subr.mxu0 0.0
        %2901 = vmatpush1.xpose.msra.mxu0 0.0
        %2902 = vmatprep.subr.mxu0 0.0
        %2903 = vmatpush1.xpose.msra.mxu0 0.0
        %2904 = vmatprep.subr.mxu0 0.0
        %2905 = vmatpush1.xpose.msra.mxu0 0.0
        %2906 = vmatprep.mubr.f32.mxu0 0.0
        %2907 = vmatmul.mubr.f32.gmra.mrb[0].mxu0 %v2838
        %v2908 = vpop.f32.mrb[0].mxu0
        %v2909 = vadd.f32 0.0, %v2908
        %v2910 = vpop.f32.mrb[0].mxu0
        %2911 = vdwg.mxu0
        %2912 = vrot.lane.b32.xlu0 %v2755, 120
        %v2913 = vpop.permute.xlu0 %2912
        %2914 = vrot.lane.b32.xlu0 %v2755, 88
        %v2915 = vpop.permute.xlu0 %2914
        %v2916 = vsel %vm700, %v2913, 0
        %v2918 = vsel %vm700, %v2915, 0
        %2920 = vmatprep.subr.mxu0 0.0
        %2921 = vmatpush1.xpose.msra.mxu0 %v2918
        %2922 = vmatprep.subr.mxu0 0.0
        %2923 = vmatpush1.xpose.msra.mxu0 0.0
        %2924 = vmatprep.subr.mxu0 0.0
        %2925 = vmatpush1.xpose.msra.mxu0 0.0
        %2926 = vmatprep.subr.mxu0 0.0
        %2927 = vmatpush1.xpose.msra.mxu0 0.0
        %2928 = vmatprep.subr.mxu0 0.0
        %2929 = vmatpush1.xpose.msra.mxu0 0.0
        %2930 = vmatprep.subr.mxu0 0.0
        %2931 = vmatpush1.xpose.msra.mxu0 0.0
        %2932 = vmatprep.subr.mxu0 0.0
        %2933 = vmatpush1.xpose.msra.mxu0 0.0
        %2934 = vmatprep.subr.mxu0 0.0
        %2935 = vmatpush1.xpose.msra.mxu0 0.0
        %2936 = vmatprep.subr.mxu0 0.0
        %2937 = vmatpush1.xpose.msra.mxu0 0.0
        %2938 = vmatprep.subr.mxu0 0.0
        %2939 = vmatpush1.xpose.msra.mxu0 0.0
        %2940 = vmatprep.subr.mxu0 0.0
        %2941 = vmatpush1.xpose.msra.mxu0 0.0
        %2942 = vmatprep.subr.mxu0 0.0
        %2943 = vmatpush1.xpose.msra.mxu0 0.0
        %2944 = vmatprep.subr.mxu0 0.0
        %2945 = vmatpush1.xpose.msra.mxu0 0.0
        %2946 = vmatprep.subr.mxu0 0.0
        %2947 = vmatpush1.xpose.msra.mxu0 0.0
        %2948 = vmatprep.subr.mxu0 0.0
        %2949 = vmatpush1.xpose.msra.mxu0 0.0
        %2950 = vmatprep.subr.mxu0 0.0
        %2951 = vmatpush1.xpose.msra.mxu0 0.0
        %2952 = vmatprep.subr.mxu0 0.0
        %2953 = vmatpush1.xpose.msra.mxu0 0.0
        %2954 = vmatprep.subr.mxu0 0.0
        %2955 = vmatpush1.xpose.msra.mxu0 0.0
        %2956 = vmatprep.subr.mxu0 0.0
        %2957 = vmatpush1.xpose.msra.mxu0 0.0
        %2958 = vmatprep.subr.mxu0 0.0
        %2959 = vmatpush1.xpose.msra.mxu0 0.0
        %2960 = vmatprep.subr.mxu0 0.0
        %2961 = vmatpush1.xpose.msra.mxu0 0.0
        %2962 = vmatprep.subr.mxu0 0.0
        %2963 = vmatpush1.xpose.msra.mxu0 0.0
        %2964 = vmatprep.subr.mxu0 0.0
        %2965 = vmatpush1.xpose.msra.mxu0 0.0
        %2966 = vmatprep.subr.mxu0 0.0
        %2967 = vmatpush1.xpose.msra.mxu0 0.0
        %2968 = vmatprep.subr.mxu0 0.0
        %2969 = vmatpush1.xpose.msra.mxu0 0.0
        %2970 = vmatprep.subr.mxu0 0.0
        %2971 = vmatpush1.xpose.msra.mxu0 0.0
        %2972 = vmatprep.subr.mxu0 0.0
        %2973 = vmatpush1.xpose.msra.mxu0 0.0
        %2974 = vmatprep.subr.mxu0 0.0
        %2975 = vmatpush1.xpose.msra.mxu0 0.0
        %2976 = vmatprep.subr.mxu0 0.0
        %2977 = vmatpush1.xpose.msra.mxu0 0.0
        %2978 = vmatprep.subr.mxu0 0.0
        %2979 = vmatpush1.xpose.msra.mxu0 0.0
        %2980 = vmatprep.subr.mxu0 0.0
        %2981 = vmatpush1.xpose.msra.mxu0 0.0
        %2982 = vmatprep.subr.mxu0 0.0
        %2983 = vmatpush1.xpose.msra.mxu0 0.0
        %2984 = vmatprep.mubr.f32.mxu0 0.0
        %2985 = vmatmul.mubr.f32.gmra.mrb[0].mxu0 %v2916
        %v2986 = vpop.f32.mrb[0].mxu0
        %v2987 = vadd.f32 0.0, %v2986
        %v2988 = vpop.f32.mrb[0].mxu0
        %2989 = vdwg.mxu0
        %2990 = vrot.lane.b32.xlu0 %v2755, 112
        %v2991 = vpop.permute.xlu0 %2990
        %2992 = vrot.lane.b32.xlu0 %v2755, 80
        %v2993 = vpop.permute.xlu0 %2992
        %v2994 = vsel %vm700, %v2991, 0
        %v2996 = vsel %vm700, %v2993, 0
        %2998 = vmatprep.subr.mxu0 0.0
        %2999 = vmatpush1.xpose.msra.mxu0 %v2996
        %3000 = vmatprep.subr.mxu0 0.0
        %3001 = vmatpush1.xpose.msra.mxu0 0.0
        %3002 = vmatprep.subr.mxu0 0.0
        %3003 = vmatpush1.xpose.msra.mxu0 0.0
        %3004 = vmatprep.subr.mxu0 0.0
        %3005 = vmatpush1.xpose.msra.mxu0 0.0
        %3006 = vmatprep.subr.mxu0 0.0
        %3007 = vmatpush1.xpose.msra.mxu0 0.0
        %3008 = vmatprep.subr.mxu0 0.0
        %3009 = vmatpush1.xpose.msra.mxu0 0.0
        %3010 = vmatprep.subr.mxu0 0.0
        %3011 = vmatpush1.xpose.msra.mxu0 0.0
        %3012 = vmatprep.subr.mxu0 0.0
        %3013 = vmatpush1.xpose.msra.mxu0 0.0
        %3014 = vmatprep.subr.mxu0 0.0
        %3015 = vmatpush1.xpose.msra.mxu0 0.0
        %3016 = vmatprep.subr.mxu0 0.0
        %3017 = vmatpush1.xpose.msra.mxu0 0.0
        %3018 = vmatprep.subr.mxu0 0.0
        %3019 = vmatpush1.xpose.msra.mxu0 0.0
        %3020 = vmatprep.subr.mxu0 0.0
        %3021 = vmatpush1.xpose.msra.mxu0 0.0
        %3022 = vmatprep.subr.mxu0 0.0
        %3023 = vmatpush1.xpose.msra.mxu0 0.0
        %3024 = vmatprep.subr.mxu0 0.0
        %3025 = vmatpush1.xpose.msra.mxu0 0.0
        %3026 = vmatprep.subr.mxu0 0.0
        %3027 = vmatpush1.xpose.msra.mxu0 0.0
        %3028 = vmatprep.subr.mxu0 0.0
        %3029 = vmatpush1.xpose.msra.mxu0 0.0
        %3030 = vmatprep.subr.mxu0 0.0
        %3031 = vmatpush1.xpose.msra.mxu0 0.0
        %3032 = vmatprep.subr.mxu0 0.0
        %3033 = vmatpush1.xpose.msra.mxu0 0.0
        %3034 = vmatprep.subr.mxu0 0.0
        %3035 = vmatpush1.xpose.msra.mxu0 0.0
        %3036 = vmatprep.subr.mxu0 0.0
        %3037 = vmatpush1.xpose.msra.mxu0 0.0
        %3038 = vmatprep.subr.mxu0 0.0
        %3039 = vmatpush1.xpose.msra.mxu0 0.0
        %3040 = vmatprep.subr.mxu0 0.0
        %3041 = vmatpush1.xpose.msra.mxu0 0.0
        %3042 = vmatprep.subr.mxu0 0.0
        %3043 = vmatpush1.xpose.msra.mxu0 0.0
        %3044 = vmatprep.subr.mxu0 0.0
        %3045 = vmatpush1.xpose.msra.mxu0 0.0
        %3046 = vmatprep.subr.mxu0 0.0
        %3047 = vmatpush1.xpose.msra.mxu0 0.0
        %3048 = vmatprep.subr.mxu0 0.0
        %3049 = vmatpush1.xpose.msra.mxu0 0.0
        %3050 = vmatprep.subr.mxu0 0.0
        %3051 = vmatpush1.xpose.msra.mxu0 0.0
        %3052 = vmatprep.subr.mxu0 0.0
        %3053 = vmatpush1.xpose.msra.mxu0 0.0
        %3054 = vmatprep.subr.mxu0 0.0
        %3055 = vmatpush1.xpose.msra.mxu0 0.0
        %3056 = vmatprep.subr.mxu0 0.0
        %3057 = vmatpush1.xpose.msra.mxu0 0.0
        %3058 = vmatprep.subr.mxu0 0.0
        %3059 = vmatpush1.xpose.msra.mxu0 0.0
        %3060 = vmatprep.subr.mxu0 0.0
        %3061 = vmatpush1.xpose.msra.mxu0 0.0
        %3062 = vmatprep.mubr.f32.mxu0 0.0
        %3063 = vmatmul.mubr.f32.gmra.mrb[0].mxu0 %v2994
        %v3064 = vpop.f32.mrb[0].mxu0
        %v3065 = vadd.f32 0.0, %v3064
        %v3066 = vpop.f32.mrb[0].mxu0
        %3067 = vdwg.mxu0
        %3068 = vrot.lane.b32.xlu0 %v2755, 104
        %v3069 = vpop.permute.xlu0 %3068
        %3070 = vrot.lane.b32.xlu0 %v2755, 72
        %v3071 = vpop.permute.xlu0 %3070
        %v3072 = vsel %vm700, %v3069, 0
        %v3074 = vsel %vm700, %v3071, 0
        %3076 = vmatprep.subr.mxu0 0.0
        %3077 = vmatpush1.xpose.msra.mxu0 %v3074
        %3078 = vmatprep.subr.mxu0 0.0
        %3079 = vmatpush1.xpose.msra.mxu0 0.0
        %3080 = vmatprep.subr.mxu0 0.0
        %3081 = vmatpush1.xpose.msra.mxu0 0.0
        %3082 = vmatprep.subr.mxu0 0.0
        %3083 = vmatpush1.xpose.msra.mxu0 0.0
        %3084 = vmatprep.subr.mxu0 0.0
        %3085 = vmatpush1.xpose.msra.mxu0 0.0
        %3086 = vmatprep.subr.mxu0 0.0
        %3087 = vmatpush1.xpose.msra.mxu0 0.0
        %3088 = vmatprep.subr.mxu0 0.0
        %3089 = vmatpush1.xpose.msra.mxu0 0.0
        %3090 = vmatprep.subr.mxu0 0.0
        %3091 = vmatpush1.xpose.msra.mxu0 0.0
        %3092 = vmatprep.subr.mxu0 0.0
        %3093 = vmatpush1.xpose.msra.mxu0 0.0
        %3094 = vmatprep.subr.mxu0 0.0
        %3095 = vmatpush1.xpose.msra.mxu0 0.0
        %3096 = vmatprep.subr.mxu0 0.0
        %3097 = vmatpush1.xpose.msra.mxu0 0.0
        %3098 = vmatprep.subr.mxu0 0.0
        %3099 = vmatpush1.xpose.msra.mxu0 0.0
        %3100 = vmatprep.subr.mxu0 0.0
        %3101 = vmatpush1.xpose.msra.mxu0 0.0
        %3102 = vmatprep.subr.mxu0 0.0
        %3103 = vmatpush1.xpose.msra.mxu0 0.0
        %3104 = vmatprep.subr.mxu0 0.0
        %3105 = vmatpush1.xpose.msra.mxu0 0.0
        %3106 = vmatprep.subr.mxu0 0.0
        %3107 = vmatpush1.xpose.msra.mxu0 0.0
        %3108 = vmatprep.subr.mxu0 0.0
        %3109 = vmatpush1.xpose.msra.mxu0 0.0
        %3110 = vmatprep.subr.mxu0 0.0
        %3111 = vmatpush1.xpose.msra.mxu0 0.0
        %3112 = vmatprep.subr.mxu0 0.0
        %3113 = vmatpush1.xpose.msra.mxu0 0.0
        %3114 = vmatprep.subr.mxu0 0.0
        %3115 = vmatpush1.xpose.msra.mxu0 0.0
        %3116 = vmatprep.subr.mxu0 0.0
        %3117 = vmatpush1.xpose.msra.mxu0 0.0
        %3118 = vmatprep.subr.mxu0 0.0
        %3119 = vmatpush1.xpose.msra.mxu0 0.0
        %3120 = vmatprep.subr.mxu0 0.0
        %3121 = vmatpush1.xpose.msra.mxu0 0.0
        %3122 = vmatprep.subr.mxu0 0.0
        %3123 = vmatpush1.xpose.msra.mxu0 0.0
        %3124 = vmatprep.subr.mxu0 0.0
        %3125 = vmatpush1.xpose.msra.mxu0 0.0
        %3126 = vmatprep.subr.mxu0 0.0
        %3127 = vmatpush1.xpose.msra.mxu0 0.0
        %3128 = vmatprep.subr.mxu0 0.0
        %3129 = vmatpush1.xpose.msra.mxu0 0.0
        %3130 = vmatprep.subr.mxu0 0.0
        %3131 = vmatpush1.xpose.msra.mxu0 0.0
        %3132 = vmatprep.subr.mxu0 0.0
        %3133 = vmatpush1.xpose.msra.mxu0 0.0
        %3134 = vmatprep.subr.mxu0 0.0
        %3135 = vmatpush1.xpose.msra.mxu0 0.0
        %3136 = vmatprep.subr.mxu0 0.0
        %3137 = vmatpush1.xpose.msra.mxu0 0.0
        %3138 = vmatprep.subr.mxu0 0.0
        %3139 = vmatpush1.xpose.msra.mxu0 0.0
        %3140 = vmatprep.mubr.f32.mxu0 0.0
        %3141 = vmatmul.mubr.f32.gmra.mrb[0].mxu0 %v3072
        %v3142 = vpop.f32.mrb[0].mxu0
        %v3143 = vadd.f32 0.0, %v3142
        %v3144 = vpop.f32.mrb[0].mxu0
        %3145 = vdwg.mxu0
        %v3146 = vmul.f32 %v2909, 0.35355338
        %v3147 = vmul.f32 %v2987, 0.35355338
        %v3148 = vmul.f32 %v3065, 0.35355338
        %v3149 = vmul.f32 %v3143, 0.35355338
        %v3150 = vsel %vm700, %v3146, -inf
        %3151 = vmax.xlane.f32.xlu0 %v3150
        %v3152 = vpop.xlane.xlu0 %3151
        %v3153 = vsel %vm700, %v3147, -inf
        %3154 = vmax.xlane.f32.xlu0 %v3153
        %v3155 = vpop.xlane.xlu0 %3154
        %v3156 = vsel %vm700, %v3148, -inf
        %3157 = vmax.xlane.f32.xlu0 %v3156
        %v3158 = vpop.xlane.xlu0 %3157
        %v3159 = vsel %vm700, %v3149, -inf
        %3160 = vmax.xlane.f32.xlu0 %v3159
        %v3161 = vpop.xlane.xlu0 %3160
        %v3162 = vsub.f32 %v3146, %v3152
        %v3163 = vsub.f32 %v3147, %v3155
        %v3164 = vsub.f32 %v3148, %v3158
        %v3165 = vsub.f32 %v3149, %v3161
        %v3166 = vmul.f32 %v3162, 1.442695
        %v3167 = vpow.pop %v3166
        %v3168 = vmul.f32 %v3163, 1.442695
        %v3169 = vpow.pop %v3168
        %v3170 = vmul.f32 %v3164, 1.442695
        %v3171 = vpow.pop %v3170
        %v3172 = vmul.f32 %v3165, 1.442695
        %v3173 = vpow.pop %v3172
        %v3174 = vsel %vm700, %v3167, 0.0
        %3175 = vadd.xlane.f32.xlu0 %v3174
        %v3176 = vpop.xlane.xlu0 %3175
        %v3177 = vsel %vm700, %v3169, 0.0
        %3178 = vadd.xlane.f32.xlu0 %v3177
        %v3179 = vpop.xlane.xlu0 %3178
        %v3180 = vsel %vm700, %v3171, 0.0
        %3181 = vadd.xlane.f32.xlu0 %v3180
        %v3182 = vpop.xlane.xlu0 %3181
        %v3183 = vsel %vm700, %v3173, 0.0
        %3184 = vadd.xlane.f32.xlu0 %v3183
        %v3185 = vpop.xlane.xlu0 %3184
        %v3186 = vrcp.pop %v3176
        %v3187 = vrcp.pop %v3179
        %v3188 = vrcp.pop %v3182
        %v3189 = vrcp.pop %v3185
        %v3190 = vmul.f32 %v3167, %v3186
        %v3191 = vmul.f32 %v3169, %v3187
        %v3192 = vmul.f32 %v3171, %v3188
        %v3193 = vmul.f32 %v3173, %v3189
        %v3195 = vsel %vm700, %v3190, 0
        %3197 = vmatprep.subr.mxu0 0.0
        %3198 = vmatpush1.msra.mxu0 %v2832
        %3199 = vmatprep.subr.mxu0 0.0
        %3200 = vmatpush1.msra.mxu0 0.0
        %3201 = vmatprep.subr.mxu0 0.0
        %3202 = vmatpush1.msra.mxu0 0.0
        %3203 = vmatprep.subr.mxu0 0.0
        %3204 = vmatpush1.msra.mxu0 0.0
        %3205 = vmatprep.subr.mxu0 0.0
        %3206 = vmatpush1.msra.mxu0 0.0
        %3207 = vmatprep.subr.mxu0 0.0
        %3208 = vmatpush1.msra.mxu0 0.0
        %3209 = vmatprep.subr.mxu0 0.0
        %3210 = vmatpush1.msra.mxu0 0.0
        %3211 = vmatprep.subr.mxu0 0.0
        %3212 = vmatpush1.msra.mxu0 0.0
        %3213 = vmatprep.subr.mxu0 0.0
        %3214 = vmatpush1.msra.mxu0 0.0
        %3215 = vmatprep.subr.mxu0 0.0
        %3216 = vmatpush1.msra.mxu0 0.0
        %3217 = vmatprep.subr.mxu0 0.0
        %3218 = vmatpush1.msra.mxu0 0.0
        %3219 = vmatprep.subr.mxu0 0.0
        %3220 = vmatpush1.msra.mxu0 0.0
        %3221 = vmatprep.subr.mxu0 0.0
        %3222 = vmatpush1.msra.mxu0 0.0
        %3223 = vmatprep.subr.mxu0 0.0
        %3224 = vmatpush1.msra.mxu0 0.0
        %3225 = vmatprep.subr.mxu0 0.0
        %3226 = vmatpush1.msra.mxu0 0.0
        %3227 = vmatprep.subr.mxu0 0.0
        %3228 = vmatpush1.msra.mxu0 0.0
        %3229 = vmatprep.subr.mxu0 0.0
        %3230 = vmatpush1.msra.mxu0 0.0
        %3231 = vmatprep.subr.mxu0 0.0
        %3232 = vmatpush1.msra.mxu0 0.0
        %3233 = vmatprep.subr.mxu0 0.0
        %3234 = vmatpush1.msra.mxu0 0.0
        %3235 = vmatprep.subr.mxu0 0.0
        %3236 = vmatpush1.msra.mxu0 0.0
        %3237 = vmatprep.subr.mxu0 0.0
        %3238 = vmatpush1.msra.mxu0 0.0
        %3239 = vmatprep.subr.mxu0 0.0
        %3240 = vmatpush1.msra.mxu0 0.0
        %3241 = vmatprep.subr.mxu0 0.0
        %3242 = vmatpush1.msra.mxu0 0.0
        %3243 = vmatprep.subr.mxu0 0.0
        %3244 = vmatpush1.msra.mxu0 0.0
        %3245 = vmatprep.subr.mxu0 0.0
        %3246 = vmatpush1.msra.mxu0 0.0
        %3247 = vmatprep.subr.mxu0 0.0
        %3248 = vmatpush1.msra.mxu0 0.0
        %3249 = vmatprep.subr.mxu0 0.0
        %3250 = vmatpush1.msra.mxu0 0.0
        %3251 = vmatprep.subr.mxu0 0.0
        %3252 = vmatpush1.msra.mxu0 0.0
        %3253 = vmatprep.subr.mxu0 0.0
        %3254 = vmatpush1.msra.mxu0 0.0
        %3255 = vmatprep.subr.mxu0 0.0
        %3256 = vmatpush1.msra.mxu0 0.0
        %3257 = vmatprep.subr.mxu0 0.0
        %3258 = vmatpush1.msra.mxu0 0.0
        %3259 = vmatprep.subr.mxu0 0.0
        %3260 = vmatpush1.msra.mxu0 0.0
        %3261 = vmatprep.mubr.f32.mxu0 0.0
        %3262 = vmatmul.mubr.f32.gmra.mrb[0].mxu0 %v3195
        %v3263 = vpop.f32.mrb[0].mxu0
        %v3264 = vadd.f32 0.0, %v3263
        %v3265 = vpop.f32.mrb[0].mxu0
        %3266 = vdwg.mxu0
        %3268 = vrot.lane.b32.xlu0 %v2832, 120
        %v3269 = vpop.permute.xlu0 %3268
        %v3272 = vsel %vm700, %v3191, 0
        %3274 = vmatprep.subr.mxu0 0.0
        %3275 = vmatpush1.msra.mxu0 %v3269
        %3276 = vmatprep.subr.mxu0 0.0
        %3277 = vmatpush1.msra.mxu0 0.0
        %3278 = vmatprep.subr.mxu0 0.0
        %3279 = vmatpush1.msra.mxu0 0.0
        %3280 = vmatprep.subr.mxu0 0.0
        %3281 = vmatpush1.msra.mxu0 0.0
        %3282 = vmatprep.subr.mxu0 0.0
        %3283 = vmatpush1.msra.mxu0 0.0
        %3284 = vmatprep.subr.mxu0 0.0
        %3285 = vmatpush1.msra.mxu0 0.0
        %3286 = vmatprep.subr.mxu0 0.0
        %3287 = vmatpush1.msra.mxu0 0.0
        %3288 = vmatprep.subr.mxu0 0.0
        %3289 = vmatpush1.msra.mxu0 0.0
        %3290 = vmatprep.subr.mxu0 0.0
        %3291 = vmatpush1.msra.mxu0 0.0
        %3292 = vmatprep.subr.mxu0 0.0
        %3293 = vmatpush1.msra.mxu0 0.0
        %3294 = vmatprep.subr.mxu0 0.0
        %3295 = vmatpush1.msra.mxu0 0.0
        %3296 = vmatprep.subr.mxu0 0.0
        %3297 = vmatpush1.msra.mxu0 0.0
        %3298 = vmatprep.subr.mxu0 0.0
        %3299 = vmatpush1.msra.mxu0 0.0
        %3300 = vmatprep.subr.mxu0 0.0
        %3301 = vmatpush1.msra.mxu0 0.0
        %3302 = vmatprep.subr.mxu0 0.0
        %3303 = vmatpush1.msra.mxu0 0.0
        %3304 = vmatprep.subr.mxu0 0.0
        %3305 = vmatpush1.msra.mxu0 0.0
        %3306 = vmatprep.subr.mxu0 0.0
        %3307 = vmatpush1.msra.mxu0 0.0
        %3308 = vmatprep.subr.mxu0 0.0
        %3309 = vmatpush1.msra.mxu0 0.0
        %3310 = vmatprep.subr.mxu0 0.0
        %3311 = vmatpush1.msra.mxu0 0.0
        %3312 = vmatprep.subr.mxu0 0.0
        %3313 = vmatpush1.msra.mxu0 0.0
        %3314 = vmatprep.subr.mxu0 0.0
        %3315 = vmatpush1.msra.mxu0 0.0
        %3316 = vmatprep.subr.mxu0 0.0
        %3317 = vmatpush1.msra.mxu0 0.0
        %3318 = vmatprep.subr.mxu0 0.0
        %3319 = vmatpush1.msra.mxu0 0.0
        %3320 = vmatprep.subr.mxu0 0.0
        %3321 = vmatpush1.msra.mxu0 0.0
        %3322 = vmatprep.subr.mxu0 0.0
        %3323 = vmatpush1.msra.mxu0 0.0
        %3324 = vmatprep.subr.mxu0 0.0
        %3325 = vmatpush1.msra.mxu0 0.0
        %3326 = vmatprep.subr.mxu0 0.0
        %3327 = vmatpush1.msra.mxu0 0.0
        %3328 = vmatprep.subr.mxu0 0.0
        %3329 = vmatpush1.msra.mxu0 0.0
        %3330 = vmatprep.subr.mxu0 0.0
        %3331 = vmatpush1.msra.mxu0 0.0
        %3332 = vmatprep.subr.mxu0 0.0
        %3333 = vmatpush1.msra.mxu0 0.0
        %3334 = vmatprep.subr.mxu0 0.0
        %3335 = vmatpush1.msra.mxu0 0.0
        %3336 = vmatprep.subr.mxu0 0.0
        %3337 = vmatpush1.msra.mxu0 0.0
        %3338 = vmatprep.mubr.f32.mxu0 0.0
        %3339 = vmatmul.mubr.f32.gmra.mrb[0].mxu0 %v3272
        %v3340 = vpop.f32.mrb[0].mxu0
        %v3341 = vadd.f32 0.0, %v3340
        %v3342 = vpop.f32.mrb[0].mxu0
        %3343 = vdwg.mxu0
        %3344 = vrot.lane.b32.xlu0 %v2832, 112
        %v3345 = vpop.permute.xlu0 %3344
        %v3348 = vsel %vm700, %v3192, 0
        %3350 = vmatprep.subr.mxu0 0.0
        %3351 = vmatpush1.msra.mxu0 %v3345
        %3352 = vmatprep.subr.mxu0 0.0
        %3353 = vmatpush1.msra.mxu0 0.0
        %3354 = vmatprep.subr.mxu0 0.0
        %3355 = vmatpush1.msra.mxu0 0.0
        %3356 = vmatprep.subr.mxu0 0.0
        %3357 = vmatpush1.msra.mxu0 0.0
        %3358 = vmatprep.subr.mxu0 0.0
        %3359 = vmatpush1.msra.mxu0 0.0
        %3360 = vmatprep.subr.mxu0 0.0
        %3361 = vmatpush1.msra.mxu0 0.0
        %3362 = vmatprep.subr.mxu0 0.0
        %3363 = vmatpush1.msra.mxu0 0.0
        %3364 = vmatprep.subr.mxu0 0.0
        %3365 = vmatpush1.msra.mxu0 0.0
        %3366 = vmatprep.subr.mxu0 0.0
        %3367 = vmatpush1.msra.mxu0 0.0
        %3368 = vmatprep.subr.mxu0 0.0
        %3369 = vmatpush1.msra.mxu0 0.0
        %3370 = vmatprep.subr.mxu0 0.0
        %3371 = vmatpush1.msra.mxu0 0.0
        %3372 = vmatprep.subr.mxu0 0.0
        %3373 = vmatpush1.msra.mxu0 0.0
        %3374 = vmatprep.subr.mxu0 0.0
        %3375 = vmatpush1.msra.mxu0 0.0
        %3376 = vmatprep.subr.mxu0 0.0
        %3377 = vmatpush1.msra.mxu0 0.0
        %3378 = vmatprep.subr.mxu0 0.0
        %3379 = vmatpush1.msra.mxu0 0.0
        %3380 = vmatprep.subr.mxu0 0.0
        %3381 = vmatpush1.msra.mxu0 0.0
        %3382 = vmatprep.subr.mxu0 0.0
        %3383 = vmatpush1.msra.mxu0 0.0
        %3384 = vmatprep.subr.mxu0 0.0
        %3385 = vmatpush1.msra.mxu0 0.0
        %3386 = vmatprep.subr.mxu0 0.0
        %3387 = vmatpush1.msra.mxu0 0.0
        %3388 = vmatprep.subr.mxu0 0.0
        %3389 = vmatpush1.msra.mxu0 0.0
        %3390 = vmatprep.subr.mxu0 0.0
        %3391 = vmatpush1.msra.mxu0 0.0
        %3392 = vmatprep.subr.mxu0 0.0
        %3393 = vmatpush1.msra.mxu0 0.0
        %3394 = vmatprep.subr.mxu0 0.0
        %3395 = vmatpush1.msra.mxu0 0.0
        %3396 = vmatprep.subr.mxu0 0.0
        %3397 = vmatpush1.msra.mxu0 0.0
        %3398 = vmatprep.subr.mxu0 0.0
        %3399 = vmatpush1.msra.mxu0 0.0
        %3400 = vmatprep.subr.mxu0 0.0
        %3401 = vmatpush1.msra.mxu0 0.0
        %3402 = vmatprep.subr.mxu0 0.0
        %3403 = vmatpush1.msra.mxu0 0.0
        %3404 = vmatprep.subr.mxu0 0.0
        %3405 = vmatpush1.msra.mxu0 0.0
        %3406 = vmatprep.subr.mxu0 0.0
        %3407 = vmatpush1.msra.mxu0 0.0
        %3408 = vmatprep.subr.mxu0 0.0
        %3409 = vmatpush1.msra.mxu0 0.0
        %3410 = vmatprep.subr.mxu0 0.0
        %3411 = vmatpush1.msra.mxu0 0.0
        %3412 = vmatprep.subr.mxu0 0.0
        %3413 = vmatpush1.msra.mxu0 0.0
        %3414 = vmatprep.mubr.f32.mxu0 0.0
        %3415 = vmatmul.mubr.f32.gmra.mrb[0].mxu0 %v3348
        %v3416 = vpop.f32.mrb[0].mxu0
        %v3417 = vadd.f32 0.0, %v3416
        %v3418 = vpop.f32.mrb[0].mxu0
        %3419 = vdwg.mxu0
        %3420 = vrot.lane.b32.xlu0 %v2832, 104
        %v3421 = vpop.permute.xlu0 %3420
        %v3424 = vsel %vm700, %v3193, 0
        %3426 = vmatprep.subr.mxu0 0.0
        %3427 = vmatpush1.msra.mxu0 %v3421
        %3428 = vmatprep.subr.mxu0 0.0
        %3429 = vmatpush1.msra.mxu0 0.0
        %3430 = vmatprep.subr.mxu0 0.0
        %3431 = vmatpush1.msra.mxu0 0.0
        %3432 = vmatprep.subr.mxu0 0.0
        %3433 = vmatpush1.msra.mxu0 0.0
        %3434 = vmatprep.subr.mxu0 0.0
        %3435 = vmatpush1.msra.mxu0 0.0
        %3436 = vmatprep.subr.mxu0 0.0
        %3437 = vmatpush1.msra.mxu0 0.0
        %3438 = vmatprep.subr.mxu0 0.0
        %3439 = vmatpush1.msra.mxu0 0.0
        %3440 = vmatprep.subr.mxu0 0.0
        %3441 = vmatpush1.msra.mxu0 0.0
        %3442 = vmatprep.subr.mxu0 0.0
        %3443 = vmatpush1.msra.mxu0 0.0
        %3444 = vmatprep.subr.mxu0 0.0
        %3445 = vmatpush1.msra.mxu0 0.0
        %3446 = vmatprep.subr.mxu0 0.0
        %3447 = vmatpush1.msra.mxu0 0.0
        %3448 = vmatprep.subr.mxu0 0.0
        %3449 = vmatpush1.msra.mxu0 0.0
        %3450 = vmatprep.subr.mxu0 0.0
        %3451 = vmatpush1.msra.mxu0 0.0
        %3452 = vmatprep.subr.mxu0 0.0
        %3453 = vmatpush1.msra.mxu0 0.0
        %3454 = vmatprep.subr.mxu0 0.0
        %3455 = vmatpush1.msra.mxu0 0.0
        %3456 = vmatprep.subr.mxu0 0.0
        %3457 = vmatpush1.msra.mxu0 0.0
        %3458 = vmatprep.subr.mxu0 0.0
        %3459 = vmatpush1.msra.mxu0 0.0
        %3460 = vmatprep.subr.mxu0 0.0
        %3461 = vmatpush1.msra.mxu0 0.0
        %3462 = vmatprep.subr.mxu0 0.0
        %3463 = vmatpush1.msra.mxu0 0.0
        %3464 = vmatprep.subr.mxu0 0.0
        %3465 = vmatpush1.msra.mxu0 0.0
        %3466 = vmatprep.subr.mxu0 0.0
        %3467 = vmatpush1.msra.mxu0 0.0
        %3468 = vmatprep.subr.mxu0 0.0
        %3469 = vmatpush1.msra.mxu0 0.0
        %3470 = vmatprep.subr.mxu0 0.0
        %3471 = vmatpush1.msra.mxu0 0.0
        %3472 = vmatprep.subr.mxu0 0.0
        %3473 = vmatpush1.msra.mxu0 0.0
        %3474 = vmatprep.subr.mxu0 0.0
        %3475 = vmatpush1.msra.mxu0 0.0
        %3476 = vmatprep.subr.mxu0 0.0
        %3477 = vmatpush1.msra.mxu0 0.0
        %3478 = vmatprep.subr.mxu0 0.0
        %3479 = vmatpush1.msra.mxu0 0.0
        %3480 = vmatprep.subr.mxu0 0.0
        %3481 = vmatpush1.msra.mxu0 0.0
        %3482 = vmatprep.subr.mxu0 0.0
        %3483 = vmatpush1.msra.mxu0 0.0
        %3484 = vmatprep.subr.mxu0 0.0
        %3485 = vmatpush1.msra.mxu0 0.0
        %3486 = vmatprep.subr.mxu0 0.0
        %3487 = vmatpush1.msra.mxu0 0.0
        %3488 = vmatprep.subr.mxu0 0.0
        %3489 = vmatpush1.msra.mxu0 0.0
        %3490 = vmatprep.mubr.f32.mxu0 0.0
        %3491 = vmatmul.mubr.f32.gmra.mrb[0].mxu0 %v3424
        %v3492 = vpop.f32.mrb[0].mxu0
        %v3493 = vadd.f32 0.0, %v3492
        %v3494 = vpop.f32.mrb[0].mxu0
        %3495 = vdwg.mxu0
        %3497 = vrot.lane.b32.xlu0 %v3341, 8
        %v3498 = vpop.permute.xlu0 %3497
        %3501 = vrot.lane.b32.xlu0 %v3417, 16
        %v3502 = vpop.permute.xlu0 %3501
        %3505 = vrot.lane.b32.xlu0 %v3493, 24
        %v3506 = vpop.permute.xlu0 %3505
        %v3508 = vsel %vm700, %v3264, %v3498
        %v3509 = vsel %vm1372, %v3508, %v3502
        %v3510 = vsel %vm1374, %v3509, %v3506
        %v3511 = vlaneseq
        %v3512 = vshrl.u32 %v3511, 7
        %v3513 = vsub.s32 1, %v3512
        %v3514 = vrot.slane %v2678, %v3513
        %v3516 = vsel %vm546, %v3510, 0
        %3518 = vmatprep.subr.mxu0 0.0
        %3519 = vmatpush1.msra.mxu0 %v2645
        %3520 = vmatprep.subr.mxu0 0.0
        %3521 = vmatpush1.msra.mxu0 %v2646
        %3522 = vmatprep.subr.mxu0 0.0
        %3523 = vmatpush1.msra.mxu0 %v2647
        %3524 = vmatprep.subr.mxu0 0.0
        %3525 = vmatpush1.msra.mxu0 %v2648
        %3526 = vmatprep.subr.mxu0 0.0
        %3527 = vmatpush1.msra.mxu0 0.0
        %3528 = vmatprep.subr.mxu0 0.0
        %3529 = vmatpush1.msra.mxu0 0.0
        %3530 = vmatprep.subr.mxu0 0.0
        %3531 = vmatpush1.msra.mxu0 0.0
        %3532 = vmatprep.subr.mxu0 0.0
        %3533 = vmatpush1.msra.mxu0 0.0
        %3534 = vmatprep.subr.mxu0 0.0
        %3535 = vmatpush1.msra.mxu0 0.0
        %3536 = vmatprep.subr.mxu0 0.0
        %3537 = vmatpush1.msra.mxu0 0.0
        %3538 = vmatprep.subr.mxu0 0.0
        %3539 = vmatpush1.msra.mxu0 0.0
        %3540 = vmatprep.subr.mxu0 0.0
        %3541 = vmatpush1.msra.mxu0 0.0
        %3542 = vmatprep.subr.mxu0 0.0
        %3543 = vmatpush1.msra.mxu0 0.0
        %3544 = vmatprep.subr.mxu0 0.0
        %3545 = vmatpush1.msra.mxu0 0.0
        %3546 = vmatprep.subr.mxu0 0.0
        %3547 = vmatpush1.msra.mxu0 0.0
        %3548 = vmatprep.subr.mxu0 0.0
        %3549 = vmatpush1.msra.mxu0 0.0
        %3550 = vmatprep.subr.mxu0 0.0
        %3551 = vmatpush1.msra.mxu0 0.0
        %3552 = vmatprep.subr.mxu0 0.0
        %3553 = vmatpush1.msra.mxu0 0.0
        %3554 = vmatprep.subr.mxu0 0.0
        %3555 = vmatpush1.msra.mxu0 0.0
        %3556 = vmatprep.subr.mxu0 0.0
        %3557 = vmatpush1.msra.mxu0 0.0
        %3558 = vmatprep.subr.mxu0 0.0
        %3559 = vmatpush1.msra.mxu0 0.0
        %3560 = vmatprep.subr.mxu0 0.0
        %3561 = vmatpush1.msra.mxu0 0.0
        %3562 = vmatprep.subr.mxu0 0.0
        %3563 = vmatpush1.msra.mxu0 0.0
        %3564 = vmatprep.subr.mxu0 0.0
        %3565 = vmatpush1.msra.mxu0 0.0
        %3566 = vmatprep.subr.mxu0 0.0
        %3567 = vmatpush1.msra.mxu0 0.0
        %3568 = vmatprep.subr.mxu0 0.0
        %3569 = vmatpush1.msra.mxu0 0.0
        %3570 = vmatprep.subr.mxu0 0.0
        %3571 = vmatpush1.msra.mxu0 0.0
        %3572 = vmatprep.subr.mxu0 0.0
        %3573 = vmatpush1.msra.mxu0 0.0
        %3574 = vmatprep.subr.mxu0 0.0
        %3575 = vmatpush1.msra.mxu0 0.0
        %3576 = vmatprep.subr.mxu0 0.0
        %3577 = vmatpush1.msra.mxu0 0.0
        %3578 = vmatprep.subr.mxu0 0.0
        %3579 = vmatpush1.msra.mxu0 0.0
        %3580 = vmatprep.subr.mxu0 0.0
        %3581 = vmatpush1.msra.mxu0 0.0
        %3582 = vmatprep.mubr.f32.mxu0 0.0
        %3583 = vmatmul.mubr.f32.gmra.mrb[0].mxu0 %v3516
        %v3584 = vpop.f32.mrb[0].mxu0
        %v3585 = vadd.f32 %v3514, %v3584
        %v3586 = vpop.f32.mrb[0].mxu0
        %3587 = vdwg.mxu0
        %v3588 = vadd.f32 %v2627, %v3585
        %v3589 = vsel %vm546, %v3588, 0.0
        %3590 = vadd.xlane.f32.xlu0 %v3589
        %v3591 = vpop.xlane.xlu0 %3590
        %v3592 = vmul.f32 %v3591, %v1457
        %v3593 = vsub.f32 %v3588, %v3592
        %v3594 = vmul.f32 %v3593, %v3593
        %v3595 = vsel %vm546, %v3594, 0.0
        %3596 = vadd.xlane.f32.xlu0 %v3595
        %v3597 = vpop.xlane.xlu0 %3596
        %v3598 = vmul.f32 %v3597, %v1457
        %v3599 = vadd.f32 %v3598, 1e-05
        %v3600 = vrsqrt.pop %v3599
        %v3601 = vmul.f32 %v3593, %v3600
        %v3602 = vlaneseq
        %v3603 = vshrl.u32 %v3602, 7
        %v3604 = vsub.s32 5, %v3603
        %v3605 = vrot.slane %v2678, %v3604
        %v3606 = vmul.f32 %v3601, %v3605
        %v3607 = vlaneseq
        %v3608 = vshrl.u32 %v3607, 7
        %v3609 = vsub.s32 6, %v3608
        %v3610 = vrot.slane %v2678, %v3609
        %v3611 = vadd.f32 %v3606, %v3610
        %v3612 = vadd.f32 %v3611, %v494
        %v3613 = vlaneseq
        %v3614 = vshrl.u32 %v3613, 7
        %v3615 = vsub.s32 2, %v3614
        %v3616 = vrot.slane %v2678, %v3615
        %v3618 = vsel %vm546, %v3612, 0
        %3620 = vmatprep.subr.mxu0 0.0
        %3621 = vmatpush1.msra.mxu0 %v2650
        %3622 = vmatprep.subr.mxu0 0.0
        %3623 = vmatpush1.msra.mxu0 %v2651
        %3624 = vmatprep.subr.mxu0 0.0
        %3625 = vmatpush1.msra.mxu0 %v2652
        %3626 = vmatprep.subr.mxu0 0.0
        %3627 = vmatpush1.msra.mxu0 %v2653
        %3628 = vmatprep.subr.mxu0 0.0
        %3629 = vmatpush1.msra.mxu0 0.0
        %3630 = vmatprep.subr.mxu0 0.0
        %3631 = vmatpush1.msra.mxu0 0.0
        %3632 = vmatprep.subr.mxu0 0.0
        %3633 = vmatpush1.msra.mxu0 0.0
        %3634 = vmatprep.subr.mxu0 0.0
        %3635 = vmatpush1.msra.mxu0 0.0
        %3636 = vmatprep.subr.mxu0 0.0
        %3637 = vmatpush1.msra.mxu0 0.0
        %3638 = vmatprep.subr.mxu0 0.0
        %3639 = vmatpush1.msra.mxu0 0.0
        %3640 = vmatprep.subr.mxu0 0.0
        %3641 = vmatpush1.msra.mxu0 0.0
        %3642 = vmatprep.subr.mxu0 0.0
        %3643 = vmatpush1.msra.mxu0 0.0
        %3644 = vmatprep.subr.mxu0 0.0
        %3645 = vmatpush1.msra.mxu0 0.0
        %3646 = vmatprep.subr.mxu0 0.0
        %3647 = vmatpush1.msra.mxu0 0.0
        %3648 = vmatprep.subr.mxu0 0.0
        %3649 = vmatpush1.msra.mxu0 0.0
        %3650 = vmatprep.subr.mxu0 0.0
        %3651 = vmatpush1.msra.mxu0 0.0
        %3652 = vmatprep.subr.mxu0 0.0
        %3653 = vmatpush1.msra.mxu0 0.0
        %3654 = vmatprep.subr.mxu0 0.0
        %3655 = vmatpush1.msra.mxu0 0.0
        %3656 = vmatprep.subr.mxu0 0.0
        %3657 = vmatpush1.msra.mxu0 0.0
        %3658 = vmatprep.subr.mxu0 0.0
        %3659 = vmatpush1.msra.mxu0 0.0
        %3660 = vmatprep.subr.mxu0 0.0
        %3661 = vmatpush1.msra.mxu0 0.0
        %3662 = vmatprep.subr.mxu0 0.0
        %3663 = vmatpush1.msra.mxu0 0.0
        %3664 = vmatprep.subr.mxu0 0.0
        %3665 = vmatpush1.msra.mxu0 0.0
        %3666 = vmatprep.subr.mxu0 0.0
        %3667 = vmatpush1.msra.mxu0 0.0
        %3668 = vmatprep.subr.mxu0 0.0
        %3669 = vmatpush1.msra.mxu0 0.0
        %3670 = vmatprep.subr.mxu0 0.0
        %3671 = vmatpush1.msra.mxu0 0.0
        %3672 = vmatprep.subr.mxu0 0.0
        %3673 = vmatpush1.msra.mxu0 0.0
        %3674 = vmatprep.subr.mxu0 0.0
        %3675 = vmatpush1.msra.mxu0 0.0
        %3676 = vmatprep.subr.mxu0 0.0
        %3677 = vmatpush1.msra.mxu0 0.0
        %3678 = vmatprep.subr.mxu0 0.0
        %3679 = vmatpush1.msra.mxu0 0.0
        %3680 = vmatprep.subr.mxu0 0.0
        %3681 = vmatpush1.msra.mxu0 0.0
        %3682 = vmatprep.subr.mxu0 0.0
        %3683 = vmatpush1.msra.mxu0 0.0
        %3684 = vmatprep.mubr.f32.mxu0 0.0
        %3685 = vmatmul.mubr.f32.gmra.mrb[0].mxu0 %v3618
        %v3686 = vpop.f32.mrb[0].mxu0
        %v3687 = vadd.f32 %v3616, %v3686
        %v3688 = vpop.f32.mrb[0].mxu0
        %3689 = vdwg.mxu0
        %v3690 = vlaneseq
        %v3691 = vshrl.u32 %v3690, 7
        %v3692 = vsub.s32 1, %v3691
        %v3693 = vrot.slane %v2674, %v3692
        %3694 = vmatprep.subr.mxu0 0.0
        %3695 = vmatpush1.msra.mxu0 %v2635
        %3696 = vmatprep.subr.mxu0 0.0
        %3697 = vmatpush1.msra.mxu0 %v2636
        %3698 = vmatprep.subr.mxu0 0.0
        %3699 = vmatpush1.msra.mxu0 %v2637
        %3700 = vmatprep.subr.mxu0 0.0
        %3701 = vmatpush1.msra.mxu0 %v2638
        %3702 = vmatprep.subr.mxu0 0.0
        %3703 = vmatpush1.msra.mxu0 0.0
        %3704 = vmatprep.subr.mxu0 0.0
        %3705 = vmatpush1.msra.mxu0 0.0
        %3706 = vmatprep.subr.mxu0 0.0
        %3707 = vmatpush1.msra.mxu0 0.0
        %3708 = vmatprep.subr.mxu0 0.0
        %3709 = vmatpush1.msra.mxu0 0.0
        %3710 = vmatprep.subr.mxu0 0.0
        %3711 = vmatpush1.msra.mxu0 0.0
        %3712 = vmatprep.subr.mxu0 0.0
        %3713 = vmatpush1.msra.mxu0 0.0
        %3714 = vmatprep.subr.mxu0 0.0
        %3715 = vmatpush1.msra.mxu0 0.0
        %3716 = vmatprep.subr.mxu0 0.0
        %3717 = vmatpush1.msra.mxu0 0.0
        %3718 = vmatprep.subr.mxu0 0.0
        %3719 = vmatpush1.msra.mxu0 0.0
        %3720 = vmatprep.subr.mxu0 0.0
        %3721 = vmatpush1.msra.mxu0 0.0
        %3722 = vmatprep.subr.mxu0 0.0
        %3723 = vmatpush1.msra.mxu0 0.0
        %3724 = vmatprep.subr.mxu0 0.0
        %3725 = vmatpush1.msra.mxu0 0.0
        %3726 = vmatprep.subr.mxu0 0.0
        %3727 = vmatpush1.msra.mxu0 0.0
        %3728 = vmatprep.subr.mxu0 0.0
        %3729 = vmatpush1.msra.mxu0 0.0
        %3730 = vmatprep.subr.mxu0 0.0
        %3731 = vmatpush1.msra.mxu0 0.0
        %3732 = vmatprep.subr.mxu0 0.0
        %3733 = vmatpush1.msra.mxu0 0.0
        %3734 = vmatprep.subr.mxu0 0.0
        %3735 = vmatpush1.msra.mxu0 0.0
        %3736 = vmatprep.subr.mxu0 0.0
        %3737 = vmatpush1.msra.mxu0 0.0
        %3738 = vmatprep.subr.mxu0 0.0
        %3739 = vmatpush1.msra.mxu0 0.0
        %3740 = vmatprep.subr.mxu0 0.0
        %3741 = vmatpush1.msra.mxu0 0.0
        %3742 = vmatprep.subr.mxu0 0.0
        %3743 = vmatpush1.msra.mxu0 0.0
        %3744 = vmatprep.subr.mxu0 0.0
        %3745 = vmatpush1.msra.mxu0 0.0
        %3746 = vmatprep.subr.mxu0 0.0
        %3747 = vmatpush1.msra.mxu0 0.0
        %3748 = vmatprep.subr.mxu0 0.0
        %3749 = vmatpush1.msra.mxu0 0.0
        %3750 = vmatprep.subr.mxu0 0.0
        %3751 = vmatpush1.msra.mxu0 0.0
        %3752 = vmatprep.subr.mxu0 0.0
        %3753 = vmatpush1.msra.mxu0 0.0
        %3754 = vmatprep.subr.mxu0 0.0
        %3755 = vmatpush1.msra.mxu0 0.0
        %3756 = vmatprep.subr.mxu0 0.0
        %3757 = vmatpush1.msra.mxu0 0.0
        %3758 = vmatprep.mubr.f32.mxu0 0.0
        %3759 = vmatmul.mubr.f32.gmra.mrb[0].mxu0 %v1561
        %v3760 = vpop.f32.mrb[0].mxu0
        %v3761 = vadd.f32 %v3693, %v3760
        %v3762 = vpop.f32.mrb[0].mxu0
        %3763 = vmatprep.mubr.f32.mxu0 0.0
        %3764 = vmatmul.mubr.f32.gmra.mrb[0].mxu0 %v1564
        %v3765 = vpop.f32.mrb[0].mxu0
        %v3766 = vadd.f32 %v3693, %v3765
        %v3767 = vpop.f32.mrb[0].mxu0
        %3768 = vdwg.mxu0
        %v3770 = vsel %vm700, %v3687, 0
        %v3773 = vsel %vm700, %v3761, 0
        %v3776 = vsel %vm700, %v3766, 0
        %3778 = vmatprep.subr.mxu0 0.0
        %3779 = vmatpush1.xpose.msra.mxu0 %v3773
        %3780 = vmatprep.subr.mxu0 0.0
        %3781 = vmatpush1.xpose.msra.mxu0 %v3776
        %3782 = vmatprep.subr.mxu0 0.0
        %3783 = vmatpush1.xpose.msra.mxu0 0.0
        %3784 = vmatprep.subr.mxu0 0.0
        %3785 = vmatpush1.xpose.msra.mxu0 0.0
        %3786 = vmatprep.subr.mxu0 0.0
        %3787 = vmatpush1.xpose.msra.mxu0 0.0
        %3788 = vmatprep.subr.mxu0 0.0
        %3789 = vmatpush1.xpose.msra.mxu0 0.0
        %3790 = vmatprep.subr.mxu0 0.0
        %3791 = vmatpush1.xpose.msra.mxu0 0.0
        %3792 = vmatprep.subr.mxu0 0.0
        %3793 = vmatpush1.xpose.msra.mxu0 0.0
        %3794 = vmatprep.subr.mxu0 0.0
        %3795 = vmatpush1.xpose.msra.mxu0 0.0
        %3796 = vmatprep.subr.mxu0 0.0
        %3797 = vmatpush1.xpose.msra.mxu0 0.0
        %3798 = vmatprep.subr.mxu0 0.0
        %3799 = vmatpush1.xpose.msra.mxu0 0.0
        %3800 = vmatprep.subr.mxu0 0.0
        %3801 = vmatpush1.xpose.msra.mxu0 0.0
        %3802 = vmatprep.subr.mxu0 0.0
        %3803 = vmatpush1.xpose.msra.mxu0 0.0
        %3804 = vmatprep.subr.mxu0 0.0
        %3805 = vmatpush1.xpose.msra.mxu0 0.0
        %3806 = vmatprep.subr.mxu0 0.0
        %3807 = vmatpush1.xpose.msra.mxu0 0.0
        %3808 = vmatprep.subr.mxu0 0.0
        %3809 = vmatpush1.xpose.msra.mxu0 0.0
        %3810 = vmatprep.subr.mxu0 0.0
        %3811 = vmatpush1.xpose.msra.mxu0 0.0
        %3812 = vmatprep.subr.mxu0 0.0
        %3813 = vmatpush1.xpose.msra.mxu0 0.0
        %3814 = vmatprep.subr.mxu0 0.0
        %3815 = vmatpush1.xpose.msra.mxu0 0.0
        %3816 = vmatprep.subr.mxu0 0.0
        %3817 = vmatpush1.xpose.msra.mxu0 0.0
        %3818 = vmatprep.subr.mxu0 0.0
        %3819 = vmatpush1.xpose.msra.mxu0 0.0
        %3820 = vmatprep.subr.mxu0 0.0
        %3821 = vmatpush1.xpose.msra.mxu0 0.0
        %3822 = vmatprep.subr.mxu0 0.0
        %3823 = vmatpush1.xpose.msra.mxu0 0.0
        %3824 = vmatprep.subr.mxu0 0.0
        %3825 = vmatpush1.xpose.msra.mxu0 0.0
        %3826 = vmatprep.subr.mxu0 0.0
        %3827 = vmatpush1.xpose.msra.mxu0 0.0
        %3828 = vmatprep.subr.mxu0 0.0
        %3829 = vmatpush1.xpose.msra.mxu0 0.0
        %3830 = vmatprep.subr.mxu0 0.0
        %3831 = vmatpush1.xpose.msra.mxu0 0.0
        %3832 = vmatprep.subr.mxu0 0.0
        %3833 = vmatpush1.xpose.msra.mxu0 0.0
        %3834 = vmatprep.subr.mxu0 0.0
        %3835 = vmatpush1.xpose.msra.mxu0 0.0
        %3836 = vmatprep.subr.mxu0 0.0
        %3837 = vmatpush1.xpose.msra.mxu0 0.0
        %3838 = vmatprep.subr.mxu0 0.0
        %3839 = vmatpush1.xpose.msra.mxu0 0.0
        %3840 = vmatprep.subr.mxu0 0.0
        %3841 = vmatpush1.xpose.msra.mxu0 0.0
        %3842 = vmatprep.mubr.f32.mxu0 0.0
        %3843 = vmatmul.mubr.f32.gmra.mrb[0].mxu0 %v3770
        %v3844 = vpop.f32.mrb[0].mxu0
        %v3845 = vadd.f32 0.0, %v3844
        %v3846 = vpop.f32.mrb[0].mxu0
        %3847 = vdwg.mxu0
        %3848 = vrot.lane.b32.xlu0 %v3687, 120
        %v3849 = vpop.permute.xlu0 %3848
        %3850 = vrot.lane.b32.xlu0 %v3761, 120
        %v3851 = vpop.permute.xlu0 %3850
        %3852 = vrot.lane.b32.xlu0 %v3766, 120
        %v3853 = vpop.permute.xlu0 %3852
        %v3854 = vsel %vm700, %v3849, 0
        %v3856 = vsel %vm700, %v3851, 0
        %v3858 = vsel %vm700, %v3853, 0
        %3860 = vmatprep.subr.mxu0 0.0
        %3861 = vmatpush1.xpose.msra.mxu0 %v3856
        %3862 = vmatprep.subr.mxu0 0.0
        %3863 = vmatpush1.xpose.msra.mxu0 %v3858
        %3864 = vmatprep.subr.mxu0 0.0
        %3865 = vmatpush1.xpose.msra.mxu0 0.0
        %3866 = vmatprep.subr.mxu0 0.0
        %3867 = vmatpush1.xpose.msra.mxu0 0.0
        %3868 = vmatprep.subr.mxu0 0.0
        %3869 = vmatpush1.xpose.msra.mxu0 0.0
        %3870 = vmatprep.subr.mxu0 0.0
        %3871 = vmatpush1.xpose.msra.mxu0 0.0
        %3872 = vmatprep.subr.mxu0 0.0
        %3873 = vmatpush1.xpose.msra.mxu0 0.0
        %3874 = vmatprep.subr.mxu0 0.0
        %3875 = vmatpush1.xpose.msra.mxu0 0.0
        %3876 = vmatprep.subr.mxu0 0.0
        %3877 = vmatpush1.xpose.msra.mxu0 0.0
        %3878 = vmatprep.subr.mxu0 0.0
        %3879 = vmatpush1.xpose.msra.mxu0 0.0
        %3880 = vmatprep.subr.mxu0 0.0
        %3881 = vmatpush1.xpose.msra.mxu0 0.0
        %3882 = vmatprep.subr.mxu0 0.0
        %3883 = vmatpush1.xpose.msra.mxu0 0.0
        %3884 = vmatprep.subr.mxu0 0.0
        %3885 = vmatpush1.xpose.msra.mxu0 0.0
        %3886 = vmatprep.subr.mxu0 0.0
        %3887 = vmatpush1.xpose.msra.mxu0 0.0
        %3888 = vmatprep.subr.mxu0 0.0
        %3889 = vmatpush1.xpose.msra.mxu0 0.0
        %3890 = vmatprep.subr.mxu0 0.0
        %3891 = vmatpush1.xpose.msra.mxu0 0.0
        %3892 = vmatprep.subr.mxu0 0.0
        %3893 = vmatpush1.xpose.msra.mxu0 0.0
        %3894 = vmatprep.subr.mxu0 0.0
        %3895 = vmatpush1.xpose.msra.mxu0 0.0
        %3896 = vmatprep.subr.mxu0 0.0
        %3897 = vmatpush1.xpose.msra.mxu0 0.0
        %3898 = vmatprep.subr.mxu0 0.0
        %3899 = vmatpush1.xpose.msra.mxu0 0.0
        %3900 = vmatprep.subr.mxu0 0.0
        %3901 = vmatpush1.xpose.msra.mxu0 0.0
        %3902 = vmatprep.subr.mxu0 0.0
        %3903 = vmatpush1.xpose.msra.mxu0 0.0
        %3904 = vmatprep.subr.mxu0 0.0
        %3905 = vmatpush1.xpose.msra.mxu0 0.0
        %3906 = vmatprep.subr.mxu0 0.0
        %3907 = vmatpush1.xpose.msra.mxu0 0.0
        %3908 = vmatprep.subr.mxu0 0.0
        %3909 = vmatpush1.xpose.msra.mxu0 0.0
        %3910 = vmatprep.subr.mxu0 0.0
        %3911 = vmatpush1.xpose.msra.mxu0 0.0
        %3912 = vmatprep.subr.mxu0 0.0
        %3913 = vmatpush1.xpose.msra.mxu0 0.0
        %3914 = vmatprep.subr.mxu0 0.0
        %3915 = vmatpush1.xpose.msra.mxu0 0.0
        %3916 = vmatprep.subr.mxu0 0.0
        %3917 = vmatpush1.xpose.msra.mxu0 0.0
        %3918 = vmatprep.subr.mxu0 0.0
        %3919 = vmatpush1.xpose.msra.mxu0 0.0
        %3920 = vmatprep.subr.mxu0 0.0
        %3921 = vmatpush1.xpose.msra.mxu0 0.0
        %3922 = vmatprep.subr.mxu0 0.0
        %3923 = vmatpush1.xpose.msra.mxu0 0.0
        %3924 = vmatprep.mubr.f32.mxu0 0.0
        %3925 = vmatmul.mubr.f32.gmra.mrb[0].mxu0 %v3854
        %v3926 = vpop.f32.mrb[0].mxu0
        %v3927 = vadd.f32 0.0, %v3926
        %v3928 = vpop.f32.mrb[0].mxu0
        %3929 = vdwg.mxu0
        %3930 = vrot.lane.b32.xlu0 %v3687, 112
        %v3931 = vpop.permute.xlu0 %3930
        %3932 = vrot.lane.b32.xlu0 %v3761, 112
        %v3933 = vpop.permute.xlu0 %3932
        %3934 = vrot.lane.b32.xlu0 %v3766, 112
        %v3935 = vpop.permute.xlu0 %3934
        %v3936 = vsel %vm700, %v3931, 0
        %v3938 = vsel %vm700, %v3933, 0
        %v3940 = vsel %vm700, %v3935, 0
        %3942 = vmatprep.subr.mxu0 0.0
        %3943 = vmatpush1.xpose.msra.mxu0 %v3938
        %3944 = vmatprep.subr.mxu0 0.0
        %3945 = vmatpush1.xpose.msra.mxu0 %v3940
        %3946 = vmatprep.subr.mxu0 0.0
        %3947 = vmatpush1.xpose.msra.mxu0 0.0
        %3948 = vmatprep.subr.mxu0 0.0
        %3949 = vmatpush1.xpose.msra.mxu0 0.0
        %3950 = vmatprep.subr.mxu0 0.0
        %3951 = vmatpush1.xpose.msra.mxu0 0.0
        %3952 = vmatprep.subr.mxu0 0.0
        %3953 = vmatpush1.xpose.msra.mxu0 0.0
        %3954 = vmatprep.subr.mxu0 0.0
        %3955 = vmatpush1.xpose.msra.mxu0 0.0
        %3956 = vmatprep.subr.mxu0 0.0
        %3957 = vmatpush1.xpose.msra.mxu0 0.0
        %3958 = vmatprep.subr.mxu0 0.0
        %3959 = vmatpush1.xpose.msra.mxu0 0.0
        %3960 = vmatprep.subr.mxu0 0.0
        %3961 = vmatpush1.xpose.msra.mxu0 0.0
        %3962 = vmatprep.subr.mxu0 0.0
        %3963 = vmatpush1.xpose.msra.mxu0 0.0
        %3964 = vmatprep.subr.mxu0 0.0
        %3965 = vmatpush1.xpose.msra.mxu0 0.0
        %3966 = vmatprep.subr.mxu0 0.0
        %3967 = vmatpush1.xpose.msra.mxu0 0.0
        %3968 = vmatprep.subr.mxu0 0.0
        %3969 = vmatpush1.xpose.msra.mxu0 0.0
        %3970 = vmatprep.subr.mxu0 0.0
        %3971 = vmatpush1.xpose.msra.mxu0 0.0
        %3972 = vmatprep.subr.mxu0 0.0
        %3973 = vmatpush1.xpose.msra.mxu0 0.0
        %3974 = vmatprep.subr.mxu0 0.0
        %3975 = vmatpush1.xpose.msra.mxu0 0.0
        %3976 = vmatprep.subr.mxu0 0.0
        %3977 = vmatpush1.xpose.msra.mxu0 0.0
        %3978 = vmatprep.subr.mxu0 0.0
        %3979 = vmatpush1.xpose.msra.mxu0 0.0
        %3980 = vmatprep.subr.mxu0 0.0
        %3981 = vmatpush1.xpose.msra.mxu0 0.0
        %3982 = vmatprep.subr.mxu0 0.0
        %3983 = vmatpush1.xpose.msra.mxu0 0.0
        %3984 = vmatprep.subr.mxu0 0.0
        %3985 = vmatpush1.xpose.msra.mxu0 0.0
        %3986 = vmatprep.subr.mxu0 0.0
        %3987 = vmatpush1.xpose.msra.mxu0 0.0
        %3988 = vmatprep.subr.mxu0 0.0
        %3989 = vmatpush1.xpose.msra.mxu0 0.0
        %3990 = vmatprep.subr.mxu0 0.0
        %3991 = vmatpush1.xpose.msra.mxu0 0.0
        %3992 = vmatprep.subr.mxu0 0.0
        %3993 = vmatpush1.xpose.msra.mxu0 0.0
        %3994 = vmatprep.subr.mxu0 0.0
        %3995 = vmatpush1.xpose.msra.mxu0 0.0
        %3996 = vmatprep.subr.mxu0 0.0
        %3997 = vmatpush1.xpose.msra.mxu0 0.0
        %3998 = vmatprep.subr.mxu0 0.0
        %3999 = vmatpush1.xpose.msra.mxu0 0.0
        %4000 = vmatprep.subr.mxu0 0.0
        %4001 = vmatpush1.xpose.msra.mxu0 0.0
        %4002 = vmatprep.subr.mxu0 0.0
        %4003 = vmatpush1.xpose.msra.mxu0 0.0
        %4004 = vmatprep.subr.mxu0 0.0
        %4005 = vmatpush1.xpose.msra.mxu0 0.0
        %4006 = vmatprep.mubr.f32.mxu0 0.0
        %4007 = vmatmul.mubr.f32.gmra.mrb[0].mxu0 %v3936
        %v4008 = vpop.f32.mrb[0].mxu0
        %v4009 = vadd.f32 0.0, %v4008
        %v4010 = vpop.f32.mrb[0].mxu0
        %4011 = vdwg.mxu0
        %4012 = vrot.lane.b32.xlu0 %v3687, 104
        %v4013 = vpop.permute.xlu0 %4012
        %4014 = vrot.lane.b32.xlu0 %v3761, 104
        %v4015 = vpop.permute.xlu0 %4014
        %4016 = vrot.lane.b32.xlu0 %v3766, 104
        %v4017 = vpop.permute.xlu0 %4016
        %v4018 = vsel %vm700, %v4013, 0
        %v4020 = vsel %vm700, %v4015, 0
        %v4022 = vsel %vm700, %v4017, 0
        %4024 = vmatprep.subr.mxu0 0.0
        %4025 = vmatpush1.xpose.msra.mxu0 %v4020
        %4026 = vmatprep.subr.mxu0 0.0
        %4027 = vmatpush1.xpose.msra.mxu0 %v4022
        %4028 = vmatprep.subr.mxu0 0.0
        %4029 = vmatpush1.xpose.msra.mxu0 0.0
        %4030 = vmatprep.subr.mxu0 0.0
        %4031 = vmatpush1.xpose.msra.mxu0 0.0
        %4032 = vmatprep.subr.mxu0 0.0
        %4033 = vmatpush1.xpose.msra.mxu0 0.0
        %4034 = vmatprep.subr.mxu0 0.0
        %4035 = vmatpush1.xpose.msra.mxu0 0.0
        %4036 = vmatprep.subr.mxu0 0.0
        %4037 = vmatpush1.xpose.msra.mxu0 0.0
        %4038 = vmatprep.subr.mxu0 0.0
        %4039 = vmatpush1.xpose.msra.mxu0 0.0
        %4040 = vmatprep.subr.mxu0 0.0
        %4041 = vmatpush1.xpose.msra.mxu0 0.0
        %4042 = vmatprep.subr.mxu0 0.0
        %4043 = vmatpush1.xpose.msra.mxu0 0.0
        %4044 = vmatprep.subr.mxu0 0.0
        %4045 = vmatpush1.xpose.msra.mxu0 0.0
        %4046 = vmatprep.subr.mxu0 0.0
        %4047 = vmatpush1.xpose.msra.mxu0 0.0
        %4048 = vmatprep.subr.mxu0 0.0
        %4049 = vmatpush1.xpose.msra.mxu0 0.0
        %4050 = vmatprep.subr.mxu0 0.0
        %4051 = vmatpush1.xpose.msra.mxu0 0.0
        %4052 = vmatprep.subr.mxu0 0.0
        %4053 = vmatpush1.xpose.msra.mxu0 0.0
        %4054 = vmatprep.subr.mxu0 0.0
        %4055 = vmatpush1.xpose.msra.mxu0 0.0
        %4056 = vmatprep.subr.mxu0 0.0
        %4057 = vmatpush1.xpose.msra.mxu0 0.0
        %4058 = vmatprep.subr.mxu0 0.0
        %4059 = vmatpush1.xpose.msra.mxu0 0.0
        %4060 = vmatprep.subr.mxu0 0.0
        %4061 = vmatpush1.xpose.msra.mxu0 0.0
        %4062 = vmatprep.subr.mxu0 0.0
        %4063 = vmatpush1.xpose.msra.mxu0 0.0
        %4064 = vmatprep.subr.mxu0 0.0
        %4065 = vmatpush1.xpose.msra.mxu0 0.0
        %4066 = vmatprep.subr.mxu0 0.0
        %4067 = vmatpush1.xpose.msra.mxu0 0.0
        %4068 = vmatprep.subr.mxu0 0.0
        %4069 = vmatpush1.xpose.msra.mxu0 0.0
        %4070 = vmatprep.subr.mxu0 0.0
        %4071 = vmatpush1.xpose.msra.mxu0 0.0
        %4072 = vmatprep.subr.mxu0 0.0
        %4073 = vmatpush1.xpose.msra.mxu0 0.0
        %4074 = vmatprep.subr.mxu0 0.0
        %4075 = vmatpush1.xpose.msra.mxu0 0.0
        %4076 = vmatprep.subr.mxu0 0.0
        %4077 = vmatpush1.xpose.msra.mxu0 0.0
        %4078 = vmatprep.subr.mxu0 0.0
        %4079 = vmatpush1.xpose.msra.mxu0 0.0
        %4080 = vmatprep.subr.mxu0 0.0
        %4081 = vmatpush1.xpose.msra.mxu0 0.0
        %4082 = vmatprep.subr.mxu0 0.0
        %4083 = vmatpush1.xpose.msra.mxu0 0.0
        %4084 = vmatprep.subr.mxu0 0.0
        %4085 = vmatpush1.xpose.msra.mxu0 0.0
        %4086 = vmatprep.subr.mxu0 0.0
        %4087 = vmatpush1.xpose.msra.mxu0 0.0
        %4088 = vmatprep.mubr.f32.mxu0 0.0
        %4089 = vmatmul.mubr.f32.gmra.mrb[0].mxu0 %v4018
        %v4090 = vpop.f32.mrb[0].mxu0
        %v4091 = vadd.f32 0.0, %v4090
        %v4092 = vpop.f32.mrb[0].mxu0
        %4093 = vdwg.mxu0
        %v4094 = vmul.f32 %v3845, 0.35355338
        %v4095 = vmul.f32 %v3927, 0.35355338
        %v4096 = vmul.f32 %v4009, 0.35355338
        %v4097 = vmul.f32 %v4091, 0.35355338
        %v4098 = vsel %vm1372, %v4094, -inf
        %4099 = vmax.xlane.f32.xlu0 %v4098
        %v4100 = vpop.xlane.xlu0 %4099
        %v4101 = vsel %vm1372, %v4095, -inf
        %4102 = vmax.xlane.f32.xlu0 %v4101
        %v4103 = vpop.xlane.xlu0 %4102
        %v4104 = vsel %vm1372, %v4096, -inf
        %4105 = vmax.xlane.f32.xlu0 %v4104
        %v4106 = vpop.xlane.xlu0 %4105
        %v4107 = vsel %vm1372, %v4097, -inf
        %4108 = vmax.xlane.f32.xlu0 %v4107
        %v4109 = vpop.xlane.xlu0 %4108
        %v4110 = vsub.f32 %v4094, %v4100
        %v4111 = vsub.f32 %v4095, %v4103
        %v4112 = vsub.f32 %v4096, %v4106
        %v4113 = vsub.f32 %v4097, %v4109
        %v4114 = vmul.f32 %v4110, 1.442695
        %v4115 = vpow.pop %v4114
        %v4116 = vmul.f32 %v4111, 1.442695
        %v4117 = vpow.pop %v4116
        %v4118 = vmul.f32 %v4112, 1.442695
        %v4119 = vpow.pop %v4118
        %v4120 = vmul.f32 %v4113, 1.442695
        %v4121 = vpow.pop %v4120
        %v4122 = vsel %vm1372, %v4115, 0.0
        %4123 = vadd.xlane.f32.xlu0 %v4122
        %v4124 = vpop.xlane.xlu0 %4123
        %v4125 = vsel %vm1372, %v4117, 0.0
        %4126 = vadd.xlane.f32.xlu0 %v4125
        %v4127 = vpop.xlane.xlu0 %4126
        %v4128 = vsel %vm1372, %v4119, 0.0
        %4129 = vadd.xlane.f32.xlu0 %v4128
        %v4130 = vpop.xlane.xlu0 %4129
        %v4131 = vsel %vm1372, %v4121, 0.0
        %4132 = vadd.xlane.f32.xlu0 %v4131
        %v4133 = vpop.xlane.xlu0 %4132
        %v4134 = vrcp.pop %v4124
        %v4135 = vrcp.pop %v4127
        %v4136 = vrcp.pop %v4130
        %v4137 = vrcp.pop %v4133
        %v4138 = vmul.f32 %v4115, %v4134
        %v4139 = vmul.f32 %v4117, %v4135
        %v4140 = vmul.f32 %v4119, %v4136
        %v4141 = vmul.f32 %v4121, %v4137
        %4142 = vrot.lane.b32.xlu0 %v3761, 96
        %v4143 = vpop.permute.xlu0 %4142
        %4144 = vrot.lane.b32.xlu0 %v3766, 96
        %v4145 = vpop.permute.xlu0 %4144
        %v4149 = vsel %vm1372, %v4138, 0
        %4151 = vmatprep.subr.mxu0 0.0
        %4152 = vmatpush1.msra.mxu0 %v4143
        %4153 = vmatprep.subr.mxu0 0.0
        %4154 = vmatpush1.msra.mxu0 %v4145
        %4155 = vmatprep.subr.mxu0 0.0
        %4156 = vmatpush1.msra.mxu0 0.0
        %4157 = vmatprep.subr.mxu0 0.0
        %4158 = vmatpush1.msra.mxu0 0.0
        %4159 = vmatprep.subr.mxu0 0.0
        %4160 = vmatpush1.msra.mxu0 0.0
        %4161 = vmatprep.subr.mxu0 0.0
        %4162 = vmatpush1.msra.mxu0 0.0
        %4163 = vmatprep.subr.mxu0 0.0
        %4164 = vmatpush1.msra.mxu0 0.0
        %4165 = vmatprep.subr.mxu0 0.0
        %4166 = vmatpush1.msra.mxu0 0.0
        %4167 = vmatprep.subr.mxu0 0.0
        %4168 = vmatpush1.msra.mxu0 0.0
        %4169 = vmatprep.subr.mxu0 0.0
        %4170 = vmatpush1.msra.mxu0 0.0
        %4171 = vmatprep.subr.mxu0 0.0
        %4172 = vmatpush1.msra.mxu0 0.0
        %4173 = vmatprep.subr.mxu0 0.0
        %4174 = vmatpush1.msra.mxu0 0.0
        %4175 = vmatprep.subr.mxu0 0.0
        %4176 = vmatpush1.msra.mxu0 0.0
        %4177 = vmatprep.subr.mxu0 0.0
        %4178 = vmatpush1.msra.mxu0 0.0
        %4179 = vmatprep.subr.mxu0 0.0
        %4180 = vmatpush1.msra.mxu0 0.0
        %4181 = vmatprep.subr.mxu0 0.0
        %4182 = vmatpush1.msra.mxu0 0.0
        %4183 = vmatprep.subr.mxu0 0.0
        %4184 = vmatpush1.msra.mxu0 0.0
        %4185 = vmatprep.subr.mxu0 0.0
        %4186 = vmatpush1.msra.mxu0 0.0
        %4187 = vmatprep.subr.mxu0 0.0
        %4188 = vmatpush1.msra.mxu0 0.0
        %4189 = vmatprep.subr.mxu0 0.0
        %4190 = vmatpush1.msra.mxu0 0.0
        %4191 = vmatprep.subr.mxu0 0.0
        %4192 = vmatpush1.msra.mxu0 0.0
        %4193 = vmatprep.subr.mxu0 0.0
        %4194 = vmatpush1.msra.mxu0 0.0
        %4195 = vmatprep.subr.mxu0 0.0
        %4196 = vmatpush1.msra.mxu0 0.0
        %4197 = vmatprep.subr.mxu0 0.0
        %4198 = vmatpush1.msra.mxu0 0.0
        %4199 = vmatprep.subr.mxu0 0.0
        %4200 = vmatpush1.msra.mxu0 0.0
        %4201 = vmatprep.subr.mxu0 0.0
        %4202 = vmatpush1.msra.mxu0 0.0
        %4203 = vmatprep.subr.mxu0 0.0
        %4204 = vmatpush1.msra.mxu0 0.0
        %4205 = vmatprep.subr.mxu0 0.0
        %4206 = vmatpush1.msra.mxu0 0.0
        %4207 = vmatprep.subr.mxu0 0.0
        %4208 = vmatpush1.msra.mxu0 0.0
        %4209 = vmatprep.subr.mxu0 0.0
        %4210 = vmatpush1.msra.mxu0 0.0
        %4211 = vmatprep.subr.mxu0 0.0
        %4212 = vmatpush1.msra.mxu0 0.0
        %4213 = vmatprep.subr.mxu0 0.0
        %4214 = vmatpush1.msra.mxu0 0.0
        %4215 = vmatprep.mubr.f32.mxu0 0.0
        %4216 = vmatmul.mubr.f32.gmra.mrb[0].mxu0 %v4149
        %v4217 = vpop.f32.mrb[0].mxu0
        %v4218 = vadd.f32 0.0, %v4217
        %v4219 = vpop.f32.mrb[0].mxu0
        %4220 = vdwg.mxu0
        %4221 = vrot.lane.b32.xlu0 %v3761, 88
        %v4222 = vpop.permute.xlu0 %4221
        %4223 = vrot.lane.b32.xlu0 %v3766, 88
        %v4224 = vpop.permute.xlu0 %4223
        %v4228 = vsel %vm1372, %v4139, 0
        %4230 = vmatprep.subr.mxu0 0.0
        %4231 = vmatpush1.msra.mxu0 %v4222
        %4232 = vmatprep.subr.mxu0 0.0
        %4233 = vmatpush1.msra.mxu0 %v4224
        %4234 = vmatprep.subr.mxu0 0.0
        %4235 = vmatpush1.msra.mxu0 0.0
        %4236 = vmatprep.subr.mxu0 0.0
        %4237 = vmatpush1.msra.mxu0 0.0
        %4238 = vmatprep.subr.mxu0 0.0
        %4239 = vmatpush1.msra.mxu0 0.0
        %4240 = vmatprep.subr.mxu0 0.0
        %4241 = vmatpush1.msra.mxu0 0.0
        %4242 = vmatprep.subr.mxu0 0.0
        %4243 = vmatpush1.msra.mxu0 0.0
        %4244 = vmatprep.subr.mxu0 0.0
        %4245 = vmatpush1.msra.mxu0 0.0
        %4246 = vmatprep.subr.mxu0 0.0
        %4247 = vmatpush1.msra.mxu0 0.0
        %4248 = vmatprep.subr.mxu0 0.0
        %4249 = vmatpush1.msra.mxu0 0.0
        %4250 = vmatprep.subr.mxu0 0.0
        %4251 = vmatpush1.msra.mxu0 0.0
        %4252 = vmatprep.subr.mxu0 0.0
        %4253 = vmatpush1.msra.mxu0 0.0
        %4254 = vmatprep.subr.mxu0 0.0
        %4255 = vmatpush1.msra.mxu0 0.0
        %4256 = vmatprep.subr.mxu0 0.0
        %4257 = vmatpush1.msra.mxu0 0.0
        %4258 = vmatprep.subr.mxu0 0.0
        %4259 = vmatpush1.msra.mxu0 0.0
        %4260 = vmatprep.subr.mxu0 0.0
        %4261 = vmatpush1.msra.mxu0 0.0
        %4262 = vmatprep.subr.mxu0 0.0
        %4263 = vmatpush1.msra.mxu0 0.0
        %4264 = vmatprep.subr.mxu0 0.0
        %4265 = vmatpush1.msra.mxu0 0.0
        %4266 = vmatprep.subr.mxu0 0.0
        %4267 = vmatpush1.msra.mxu0 0.0
        %4268 = vmatprep.subr.mxu0 0.0
        %4269 = vmatpush1.msra.mxu0 0.0
        %4270 = vmatprep.subr.mxu0 0.0
        %4271 = vmatpush1.msra.mxu0 0.0
        %4272 = vmatprep.subr.mxu0 0.0
        %4273 = vmatpush1.msra.mxu0 0.0
        %4274 = vmatprep.subr.mxu0 0.0
        %4275 = vmatpush1.msra.mxu0 0.0
        %4276 = vmatprep.subr.mxu0 0.0
        %4277 = vmatpush1.msra.mxu0 0.0
        %4278 = vmatprep.subr.mxu0 0.0
        %4279 = vmatpush1.msra.mxu0 0.0
        %4280 = vmatprep.subr.mxu0 0.0
        %4281 = vmatpush1.msra.mxu0 0.0
        %4282 = vmatprep.subr.mxu0 0.0
        %4283 = vmatpush1.msra.mxu0 0.0
        %4284 = vmatprep.subr.mxu0 0.0
        %4285 = vmatpush1.msra.mxu0 0.0
        %4286 = vmatprep.subr.mxu0 0.0
        %4287 = vmatpush1.msra.mxu0 0.0
        %4288 = vmatprep.subr.mxu0 0.0
        %4289 = vmatpush1.msra.mxu0 0.0
        %4290 = vmatprep.subr.mxu0 0.0
        %4291 = vmatpush1.msra.mxu0 0.0
        %4292 = vmatprep.subr.mxu0 0.0
        %4293 = vmatpush1.msra.mxu0 0.0
        %4294 = vmatprep.mubr.f32.mxu0 0.0
        %4295 = vmatmul.mubr.f32.gmra.mrb[0].mxu0 %v4228
        %v4296 = vpop.f32.mrb[0].mxu0
        %v4297 = vadd.f32 0.0, %v4296
        %v4298 = vpop.f32.mrb[0].mxu0
        %4299 = vdwg.mxu0
        %4300 = vrot.lane.b32.xlu0 %v3761, 80
        %v4301 = vpop.permute.xlu0 %4300
        %4302 = vrot.lane.b32.xlu0 %v3766, 80
        %v4303 = vpop.permute.xlu0 %4302
        %v4307 = vsel %vm1372, %v4140, 0
        %4309 = vmatprep.subr.mxu0 0.0
        %4310 = vmatpush1.msra.mxu0 %v4301
        %4311 = vmatprep.subr.mxu0 0.0
        %4312 = vmatpush1.msra.mxu0 %v4303
        %4313 = vmatprep.subr.mxu0 0.0
        %4314 = vmatpush1.msra.mxu0 0.0
        %4315 = vmatprep.subr.mxu0 0.0
        %4316 = vmatpush1.msra.mxu0 0.0
        %4317 = vmatprep.subr.mxu0 0.0
        %4318 = vmatpush1.msra.mxu0 0.0
        %4319 = vmatprep.subr.mxu0 0.0
        %4320 = vmatpush1.msra.mxu0 0.0
        %4321 = vmatprep.subr.mxu0 0.0
        %4322 = vmatpush1.msra.mxu0 0.0
        %4323 = vmatprep.subr.mxu0 0.0
        %4324 = vmatpush1.msra.mxu0 0.0
        %4325 = vmatprep.subr.mxu0 0.0
        %4326 = vmatpush1.msra.mxu0 0.0
        %4327 = vmatprep.subr.mxu0 0.0
        %4328 = vmatpush1.msra.mxu0 0.0
        %4329 = vmatprep.subr.mxu0 0.0
        %4330 = vmatpush1.msra.mxu0 0.0
        %4331 = vmatprep.subr.mxu0 0.0
        %4332 = vmatpush1.msra.mxu0 0.0
        %4333 = vmatprep.subr.mxu0 0.0
        %4334 = vmatpush1.msra.mxu0 0.0
        %4335 = vmatprep.subr.mxu0 0.0
        %4336 = vmatpush1.msra.mxu0 0.0
        %4337 = vmatprep.subr.mxu0 0.0
        %4338 = vmatpush1.msra.mxu0 0.0
        %4339 = vmatprep.subr.mxu0 0.0
        %4340 = vmatpush1.msra.mxu0 0.0
        %4341 = vmatprep.subr.mxu0 0.0
        %4342 = vmatpush1.msra.mxu0 0.0
        %4343 = vmatprep.subr.mxu0 0.0
        %4344 = vmatpush1.msra.mxu0 0.0
        %4345 = vmatprep.subr.mxu0 0.0
        %4346 = vmatpush1.msra.mxu0 0.0
        %4347 = vmatprep.subr.mxu0 0.0
        %4348 = vmatpush1.msra.mxu0 0.0
        %4349 = vmatprep.subr.mxu0 0.0
        %4350 = vmatpush1.msra.mxu0 0.0
        %4351 = vmatprep.subr.mxu0 0.0
        %4352 = vmatpush1.msra.mxu0 0.0
        %4353 = vmatprep.subr.mxu0 0.0
        %4354 = vmatpush1.msra.mxu0 0.0
        %4355 = vmatprep.subr.mxu0 0.0
        %4356 = vmatpush1.msra.mxu0 0.0
        %4357 = vmatprep.subr.mxu0 0.0
        %4358 = vmatpush1.msra.mxu0 0.0
        %4359 = vmatprep.subr.mxu0 0.0
        %4360 = vmatpush1.msra.mxu0 0.0
        %4361 = vmatprep.subr.mxu0 0.0
        %4362 = vmatpush1.msra.mxu0 0.0
        %4363 = vmatprep.subr.mxu0 0.0
        %4364 = vmatpush1.msra.mxu0 0.0
        %4365 = vmatprep.subr.mxu0 0.0
        %4366 = vmatpush1.msra.mxu0 0.0
        %4367 = vmatprep.subr.mxu0 0.0
        %4368 = vmatpush1.msra.mxu0 0.0
        %4369 = vmatprep.subr.mxu0 0.0
        %4370 = vmatpush1.msra.mxu0 0.0
        %4371 = vmatprep.subr.mxu0 0.0
        %4372 = vmatpush1.msra.mxu0 0.0
        %4373 = vmatprep.mubr.f32.mxu0 0.0
        %4374 = vmatmul.mubr.f32.gmra.mrb[0].mxu0 %v4307
        %v4375 = vpop.f32.mrb[0].mxu0
        %v4376 = vadd.f32 0.0, %v4375
        %v4377 = vpop.f32.mrb[0].mxu0
        %4378 = vdwg.mxu0
        %4379 = vrot.lane.b32.xlu0 %v3761, 72
        %v4380 = vpop.permute.xlu0 %4379
        %4381 = vrot.lane.b32.xlu0 %v3766, 72
        %v4382 = vpop.permute.xlu0 %4381
        %v4386 = vsel %vm1372, %v4141, 0
        %4388 = vmatprep.subr.mxu0 0.0
        %4389 = vmatpush1.msra.mxu0 %v4380
        %4390 = vmatprep.subr.mxu0 0.0
        %4391 = vmatpush1.msra.mxu0 %v4382
        %4392 = vmatprep.subr.mxu0 0.0
        %4393 = vmatpush1.msra.mxu0 0.0
        %4394 = vmatprep.subr.mxu0 0.0
        %4395 = vmatpush1.msra.mxu0 0.0
        %4396 = vmatprep.subr.mxu0 0.0
        %4397 = vmatpush1.msra.mxu0 0.0
        %4398 = vmatprep.subr.mxu0 0.0
        %4399 = vmatpush1.msra.mxu0 0.0
        %4400 = vmatprep.subr.mxu0 0.0
        %4401 = vmatpush1.msra.mxu0 0.0
        %4402 = vmatprep.subr.mxu0 0.0
        %4403 = vmatpush1.msra.mxu0 0.0
        %4404 = vmatprep.subr.mxu0 0.0
        %4405 = vmatpush1.msra.mxu0 0.0
        %4406 = vmatprep.subr.mxu0 0.0
        %4407 = vmatpush1.msra.mxu0 0.0
        %4408 = vmatprep.subr.mxu0 0.0
        %4409 = vmatpush1.msra.mxu0 0.0
        %4410 = vmatprep.subr.mxu0 0.0
        %4411 = vmatpush1.msra.mxu0 0.0
        %4412 = vmatprep.subr.mxu0 0.0
        %4413 = vmatpush1.msra.mxu0 0.0
        %4414 = vmatprep.subr.mxu0 0.0
        %4415 = vmatpush1.msra.mxu0 0.0
        %4416 = vmatprep.subr.mxu0 0.0
        %4417 = vmatpush1.msra.mxu0 0.0
        %4418 = vmatprep.subr.mxu0 0.0
        %4419 = vmatpush1.msra.mxu0 0.0
        %4420 = vmatprep.subr.mxu0 0.0
        %4421 = vmatpush1.msra.mxu0 0.0
        %4422 = vmatprep.subr.mxu0 0.0
        %4423 = vmatpush1.msra.mxu0 0.0
        %4424 = vmatprep.subr.mxu0 0.0
        %4425 = vmatpush1.msra.mxu0 0.0
        %4426 = vmatprep.subr.mxu0 0.0
        %4427 = vmatpush1.msra.mxu0 0.0
        %4428 = vmatprep.subr.mxu0 0.0
        %4429 = vmatpush1.msra.mxu0 0.0
        %4430 = vmatprep.subr.mxu0 0.0
        %4431 = vmatpush1.msra.mxu0 0.0
        %4432 = vmatprep.subr.mxu0 0.0
        %4433 = vmatpush1.msra.mxu0 0.0
        %4434 = vmatprep.subr.mxu0 0.0
        %4435 = vmatpush1.msra.mxu0 0.0
        %4436 = vmatprep.subr.mxu0 0.0
        %4437 = vmatpush1.msra.mxu0 0.0
        %4438 = vmatprep.subr.mxu0 0.0
        %4439 = vmatpush1.msra.mxu0 0.0
        %4440 = vmatprep.subr.mxu0 0.0
        %4441 = vmatpush1.msra.mxu0 0.0
        %4442 = vmatprep.subr.mxu0 0.0
        %4443 = vmatpush1.msra.mxu0 0.0
        %4444 = vmatprep.subr.mxu0 0.0
        %4445 = vmatpush1.msra.mxu0 0.0
        %4446 = vmatprep.subr.mxu0 0.0
        %4447 = vmatpush1.msra.mxu0 0.0
        %4448 = vmatprep.subr.mxu0 0.0
        %4449 = vmatpush1.msra.mxu0 0.0
        %4450 = vmatprep.subr.mxu0 0.0
        %4451 = vmatpush1.msra.mxu0 0.0
        %4452 = vmatprep.mubr.f32.mxu0 0.0
        %4453 = vmatmul.mubr.f32.gmra.mrb[0].mxu0 %v4386
        %v4454 = vpop.f32.mrb[0].mxu0
        %v4455 = vadd.f32 0.0, %v4454
        %v4456 = vpop.f32.mrb[0].mxu0
        %4457 = vdwg.mxu0
        %4459 = vrot.lane.b32.xlu0 %v4297, 8
        %v4460 = vpop.permute.xlu0 %4459
        %4463 = vrot.lane.b32.xlu0 %v4376, 16
        %v4464 = vpop.permute.xlu0 %4463
        %4467 = vrot.lane.b32.xlu0 %v4455, 24
        %v4468 = vpop.permute.xlu0 %4467
        %v4470 = vsel %vm700, %v4218, %v4460
        %v4471 = vsel %vm1372, %v4470, %v4464
        %v4472 = vsel %vm1374, %v4471, %v4468
        %v4473 = vlaneseq
        %v4474 = vshrl.u32 %v4473, 7
        %v4475 = vsub.s32 3, %v4474
        %v4476 = vrot.slane %v2678, %v4475
        %v4478 = vsel %vm546, %v4472, 0
        %4480 = vmatprep.subr.mxu0 0.0
        %4481 = vmatpush1.msra.mxu0 %v2655
        %4482 = vmatprep.subr.mxu0 0.0
        %4483 = vmatpush1.msra.mxu0 %v2656
        %4484 = vmatprep.subr.mxu0 0.0
        %4485 = vmatpush1.msra.mxu0 %v2657
        %4486 = vmatprep.subr.mxu0 0.0
        %4487 = vmatpush1.msra.mxu0 %v2658
        %4488 = vmatprep.subr.mxu0 0.0
        %4489 = vmatpush1.msra.mxu0 0.0
        %4490 = vmatprep.subr.mxu0 0.0
        %4491 = vmatpush1.msra.mxu0 0.0
        %4492 = vmatprep.subr.mxu0 0.0
        %4493 = vmatpush1.msra.mxu0 0.0
        %4494 = vmatprep.subr.mxu0 0.0
        %4495 = vmatpush1.msra.mxu0 0.0
        %4496 = vmatprep.subr.mxu0 0.0
        %4497 = vmatpush1.msra.mxu0 0.0
        %4498 = vmatprep.subr.mxu0 0.0
        %4499 = vmatpush1.msra.mxu0 0.0
        %4500 = vmatprep.subr.mxu0 0.0
        %4501 = vmatpush1.msra.mxu0 0.0
        %4502 = vmatprep.subr.mxu0 0.0
        %4503 = vmatpush1.msra.mxu0 0.0
        %4504 = vmatprep.subr.mxu0 0.0
        %4505 = vmatpush1.msra.mxu0 0.0
        %4506 = vmatprep.subr.mxu0 0.0
        %4507 = vmatpush1.msra.mxu0 0.0
        %4508 = vmatprep.subr.mxu0 0.0
        %4509 = vmatpush1.msra.mxu0 0.0
        %4510 = vmatprep.subr.mxu0 0.0
        %4511 = vmatpush1.msra.mxu0 0.0
        %4512 = vmatprep.subr.mxu0 0.0
        %4513 = vmatpush1.msra.mxu0 0.0
        %4514 = vmatprep.subr.mxu0 0.0
        %4515 = vmatpush1.msra.mxu0 0.0
        %4516 = vmatprep.subr.mxu0 0.0
        %4517 = vmatpush1.msra.mxu0 0.0
        %4518 = vmatprep.subr.mxu0 0.0
        %4519 = vmatpush1.msra.mxu0 0.0
        %4520 = vmatprep.subr.mxu0 0.0
        %4521 = vmatpush1.msra.mxu0 0.0
        %4522 = vmatprep.subr.mxu0 0.0
        %4523 = vmatpush1.msra.mxu0 0.0
        %4524 = vmatprep.subr.mxu0 0.0
        %4525 = vmatpush1.msra.mxu0 0.0
        %4526 = vmatprep.subr.mxu0 0.0
        %4527 = vmatpush1.msra.mxu0 0.0
        %4528 = vmatprep.subr.mxu0 0.0
        %4529 = vmatpush1.msra.mxu0 0.0
        %4530 = vmatprep.subr.mxu0 0.0
        %4531 = vmatpush1.msra.mxu0 0.0
        %4532 = vmatprep.subr.mxu0 0.0
        %4533 = vmatpush1.msra.mxu0 0.0
        %4534 = vmatprep.subr.mxu0 0.0
        %4535 = vmatpush1.msra.mxu0 0.0
        %4536 = vmatprep.subr.mxu0 0.0
        %4537 = vmatpush1.msra.mxu0 0.0
        %4538 = vmatprep.subr.mxu0 0.0
        %4539 = vmatpush1.msra.mxu0 0.0
        %4540 = vmatprep.subr.mxu0 0.0
        %4541 = vmatpush1.msra.mxu0 0.0
        %4542 = vmatprep.subr.mxu0 0.0
        %4543 = vmatpush1.msra.mxu0 0.0
        %4544 = vmatprep.mubr.f32.mxu0 0.0
        %4545 = vmatmul.mubr.f32.gmra.mrb[0].mxu0 %v4478
        %v4546 = vpop.f32.mrb[0].mxu0
        %v4547 = vadd.f32 %v4476, %v4546
        %v4548 = vpop.f32.mrb[0].mxu0
        %4549 = vdwg.mxu0
        %v4550 = vadd.f32 %v3611, %v4547
        %v4551 = vsel %vm546, %v4550, 0.0
        %4552 = vadd.xlane.f32.xlu0 %v4551
        %v4553 = vpop.xlane.xlu0 %4552
        %v4554 = vmul.f32 %v4553, %v1457
        %v4555 = vsub.f32 %v4550, %v4554
        %v4556 = vmul.f32 %v4555, %v4555
        %v4557 = vsel %vm546, %v4556, 0.0
        %4558 = vadd.xlane.f32.xlu0 %v4557
        %v4559 = vpop.xlane.xlu0 %4558
        %v4560 = vmul.f32 %v4559, %v1457
        %v4561 = vadd.f32 %v4560, 1e-05
        %v4562 = vrsqrt.pop %v4561
        %v4563 = vmul.f32 %v4555, %v4562
        %v4564 = vlaneseq
        %v4565 = vshrl.u32 %v4564, 7
        %v4566 = vsub.s32 7, %v4565
        %v4567 = vrot.slane %v2678, %v4566
        %v4568 = vmul.f32 %v4563, %v4567
        %v4569 = vlaneseq
        %v4570 = vshrl.u32 %v4569, 7
        %v4571 = vsub.s32 0, %v4570
        %v4572 = vrot.slane %v2679, %v4571
        %v4573 = vadd.f32 %v4568, %v4572
        %v4575 = vlaneseq
        %v4576 = vshrl.u32 %v4575, 7
        %v4577 = vsub.s32 0, %v4576
        %v4578 = vrot.slane %v2676, %v4577
        %v4581 = vsel %vm546, %v4573, 0
        %4583 = vmatprep.subr.mxu0 0.0
        %4584 = vmatpush1.msra.mxu0 %v2660
        %4585 = vmatprep.subr.mxu0 0.0
        %4586 = vmatpush1.msra.mxu0 %v2661
        %4587 = vmatprep.subr.mxu0 0.0
        %4588 = vmatpush1.msra.mxu0 %v2662
        %4589 = vmatprep.subr.mxu0 0.0
        %4590 = vmatpush1.msra.mxu0 %v2663
        %4591 = vmatprep.subr.mxu0 0.0
        %4592 = vmatpush1.msra.mxu0 0.0
        %4593 = vmatprep.subr.mxu0 0.0
        %4594 = vmatpush1.msra.mxu0 0.0
        %4595 = vmatprep.subr.mxu0 0.0
        %4596 = vmatpush1.msra.mxu0 0.0
        %4597 = vmatprep.subr.mxu0 0.0
        %4598 = vmatpush1.msra.mxu0 0.0
        %4599 = vmatprep.subr.mxu0 0.0
        %4600 = vmatpush1.msra.mxu0 0.0
        %4601 = vmatprep.subr.mxu0 0.0
        %4602 = vmatpush1.msra.mxu0 0.0
        %4603 = vmatprep.subr.mxu0 0.0
        %4604 = vmatpush1.msra.mxu0 0.0
        %4605 = vmatprep.subr.mxu0 0.0
        %4606 = vmatpush1.msra.mxu0 0.0
        %4607 = vmatprep.subr.mxu0 0.0
        %4608 = vmatpush1.msra.mxu0 0.0
        %4609 = vmatprep.subr.mxu0 0.0
        %4610 = vmatpush1.msra.mxu0 0.0
        %4611 = vmatprep.subr.mxu0 0.0
        %4612 = vmatpush1.msra.mxu0 0.0
        %4613 = vmatprep.subr.mxu0 0.0
        %4614 = vmatpush1.msra.mxu0 0.0
        %4615 = vmatprep.subr.mxu0 0.0
        %4616 = vmatpush1.msra.mxu0 0.0
        %4617 = vmatprep.subr.mxu0 0.0
        %4618 = vmatpush1.msra.mxu0 0.0
        %4619 = vmatprep.subr.mxu0 0.0
        %4620 = vmatpush1.msra.mxu0 0.0
        %4621 = vmatprep.subr.mxu0 0.0
        %4622 = vmatpush1.msra.mxu0 0.0
        %4623 = vmatprep.subr.mxu0 0.0
        %4624 = vmatpush1.msra.mxu0 0.0
        %4625 = vmatprep.subr.mxu0 0.0
        %4626 = vmatpush1.msra.mxu0 0.0
        %4627 = vmatprep.subr.mxu0 0.0
        %4628 = vmatpush1.msra.mxu0 0.0
        %4629 = vmatprep.subr.mxu0 0.0
        %4630 = vmatpush1.msra.mxu0 0.0
        %4631 = vmatprep.subr.mxu0 0.0
        %4632 = vmatpush1.msra.mxu0 0.0
        %4633 = vmatprep.subr.mxu0 0.0
        %4634 = vmatpush1.msra.mxu0 0.0
        %4635 = vmatprep.subr.mxu0 0.0
        %4636 = vmatpush1.msra.mxu0 0.0
        %4637 = vmatprep.subr.mxu0 0.0
        %4638 = vmatpush1.msra.mxu0 0.0
        %4639 = vmatprep.subr.mxu0 0.0
        %4640 = vmatpush1.msra.mxu0 0.0
        %4641 = vmatprep.subr.mxu0 0.0
        %4642 = vmatpush1.msra.mxu0 0.0
        %4643 = vmatprep.subr.mxu0 0.0
        %4644 = vmatpush1.msra.mxu0 0.0
        %4645 = vmatprep.subr.mxu0 0.0
        %4646 = vmatpush1.msra.mxu0 0.0
        %4647 = vmatprep.mubr.f32.mxu0 0.0
        %4648 = vmatmul.mubr.f32.gmra.mrb[0].mxu0 %v4581
        %v4649 = vpop.f32.mrb[0].mxu0
        %v4650 = vadd.f32 %v4578, %v4649
        %v4651 = vpop.f32.mrb[0].mxu0
        %4652 = vdwg.mxu0
        %v4653 = vmax.f32 %v4650, 0.0
        %v4654 = vlaneseq
        %v4655 = vshrl.u32 %v4654, 7
        %v4656 = vsub.s32 4, %v4655
        %v4657 = vrot.slane %v2678, %v4656
        %v4659 = vsel %vm2530, %v4653, 0
        %4661 = vmatprep.subr.mxu0 0.0
        %4662 = vmatpush1.msra.mxu0 %v2665
        %4663 = vmatprep.subr.mxu0 0.0
        %4664 = vmatpush1.msra.mxu0 %v2666
        %4665 = vmatprep.subr.mxu0 0.0
        %4666 = vmatpush1.msra.mxu0 %v2667
        %4667 = vmatprep.subr.mxu0 0.0
        %4668 = vmatpush1.msra.mxu0 %v2668
        %4669 = vmatprep.subr.mxu0 0.0
        %4670 = vmatpush1.msra.mxu0 %v2669
        %4671 = vmatprep.subr.mxu0 0.0
        %4672 = vmatpush1.msra.mxu0 %v2670
        %4673 = vmatprep.subr.mxu0 0.0
        %4674 = vmatpush1.msra.mxu0 %v2671
        %4675 = vmatprep.subr.mxu0 0.0
        %4676 = vmatpush1.msra.mxu0 %v2672
        %4677 = vmatprep.subr.mxu0 0.0
        %4678 = vmatpush1.msra.mxu0 0.0
        %4679 = vmatprep.subr.mxu0 0.0
        %4680 = vmatpush1.msra.mxu0 0.0
        %4681 = vmatprep.subr.mxu0 0.0
        %4682 = vmatpush1.msra.mxu0 0.0
        %4683 = vmatprep.subr.mxu0 0.0
        %4684 = vmatpush1.msra.mxu0 0.0
        %4685 = vmatprep.subr.mxu0 0.0
        %4686 = vmatpush1.msra.mxu0 0.0
        %4687 = vmatprep.subr.mxu0 0.0
        %4688 = vmatpush1.msra.mxu0 0.0
        %4689 = vmatprep.subr.mxu0 0.0
        %4690 = vmatpush1.msra.mxu0 0.0
        %4691 = vmatprep.subr.mxu0 0.0
        %4692 = vmatpush1.msra.mxu0 0.0
        %4693 = vmatprep.subr.mxu0 0.0
        %4694 = vmatpush1.msra.mxu0 0.0
        %4695 = vmatprep.subr.mxu0 0.0
        %4696 = vmatpush1.msra.mxu0 0.0
        %4697 = vmatprep.subr.mxu0 0.0
        %4698 = vmatpush1.msra.mxu0 0.0
        %4699 = vmatprep.subr.mxu0 0.0
        %4700 = vmatpush1.msra.mxu0 0.0
        %4701 = vmatprep.subr.mxu0 0.0
        %4702 = vmatpush1.msra.mxu0 0.0
        %4703 = vmatprep.subr.mxu0 0.0
        %4704 = vmatpush1.msra.mxu0 0.0
        %4705 = vmatprep.subr.mxu0 0.0
        %4706 = vmatpush1.msra.mxu0 0.0
        %4707 = vmatprep.subr.mxu0 0.0
        %4708 = vmatpush1.msra.mxu0 0.0
        %4709 = vmatprep.subr.mxu0 0.0
        %4710 = vmatpush1.msra.mxu0 0.0
        %4711 = vmatprep.subr.mxu0 0.0
        %4712 = vmatpush1.msra.mxu0 0.0
        %4713 = vmatprep.subr.mxu0 0.0
        %4714 = vmatpush1.msra.mxu0 0.0
        %4715 = vmatprep.subr.mxu0 0.0
        %4716 = vmatpush1.msra.mxu0 0.0
        %4717 = vmatprep.subr.mxu0 0.0
        %4718 = vmatpush1.msra.mxu0 0.0
        %4719 = vmatprep.subr.mxu0 0.0
        %4720 = vmatpush1.msra.mxu0 0.0
        %4721 = vmatprep.subr.mxu0 0.0
        %4722 = vmatpush1.msra.mxu0 0.0
        %4723 = vmatprep.subr.mxu0 0.0
        %4724 = vmatpush1.msra.mxu0 0.0
        %4725 = vmatprep.mubr.f32.mxu0 0.0
        %4726 = vmatmul.mubr.f32.gmra.mrb[0].mxu0 %v4659
        %v4727 = vpop.f32.mrb[0].mxu0
        %v4728 = vadd.f32 %v4657, %v4727
        %v4729 = vpop.f32.mrb[0].mxu0
        %4730 = vdwg.mxu0
        %v4731 = vadd.f32 %v4573, %v4728
        %v4732 = vsel %vm546, %v4731, 0.0
        %4733 = vadd.xlane.f32.xlu0 %v4732
        %v4734 = vpop.xlane.xlu0 %4733
        %v4735 = vmul.f32 %v4734, %v1457
        %v4736 = vsub.f32 %v4731, %v4735
        %v4737 = vmul.f32 %v4736, %v4736
        %v4738 = vsel %vm546, %v4737, 0.0
        %4739 = vadd.xlane.f32.xlu0 %v4738
        %v4740 = vpop.xlane.xlu0 %4739
        %v4741 = vmul.f32 %v4740, %v1457
        %v4742 = vadd.f32 %v4741, 1e-05
        %v4743 = vrsqrt.pop %v4742
        %v4744 = vmul.f32 %v4736, %v4743
        %v4745 = vlaneseq
        %v4746 = vshrl.u32 %v4745, 7
        %v4747 = vsub.s32 1, %v4746
        %v4748 = vrot.slane %v2679, %v4747
        %v4749 = vmul.f32 %v4744, %v4748
        %v4750 = vlaneseq
        %v4751 = vshrl.u32 %v4750, 7
        %v4752 = vsub.s32 2, %v4751
        %v4753 = vrot.slane %v2679, %v4752
        %v4754 = vadd.f32 %v4749, %v4753
        %s4755 = scalar_lea.vmem %s492, 8 [#allocation13]
        %4756 = vst.msk [vmem:[%s4755] sm:$0xff] %vm546, %v4754
        %s4757 = sand.u32 %s265, 1
        %s4758 = scalar_lea.sflag [#allocation4], %s4757
        %s4759 = sand.u32 %s265, 1
        %s4760 = smul.addr %s4759, 16
        %s4761 = scalar_lea.vmem [#allocation13], %s4760
        // Predicated region
        $region85: #{tpu_custom_call.1} parent=59 // pred_check
          %p4762 = pneg %p275
        $region86: #{tpu_custom_call.1} parent=59 // pred_check_branch
          %4764 = sbr.rel (%p4762) target = $region88
        $region87: #{tpu_custom_call.1} parent=59 // pred_region
          %s4766 = ssub.s32 256, 256
          %4767 = vsyncadd %s4758, %s4766
          %s4768 = smul.addr %s32, 128
          %s4769 = scalar_lea.hbm %s10, %s4768
          %s4770 = sshll.u32 %s4761, 4
          %s4771 = int_to_ptr.vmem [resolvable:$true] %s4770
          %4776 = dma.vmem_to_hbm [thread:$0]  %s4771, 256, %s4769, %s4758, 128, 256, 8
        $region88: #{tpu_custom_call.1} parent=59 // pred_fallthru
          _
      $region60: #{tpu_custom_call.1} parent=5 // pred_fallthru
        _
      %p4777 = scmp.le.s32.totalorder 2, %s27
      // Predicated region
      $region89: #{tpu_custom_call.1} parent=5 // pred_check
        %p4778 = pneg %p4777
      $region90: #{tpu_custom_call.1} parent=5 // pred_check_branch
        %4780 = sbr.rel (%p4778) target = $region92
      $region91: #{tpu_custom_call.1} parent=5 // pred_region
        %s4781 = ssub.s32 %s27, 2
        // Predicated region
        $region93: #{tpu_custom_call.1} parent=91 // pred_check
          %p4782 = pneg %p281
        $region94: #{tpu_custom_call.1} parent=91 // pred_check_branch
          %4784 = sbr.rel (%p4782) target = $region96
        $region95: #{tpu_custom_call.1} parent=91 // pred_region
          %s4785 = sand.u32 %s266, 1
          %s4786 = scalar_lea.sflag [#allocation4], %s4785
          %s4787 = sand.u32 %s266, 1
          %s4788 = smul.addr %s4787, 16
          %s4789 = scalar_lea.vmem [#allocation13], %s4788
          %4790 = dma.done %s4786, 256
        $region96: #{tpu_custom_call.1} parent=91 // pred_fallthru
          _
      $region92: #{tpu_custom_call.1} parent=5 // pred_fallthru
        _
    $region6: #{tpu_custom_call.1} parent=1 // loop_footer
      %s31 = sadd.s32 1, %s27
    $region7: #{tpu_custom_call.1} parent=1 // loop_footer_branch
      %26 = sbr.rel target = $region3
    $region8: #{tpu_custom_call.1} parent=1 // loop_exit
      _
    %4791 = vsyncpa [#allocation3], 1
    %s4792 = scalar_lea.sflag [#allocation3], 1
    %4793 = vsyncpa %s4792, 1
    %4794 = vsyncpa [#allocation6], 1
    %s4795 = scalar_lea.sflag [#allocation6], 1
    %4796 = vsyncpa %s4795, 1
    %4797 = vsyncpa [#allocation9], 1
    %4798 = vsyncpa [#allocation12], 1
    %4799 = vsyncpa [#allocation4], 1
    %s4800 = scalar_lea.sflag [#allocation4], 1
    %4801 = vsyncpa %s4800, 1

</llo_original>
